<compile_context>
chip_gen: v6e
topology: v6e:2x2x1
jax: 0.10.0
libtpu: 0.0.40
codegen_flags: <defaults>
</compile_context>

<pallas_src>
import numpy as np

import jax
import jax.numpy as jnp
from jax.experimental import pallas as pl
from jax.experimental.pallas import tpu as pltpu

_MAX_B_TILE = 64  # images per grid step (multiple of 16 for bf16 packing)


def _pick_b_tile(n):
    """Multiple of 16, capped, and <= ~ceil(n/2) so the grid keeps >=2 steps."""
    half = -(-n // 2)
    bt = -(-half // 16) * 16
    return max(16, min(_MAX_B_TILE, bt))


# ------------------------ host-side constant builders -----------------------

def _col_pool_perm(x_in, c):
    """Lane permutation folding the 2x2 column pool into the conv weights:
    new lane  par*half + x*c + cc  <-  old lane (2*x + par)*c + cc."""
    x_out = x_in // 2
    perm = np.zeros(x_in * c, np.int32)
    for par in (0, 1):
        for x in range(x_out):
            for cc in range(c):
                perm[par * x_out * c + x * c + cc] = (2 * x + par) * c + cc
    return perm


_PERM1 = _col_pool_perm(24, 10)   # 240 lanes
_PERM2 = _col_pool_perm(8, 20)    # 160 lanes


def _prep_weights(params, dtype=jnp.bfloat16):
    """Fold im2col, flatten-order and the column-pool permutation into the
    weights (trace time, exact)."""
    w1, b1, w2, b2, fw1, fb1, fw2, fb2 = params

    # conv1 banded weight: rows = i*28 + xin, cols = xo*10 + c, then fold the
    # column-pool permutation and split into 5 K-blocks (no lane concat).
    w1s = w1.reshape(10, 5, 5)                                   # [c, i, j]
    xin = jnp.arange(28)[:, None, None]
    jj = jnp.arange(5)[None, :, None]
    xo = jnp.arange(24)[None, None, :]
    t1 = (xin - xo == jj).astype(jnp.float32)                    # (28, 5, 24)
    w1t = jnp.einsum('cij,xjy->ixyc', w1s, t1).reshape(140, 240)
    w1t = w1t[:, jnp.asarray(_PERM1)]                            # exact perm
    w1t = w1t.reshape(5, 28, 240).astype(dtype)
    b1t = jnp.tile(b1, 12).reshape(1, 120).astype(jnp.float32)   # lanes x1*10+c

    # conv2 banded weight: rows = i*120 + x1*10 + c, cols = x2*20 + c2.
    x1 = jnp.arange(12)[:, None, None]
    x2 = jnp.arange(8)[None, None, :]
    t2 = (x1 - x2 == jj).astype(jnp.float32)                     # (12, 5, 8)
    w2t = jnp.einsum('acij,xjy->ixcya', w2, t2).reshape(600, 160)
    w2t = w2t[:, jnp.asarray(_PERM2)]                            # exact perm
    w2t = w2t.reshape(5, 120, 160).astype(dtype)
    b2t = jnp.tile(b2, 4).reshape(1, 80).astype(jnp.float32)     # lanes x3*20+c2

    # fc1 rows permuted to (y3, x3, c2) to match the in-kernel a2 layout
    # (PyTorch's .view(-1, 320) flatten order is (c2, y3, x3)).
    fw1p = fw1.reshape(50, 20, 4, 4).transpose(2, 3, 1, 0).reshape(320, 50)
    fw1p = fw1p.astype(dtype)
    fb1r = fb1.reshape(1, 50).astype(jnp.float32)

    fw2t = fw2.T.astype(dtype)                                   # (50, 10)
    fb2r = fb2.reshape(1, 10).astype(jnp.float32)
    return w1t, b1t, w2t, b2t, fw1p, fb1r, fw2t, fb2r


# -------------------------------- the kernel ---------------------------------

def _make_kernel(B):
    f32 = jnp.float32
    bf16 = jnp.bfloat16

    def kernel(x_ref, w1t_ref, b1t_ref, w2t_ref, b2t_ref,
               fw1_ref, fb1_ref, fw2_ref, fb2_ref, out_ref):
        x = x_ref[0]                               # (28B, 28) bf16, rows y*B+b

        # ---- conv1: 5 accumulated K-block matmuls (banded weight) ----
        h1 = jnp.dot(x[0:24 * B, :], w1t_ref[0],
                     preferred_element_type=f32)
        for i in range(1, 5):
            h1 = h1 + jnp.dot(x[i * B:i * B + 24 * B, :], w1t_ref[i],
                              preferred_element_type=f32)
        # h1: (24B, 240), rows yo*B+b, lanes already pool-permuted.

        # ---- 2x2 max pool (VPU) + bias + relu ----
        hr = h1.reshape(12, 2 * B, 240)
        hp1 = jnp.maximum(hr[:, :B, :], hr[:, B:, :]).reshape(12 * B, 240)
        a1 = jnp.maximum(jnp.maximum(hp1[:, :120], hp1[:, 120:])
                         + b1t_ref[...], 0.0)      # (12B, 120) f32
        a1b = a1.astype(bf16)

        # ---- conv2 (Dropout2d = eval-mode identity): 5 K=120 matmuls ----
        # TODO(synk): Dropout2d / F.dropout are stochastic only in training;
        # identity here (inference mode).
        h2 = jnp.dot(a1b[0:8 * B, :], w2t_ref[0],
                     preferred_element_type=f32)
        for i in range(1, 5):
            h2 = h2 + jnp.dot(a1b[i * B:i * B + 8 * B, :], w2t_ref[i],
                              preferred_element_type=f32)
        # h2: (8B, 160)

        hr2 = h2.reshape(4, 2 * B, 160)
        hp2 = jnp.maximum(hr2[:, :B, :], hr2[:, B:, :]).reshape(4 * B, 160)
        a2 = jnp.maximum(jnp.maximum(hp2[:, :80], hp2[:, 80:])
                         + b2t_ref[...], 0.0)      # (4B, 80) f32
        a2b = a2.astype(bf16)

        # ---- fc1 + relu: 4-way K accumulation into one f32 buffer ----
        z = fb1_ref[...]
        for y in range(4):
            z = z + jnp.dot(a2b[y * B:(y + 1) * B, :],
                            fw1_ref[y * 80:(y + 1) * 80, :],
                            preferred_element_type=f32)
        a3 = jnp.maximum(z, 0.0).astype(bf16)      # (B, 50)

        # ---- fc2 + log_softmax ----
        logits = (jnp.dot(a3, fw2_ref[...], preferred_element_type=f32)
                  + fb2_ref[...])
        m = jnp.max(logits, axis=-1, keepdims=True)
        s = logits - m
        lse = jnp.log(jnp.sum(jnp.exp(s), axis=-1, keepdims=True))
        out_ref[...] = (s - lse).astype(out_ref.dtype)

    return kernel


# --------------------------------- wrapper -----------------------------------

def mnist_cnn_forward(x, params, T=1.0):
    """Forward pass of MNIST_CNN (inference mode). x: (N, 1, 28, 28) f32."""
    del T  # unused by the original forward as well
    N = x.shape[0]
    assert x.shape[1:] == (1, 28, 28), x.shape

    B = _pick_b_tile(N)
    n_pad = (-N) % B
    np_tot = N + n_pad
    nt = np_tot // B

    # input prep: (N,1,28,28) -> (nt, 28*B, 28) bf16, rows ordered y*B + b
    xp = jnp.pad(x.reshape(N, 28, 28), ((0, n_pad), (0, 0), (0, 0)))
    xr = xp.reshape(nt, B, 28, 28).transpose(0, 2, 1, 3).reshape(nt, 28 * B, 28)
    xr = xr.astype(jnp.bfloat16)

    consts = _prep_weights(params)

    in_specs = [pl.BlockSpec((1, 28 * B, 28), lambda t: (t, 0, 0))]
    in_specs += [pl.BlockSpec(a.shape, (lambda nd: (lambda t: (0,) * nd))(a.ndim))
                 for a in consts]

    out = pl.pallas_call(
        _make_kernel(B),
        out_shape=jax.ShapeDtypeStruct((np_tot, 10), jnp.float32),
        grid=(nt,),
        in_specs=in_specs,
        out_specs=pl.BlockSpec((B, 10), lambda t: (t, 0)),
        compiler_params=pltpu.CompilerParams(
            dimension_semantics=("parallel",),
            vmem_limit_bytes=32 * 1024 * 1024),
    )(xr, *consts)
    return out[:N]


# ----------------------------- params / reference ----------------------------

def init_params(key):
    """Deterministic params with the exact shapes of MNIST_CNN.__init__."""
    ks = jax.random.split(key, 8)

    def u(k, shape, fan_in):
        bound = 1.0 / (fan_in ** 0.5)
        return jax.random.uniform(k, shape, jnp.float32, -bound, bound)

    w1 = u(ks[0], (10, 1, 5, 5), 1 * 5 * 5)    # conv1.weight
    b1 = u(ks[1], (10,), 1 * 5 * 5)            # conv1.bias
    w2 = u(ks[2], (20, 10, 5, 5), 10 * 5 * 5)  # conv2.weight
    b2 = u(ks[3], (20,), 10 * 5 * 5)           # conv2.bias
    fw1 = u(ks[4], (50, 320), 320)             # fc1.weight
    fb1 = u(ks[5], (50,), 320)                 # fc1.bias
    fw2 = u(ks[6], (10, 50), 50)               # fc2.weight
    fb2 = u(ks[7], (10,), 50)                  # fc2.bias
    return (w1, b1, w2, b2, fw1, fb1, fw2, fb2)


def _reference_forward(x, params):
    """Pure-JAX f32 reference (for a loose numerical sanity check)."""
    w1, b1, w2, b2, fw1, fb1, fw2, fb2 = params
    dn = ('NCHW', 'OIHW', 'NCHW')
    y = jax.lax.conv_general_dilated(x, w1, (1, 1), 'VALID',
                                     dimension_numbers=dn)
    y = y + b1[None, :, None, None]
    y = jax.nn.relu(jax.lax.reduce_window(y, -jnp.inf, jax.lax.max,
                                          (1, 1, 2, 2), (1, 1, 2, 2), 'VALID'))
    y = jax.lax.conv_general_dilated(y, w2, (1, 1), 'VALID',
                                     dimension_numbers=dn)
    y = y + b2[None, :, None, None]
    y = jax.nn.relu(jax.lax.reduce_window(y, -jnp.inf, jax.lax.max,
                                          (1, 1, 2, 2), (1, 1, 2, 2), 'VALID'))
    y = y.reshape(y.shape[0], 320)
    y = jax.nn.relu(y @ fw1.T + fb1)
    y = y @ fw2.T + fb2
    return jax.nn.log_softmax(y, axis=-1)


if __name__ == "__main__":
    key = jax.random.PRNGKey(0)
    kx, kp = jax.random.split(key)
    # MNIST-like input: 28x28 is required for the .view(-1, 320) flatten.
    # batch=24 -> B_TILE=16, 2 grid steps, exercises the padding path.
    x = jax.random.normal(kx, (24, 1, 28, 28), jnp.float32)
    params = init_params(kp)

    out = jax.jit(mnist_cnn_forward)(x, params)
    out = jax.block_until_ready(out)

    assert out.shape == (24, 10), out.shape
    # log_softmax rows must exponentiate-sum to 1
    row_sums = jnp.exp(out).sum(axis=1)
    assert bool(jnp.all(jnp.abs(row_sums - 1.0) < 1e-3)), row_sums
    # loose check against a pure-JAX f32 reference (kernel uses bf16 MXU inputs)
    ref = jax.jit(_reference_forward)(x, params)
    max_err = float(jnp.max(jnp.abs(out - ref)))
    assert max_err < 5e-2, max_err
    print("KERNEL_OK")
</pallas_src>

<mosaic_0001>
module attributes {stable_mosaic.version = 11 : i64} {
  func.func @kernel(%arg0: i32, %arg1: memref<1x448x28xbf16, #tpu.memory_space<vmem>>, %arg2: memref<5x28x240xbf16, #tpu.memory_space<vmem>>, %arg3: memref<1x120xf32, #tpu.memory_space<vmem>>, %arg4: memref<5x120x160xbf16, #tpu.memory_space<vmem>>, %arg5: memref<1x80xf32, #tpu.memory_space<vmem>>, %arg6: memref<320x50xbf16, #tpu.memory_space<vmem>>, %arg7: memref<1x50xf32, #tpu.memory_space<vmem>>, %arg8: memref<50x10xbf16, #tpu.memory_space<vmem>>, %arg9: memref<1x10xf32, #tpu.memory_space<vmem>>, %arg10: memref<16x10xf32, #tpu.memory_space<vmem>>) attributes {dimension_semantics = [#tpu.dimension_semantics<parallel>], iteration_bounds = array<i64: 2>, scalar_prefetch = 0 : i64, scratch_operands = 0 : i64, tpu.core_type = #tpu.core_type<tc>, window_params = [{transform_indices = @transform_0, window_bounds = array<i64: 1, 448, 28>}, {pipeline_mode = #tpu.pipeline_mode<synchronous>, transform_indices = @transform_1, window_bounds = array<i64: 5, 28, 240>}, {pipeline_mode = #tpu.pipeline_mode<synchronous>, transform_indices = @transform_2, window_bounds = array<i64: 1, 120>}, {pipeline_mode = #tpu.pipeline_mode<synchronous>, transform_indices = @transform_3, window_bounds = array<i64: 5, 120, 160>}, {pipeline_mode = #tpu.pipeline_mode<synchronous>, transform_indices = @transform_4, window_bounds = array<i64: 1, 80>}, {pipeline_mode = #tpu.pipeline_mode<synchronous>, transform_indices = @transform_5, window_bounds = array<i64: 320, 50>}, {pipeline_mode = #tpu.pipeline_mode<synchronous>, transform_indices = @transform_6, window_bounds = array<i64: 1, 50>}, {pipeline_mode = #tpu.pipeline_mode<synchronous>, transform_indices = @transform_7, window_bounds = array<i64: 50, 10>}, {pipeline_mode = #tpu.pipeline_mode<synchronous>, transform_indices = @transform_8, window_bounds = array<i64: 1, 10>}, {transform_indices = @transform_9, window_bounds = array<i64: 16, 10>}]} {
    %c0 = arith.constant 0 : index
    %c0_0 = arith.constant 0 : index
    %c0_1 = arith.constant 0 : index
    %0 = vector.load %arg1[%c0, %c0_0, %c0_1] : memref<1x448x28xbf16, #tpu.memory_space<vmem>>, vector<1x448x28xbf16>
    %1 = vector.shape_cast %0 : vector<1x448x28xbf16> to vector<448x28xbf16>
    %2 = vector.extract_strided_slice %1 {offsets = [0, 0], sizes = [384, 28], strides = [1, 1]} : vector<448x28xbf16> to vector<384x28xbf16>
    %c0_2 = arith.constant 0 : index
    %c0_3 = arith.constant 0 : index
    %c0_4 = arith.constant 0 : index
    %3 = vector.load %arg2[%c0_2, %c0_3, %c0_4] : memref<5x28x240xbf16, #tpu.memory_space<vmem>>, vector<1x28x240xbf16>
    %4 = vector.shape_cast %3 : vector<1x28x240xbf16> to vector<28x240xbf16>
    %cst = arith.constant dense<0.000000e+00> : vector<384x240xf32>
    %5 = tpu.matmul %2, %4, %cst {dimension_numbers = #tpu.dot_dimension_numbers<[1], [0], [0], [1], [0, 0, 1, 1], [], []>} : vector<384x28xbf16>, vector<28x240xbf16>, vector<384x240xf32> -> vector<384x240xf32>
    %6 = vector.extract_strided_slice %1 {offsets = [16, 0], sizes = [384, 28], strides = [1, 1]} : vector<448x28xbf16> to vector<384x28xbf16>
    %c1 = arith.constant 1 : index
    %c0_5 = arith.constant 0 : index
    %c0_6 = arith.constant 0 : index
    %7 = vector.load %arg2[%c1, %c0_5, %c0_6] : memref<5x28x240xbf16, #tpu.memory_space<vmem>>, vector<1x28x240xbf16>
    %8 = vector.shape_cast %7 : vector<1x28x240xbf16> to vector<28x240xbf16>
    %cst_7 = arith.constant dense<0.000000e+00> : vector<384x240xf32>
    %9 = tpu.matmul %6, %8, %cst_7 {dimension_numbers = #tpu.dot_dimension_numbers<[1], [0], [0], [1], [0, 0, 1, 1], [], []>} : vector<384x28xbf16>, vector<28x240xbf16>, vector<384x240xf32> -> vector<384x240xf32>
    %10 = arith.addf %5, %9 : vector<384x240xf32>
    %11 = vector.extract_strided_slice %1 {offsets = [32, 0], sizes = [384, 28], strides = [1, 1]} : vector<448x28xbf16> to vector<384x28xbf16>
    %c2 = arith.constant 2 : index
    %c0_8 = arith.constant 0 : index
    %c0_9 = arith.constant 0 : index
    %12 = vector.load %arg2[%c2, %c0_8, %c0_9] : memref<5x28x240xbf16, #tpu.memory_space<vmem>>, vector<1x28x240xbf16>
    %13 = vector.shape_cast %12 : vector<1x28x240xbf16> to vector<28x240xbf16>
    %cst_10 = arith.constant dense<0.000000e+00> : vector<384x240xf32>
    %14 = tpu.matmul %11, %13, %cst_10 {dimension_numbers = #tpu.dot_dimension_numbers<[1], [0], [0], [1], [0, 0, 1, 1], [], []>} : vector<384x28xbf16>, vector<28x240xbf16>, vector<384x240xf32> -> vector<384x240xf32>
    %15 = arith.addf %10, %14 : vector<384x240xf32>
    %16 = vector.extract_strided_slice %1 {offsets = [48, 0], sizes = [384, 28], strides = [1, 1]} : vector<448x28xbf16> to vector<384x28xbf16>
    %c3 = arith.constant 3 : index
    %c0_11 = arith.constant 0 : index
    %c0_12 = arith.constant 0 : index
    %17 = vector.load %arg2[%c3, %c0_11, %c0_12] : memref<5x28x240xbf16, #tpu.memory_space<vmem>>, vector<1x28x240xbf16>
    %18 = vector.shape_cast %17 : vector<1x28x240xbf16> to vector<28x240xbf16>
    %cst_13 = arith.constant dense<0.000000e+00> : vector<384x240xf32>
    %19 = tpu.matmul %16, %18, %cst_13 {dimension_numbers = #tpu.dot_dimension_numbers<[1], [0], [0], [1], [0, 0, 1, 1], [], []>} : vector<384x28xbf16>, vector<28x240xbf16>, vector<384x240xf32> -> vector<384x240xf32>
    %20 = arith.addf %15, %19 : vector<384x240xf32>
    %21 = vector.extract_strided_slice %1 {offsets = [64, 0], sizes = [384, 28], strides = [1, 1]} : vector<448x28xbf16> to vector<384x28xbf16>
    %c4 = arith.constant 4 : index
    %c0_14 = arith.constant 0 : index
    %c0_15 = arith.constant 0 : index
    %22 = vector.load %arg2[%c4, %c0_14, %c0_15] : memref<5x28x240xbf16, #tpu.memory_space<vmem>>, vector<1x28x240xbf16>
    %23 = vector.shape_cast %22 : vector<1x28x240xbf16> to vector<28x240xbf16>
    %cst_16 = arith.constant dense<0.000000e+00> : vector<384x240xf32>
    %24 = tpu.matmul %21, %23, %cst_16 {dimension_numbers = #tpu.dot_dimension_numbers<[1], [0], [0], [1], [0, 0, 1, 1], [], []>} : vector<384x28xbf16>, vector<28x240xbf16>, vector<384x240xf32> -> vector<384x240xf32>
    %25 = arith.addf %20, %24 : vector<384x240xf32>
    %26 = vector.shape_cast %25 : vector<384x240xf32> to vector<12x32x240xf32>
    %27 = vector.extract_strided_slice %26 {offsets = [0, 0, 0], sizes = [12, 16, 240], strides = [1, 1, 1]} : vector<12x32x240xf32> to vector<12x16x240xf32>
    %28 = vector.extract_strided_slice %26 {offsets = [0, 16, 0], sizes = [12, 16, 240], strides = [1, 1, 1]} : vector<12x32x240xf32> to vector<12x16x240xf32>
    %29 = arith.maximumf %27, %28 : vector<12x16x240xf32>
    %30 = vector.shape_cast %29 : vector<12x16x240xf32> to vector<192x240xf32>
    %31 = vector.extract_strided_slice %30 {offsets = [0, 0], sizes = [192, 120], strides = [1, 1]} : vector<192x240xf32> to vector<192x120xf32>
    %32 = vector.extract_strided_slice %30 {offsets = [0, 120], sizes = [192, 120], strides = [1, 1]} : vector<192x240xf32> to vector<192x120xf32>
    %33 = arith.maximumf %31, %32 : vector<192x120xf32>
    %c0_17 = arith.constant 0 : index
    %c0_18 = arith.constant 0 : index
    %34 = vector.load %arg3[%c0_17, %c0_18] : memref<1x120xf32, #tpu.memory_space<vmem>>, vector<1x120xf32>
    %35 = vector.broadcast %34 : vector<1x120xf32> to vector<192x120xf32>
    %36 = arith.addf %33, %35 : vector<192x120xf32>
    %cst_19 = arith.constant 0.000000e+00 : f32
    %37 = vector.broadcast %cst_19 : f32 to vector<192x120xf32>
    %38 = arith.maximumf %36, %37 : vector<192x120xf32>
    %39 = arith.truncf %38 : vector<192x120xf32> to vector<192x120xbf16>
    %40 = vector.extract_strided_slice %39 {offsets = [0, 0], sizes = [128, 120], strides = [1, 1]} : vector<192x120xbf16> to vector<128x120xbf16>
    %c0_20 = arith.constant 0 : index
    %c0_21 = arith.constant 0 : index
    %c0_22 = arith.constant 0 : index
    %41 = vector.load %arg4[%c0_20, %c0_21, %c0_22] : memref<5x120x160xbf16, #tpu.memory_space<vmem>>, vector<1x120x160xbf16>
    %42 = vector.shape_cast %41 : vector<1x120x160xbf16> to vector<120x160xbf16>
    %cst_23 = arith.constant dense<0.000000e+00> : vector<128x160xf32>
    %43 = tpu.matmul %40, %42, %cst_23 {dimension_numbers = #tpu.dot_dimension_numbers<[1], [0], [0], [1], [0, 0, 1, 1], [], []>} : vector<128x120xbf16>, vector<120x160xbf16>, vector<128x160xf32> -> vector<128x160xf32>
    %44 = vector.extract_strided_slice %39 {offsets = [16, 0], sizes = [128, 120], strides = [1, 1]} : vector<192x120xbf16> to vector<128x120xbf16>
    %c1_24 = arith.constant 1 : index
    %c0_25 = arith.constant 0 : index
    %c0_26 = arith.constant 0 : index
    %45 = vector.load %arg4[%c1_24, %c0_25, %c0_26] : memref<5x120x160xbf16, #tpu.memory_space<vmem>>, vector<1x120x160xbf16>
    %46 = vector.shape_cast %45 : vector<1x120x160xbf16> to vector<120x160xbf16>
    %cst_27 = arith.constant dense<0.000000e+00> : vector<128x160xf32>
    %47 = tpu.matmul %44, %46, %cst_27 {dimension_numbers = #tpu.dot_dimension_numbers<[1], [0], [0], [1], [0, 0, 1, 1], [], []>} : vector<128x120xbf16>, vector<120x160xbf16>, vector<128x160xf32> -> vector<128x160xf32>
    %48 = arith.addf %43, %47 : vector<128x160xf32>
    %49 = vector.extract_strided_slice %39 {offsets = [32, 0], sizes = [128, 120], strides = [1, 1]} : vector<192x120xbf16> to vector<128x120xbf16>
    %c2_28 = arith.constant 2 : index
    %c0_29 = arith.constant 0 : index
    %c0_30 = arith.constant 0 : index
    %50 = vector.load %arg4[%c2_28, %c0_29, %c0_30] : memref<5x120x160xbf16, #tpu.memory_space<vmem>>, vector<1x120x160xbf16>
    %51 = vector.shape_cast %50 : vector<1x120x160xbf16> to vector<120x160xbf16>
    %cst_31 = arith.constant dense<0.000000e+00> : vector<128x160xf32>
    %52 = tpu.matmul %49, %51, %cst_31 {dimension_numbers = #tpu.dot_dimension_numbers<[1], [0], [0], [1], [0, 0, 1, 1], [], []>} : vector<128x120xbf16>, vector<120x160xbf16>, vector<128x160xf32> -> vector<128x160xf32>
    %53 = arith.addf %48, %52 : vector<128x160xf32>
    %54 = vector.extract_strided_slice %39 {offsets = [48, 0], sizes = [128, 120], strides = [1, 1]} : vector<192x120xbf16> to vector<128x120xbf16>
    %c3_32 = arith.constant 3 : index
    %c0_33 = arith.constant 0 : index
    %c0_34 = arith.constant 0 : index
    %55 = vector.load %arg4[%c3_32, %c0_33, %c0_34] : memref<5x120x160xbf16, #tpu.memory_space<vmem>>, vector<1x120x160xbf16>
    %56 = vector.shape_cast %55 : vector<1x120x160xbf16> to vector<120x160xbf16>
    %cst_35 = arith.constant dense<0.000000e+00> : vector<128x160xf32>
    %57 = tpu.matmul %54, %56, %cst_35 {dimension_numbers = #tpu.dot_dimension_numbers<[1], [0], [0], [1], [0, 0, 1, 1], [], []>} : vector<128x120xbf16>, vector<120x160xbf16>, vector<128x160xf32> -> vector<128x160xf32>
    %58 = arith.addf %53, %57 : vector<128x160xf32>
    %59 = vector.extract_strided_slice %39 {offsets = [64, 0], sizes = [128, 120], strides = [1, 1]} : vector<192x120xbf16> to vector<128x120xbf16>
    %c4_36 = arith.constant 4 : index
    %c0_37 = arith.constant 0 : index
    %c0_38 = arith.constant 0 : index
    %60 = vector.load %arg4[%c4_36, %c0_37, %c0_38] : memref<5x120x160xbf16, #tpu.memory_space<vmem>>, vector<1x120x160xbf16>
    %61 = vector.shape_cast %60 : vector<1x120x160xbf16> to vector<120x160xbf16>
    %cst_39 = arith.constant dense<0.000000e+00> : vector<128x160xf32>
    %62 = tpu.matmul %59, %61, %cst_39 {dimension_numbers = #tpu.dot_dimension_numbers<[1], [0], [0], [1], [0, 0, 1, 1], [], []>} : vector<128x120xbf16>, vector<120x160xbf16>, vector<128x160xf32> -> vector<128x160xf32>
    %63 = arith.addf %58, %62 : vector<128x160xf32>
    %64 = vector.shape_cast %63 : vector<128x160xf32> to vector<4x32x160xf32>
    %65 = vector.extract_strided_slice %64 {offsets = [0, 0, 0], sizes = [4, 16, 160], strides = [1, 1, 1]} : vector<4x32x160xf32> to vector<4x16x160xf32>
    %66 = vector.extract_strided_slice %64 {offsets = [0, 16, 0], sizes = [4, 16, 160], strides = [1, 1, 1]} : vector<4x32x160xf32> to vector<4x16x160xf32>
    %67 = arith.maximumf %65, %66 : vector<4x16x160xf32>
    %68 = vector.shape_cast %67 : vector<4x16x160xf32> to vector<64x160xf32>
    %69 = vector.extract_strided_slice %68 {offsets = [0, 0], sizes = [64, 80], strides = [1, 1]} : vector<64x160xf32> to vector<64x80xf32>
    %70 = vector.extract_strided_slice %68 {offsets = [0, 80], sizes = [64, 80], strides = [1, 1]} : vector<64x160xf32> to vector<64x80xf32>
    %71 = arith.maximumf %69, %70 : vector<64x80xf32>
    %c0_40 = arith.constant 0 : index
    %c0_41 = arith.constant 0 : index
    %72 = vector.load %arg5[%c0_40, %c0_41] : memref<1x80xf32, #tpu.memory_space<vmem>>, vector<1x80xf32>
    %73 = vector.broadcast %72 : vector<1x80xf32> to vector<64x80xf32>
    %74 = arith.addf %71, %73 : vector<64x80xf32>
    %cst_42 = arith.constant 0.000000e+00 : f32
    %75 = vector.broadcast %cst_42 : f32 to vector<64x80xf32>
    %76 = arith.maximumf %74, %75 : vector<64x80xf32>
    %77 = arith.truncf %76 : vector<64x80xf32> to vector<64x80xbf16>
    %c0_43 = arith.constant 0 : index
    %c0_44 = arith.constant 0 : index
    %78 = vector.load %arg7[%c0_43, %c0_44] : memref<1x50xf32, #tpu.memory_space<vmem>>, vector<1x50xf32>
    %79 = vector.extract_strided_slice %77 {offsets = [0, 0], sizes = [16, 80], strides = [1, 1]} : vector<64x80xbf16> to vector<16x80xbf16>
    %c0_45 = arith.constant 0 : index
    %c0_46 = arith.constant 0 : index
    %80 = vector.load %arg6[%c0_45, %c0_46] : memref<320x50xbf16, #tpu.memory_space<vmem>>, vector<80x50xbf16>
    %cst_47 = arith.constant dense<0.000000e+00> : vector<16x50xf32>
    %81 = tpu.matmul %79, %80, %cst_47 {dimension_numbers = #tpu.dot_dimension_numbers<[1], [0], [0], [1], [0, 0, 1, 1], [], []>} : vector<16x80xbf16>, vector<80x50xbf16>, vector<16x50xf32> -> vector<16x50xf32>
    %82 = vector.broadcast %78 : vector<1x50xf32> to vector<16x50xf32>
    %83 = arith.addf %82, %81 : vector<16x50xf32>
    %84 = vector.extract_strided_slice %77 {offsets = [16, 0], sizes = [16, 80], strides = [1, 1]} : vector<64x80xbf16> to vector<16x80xbf16>
    %c80 = arith.constant 80 : index
    %c0_48 = arith.constant 0 : index
    %85 = vector.load %arg6[%c80, %c0_48] : memref<320x50xbf16, #tpu.memory_space<vmem>>, vector<80x50xbf16>
    %cst_49 = arith.constant dense<0.000000e+00> : vector<16x50xf32>
    %86 = tpu.matmul %84, %85, %cst_49 {dimension_numbers = #tpu.dot_dimension_numbers<[1], [0], [0], [1], [0, 0, 1, 1], [], []>} : vector<16x80xbf16>, vector<80x50xbf16>, vector<16x50xf32> -> vector<16x50xf32>
    %87 = arith.addf %83, %86 : vector<16x50xf32>
    %88 = vector.extract_strided_slice %77 {offsets = [32, 0], sizes = [16, 80], strides = [1, 1]} : vector<64x80xbf16> to vector<16x80xbf16>
    %c160 = arith.constant 160 : index
    %c0_50 = arith.constant 0 : index
    %89 = vector.load %arg6[%c160, %c0_50] : memref<320x50xbf16, #tpu.memory_space<vmem>>, vector<80x50xbf16>
    %cst_51 = arith.constant dense<0.000000e+00> : vector<16x50xf32>
    %90 = tpu.matmul %88, %89, %cst_51 {dimension_numbers = #tpu.dot_dimension_numbers<[1], [0], [0], [1], [0, 0, 1, 1], [], []>} : vector<16x80xbf16>, vector<80x50xbf16>, vector<16x50xf32> -> vector<16x50xf32>
    %91 = arith.addf %87, %90 : vector<16x50xf32>
    %92 = vector.extract_strided_slice %77 {offsets = [48, 0], sizes = [16, 80], strides = [1, 1]} : vector<64x80xbf16> to vector<16x80xbf16>
    %c240 = arith.constant 240 : index
    %c0_52 = arith.constant 0 : index
    %93 = vector.load %arg6[%c240, %c0_52] : memref<320x50xbf16, #tpu.memory_space<vmem>>, vector<80x50xbf16>
    %cst_53 = arith.constant dense<0.000000e+00> : vector<16x50xf32>
    %94 = tpu.matmul %92, %93, %cst_53 {dimension_numbers = #tpu.dot_dimension_numbers<[1], [0], [0], [1], [0, 0, 1, 1], [], []>} : vector<16x80xbf16>, vector<80x50xbf16>, vector<16x50xf32> -> vector<16x50xf32>
    %95 = arith.addf %91, %94 : vector<16x50xf32>
    %cst_54 = arith.constant 0.000000e+00 : f32
    %96 = vector.broadcast %cst_54 : f32 to vector<16x50xf32>
    %97 = arith.maximumf %95, %96 : vector<16x50xf32>
    %98 = arith.truncf %97 : vector<16x50xf32> to vector<16x50xbf16>
    %c0_55 = arith.constant 0 : index
    %c0_56 = arith.constant 0 : index
    %99 = vector.load %arg8[%c0_55, %c0_56] : memref<50x10xbf16, #tpu.memory_space<vmem>>, vector<50x10xbf16>
    %cst_57 = arith.constant dense<0.000000e+00> : vector<16x10xf32>
    %100 = tpu.matmul %98, %99, %cst_57 {dimension_numbers = #tpu.dot_dimension_numbers<[1], [0], [0], [1], [0, 0, 1, 1], [], []>} : vector<16x50xbf16>, vector<50x10xbf16>, vector<16x10xf32> -> vector<16x10xf32>
    %c0_58 = arith.constant 0 : index
    %c0_59 = arith.constant 0 : index
    %101 = vector.load %arg9[%c0_58, %c0_59] : memref<1x10xf32, #tpu.memory_space<vmem>>, vector<1x10xf32>
    %102 = vector.broadcast %101 : vector<1x10xf32> to vector<16x10xf32>
    %103 = arith.addf %100, %102 : vector<16x10xf32>
    %cst_60 = arith.constant dense<0xFF800000> : vector<16xf32>
    %104 = vector.multi_reduction <maximumf>, %103, %cst_60 [1] : vector<16x10xf32> to vector<16xf32>
    %105 = vector.shape_cast %104 : vector<16xf32> to vector<16x1xf32>
    %106 = vector.broadcast %105 : vector<16x1xf32> to vector<16x10xf32>
    %107 = arith.subf %103, %106 : vector<16x10xf32>
    %108 = math.exp %107 : vector<16x10xf32>
    %cst_61 = arith.constant dense<0.000000e+00> : vector<16xf32>
    %109 = vector.multi_reduction <add>, %108, %cst_61 [1] : vector<16x10xf32> to vector<16xf32>
    %110 = vector.shape_cast %109 : vector<16xf32> to vector<16x1xf32>
    %111 = math.log %110 : vector<16x1xf32>
    %112 = vector.broadcast %111 : vector<16x1xf32> to vector<16x10xf32>
    %113 = arith.subf %107, %112 : vector<16x10xf32>
    %c0_62 = arith.constant 0 : index
    %c0_63 = arith.constant 0 : index
    %114 = vector.load %arg10[%c0_62, %c0_63] : memref<16x10xf32, #tpu.memory_space<vmem>>, vector<16x10xf32>
    tpu.vector_store %arg10[%c0_62, %c0_63], %113 {strides = array<i32>} : memref<16x10xf32, #tpu.memory_space<vmem>>, vector<16x10xf32>,
    return
  }
  func.func @transform_0(%arg0: i32) -> (i32, i32, i32) {
    %c0_i32 = arith.constant 0 : i32
    %c0_i32_0 = arith.constant 0 : i32
    %c0_i32_1 = arith.constant 0 : i32
    return %arg0, %c0_i32, %c0_i32_0 : i32, i32, i32
  }
  func.func @transform_1(%arg0: i32) -> (i32, i32, i32) {
    %c0_i32 = arith.constant 0 : i32
    %c0_i32_0 = arith.constant 0 : i32
    %c0_i32_1 = arith.constant 0 : i32
    %c0_i32_2 = arith.constant 0 : i32
    return %c0_i32, %c0_i32_0, %c0_i32_1 : i32, i32, i32
  }
  func.func @transform_2(%arg0: i32) -> (i32, i32) {
    %c0_i32 = arith.constant 0 : i32
    %c0_i32_0 = arith.constant 0 : i32
    %c0_i32_1 = arith.constant 0 : i32
    return %c0_i32, %c0_i32_0 : i32, i32
  }
  func.func @transform_3(%arg0: i32) -> (i32, i32, i32) {
    %c0_i32 = arith.constant 0 : i32
    %c0_i32_0 = arith.constant 0 : i32
    %c0_i32_1 = arith.constant 0 : i32
    %c0_i32_2 = arith.constant 0 : i32
    return %c0_i32, %c0_i32_0, %c0_i32_1 : i32, i32, i32
  }
  func.func @transform_4(%arg0: i32) -> (i32, i32) {
    %c0_i32 = arith.constant 0 : i32
    %c0_i32_0 = arith.constant 0 : i32
    %c0_i32_1 = arith.constant 0 : i32
    return %c0_i32, %c0_i32_0 : i32, i32
  }
  func.func @transform_5(%arg0: i32) -> (i32, i32) {
    %c0_i32 = arith.constant 0 : i32
    %c0_i32_0 = arith.constant 0 : i32
    %c0_i32_1 = arith.constant 0 : i32
    return %c0_i32, %c0_i32_0 : i32, i32
  }
  func.func @transform_6(%arg0: i32) -> (i32, i32) {
    %c0_i32 = arith.constant 0 : i32
    %c0_i32_0 = arith.constant 0 : i32
    %c0_i32_1 = arith.constant 0 : i32
    return %c0_i32, %c0_i32_0 : i32, i32
  }
  func.func @transform_7(%arg0: i32) -> (i32, i32) {
    %c0_i32 = arith.constant 0 : i32
    %c0_i32_0 = arith.constant 0 : i32
    %c0_i32_1 = arith.constant 0 : i32
    return %c0_i32, %c0_i32_0 : i32, i32
  }
  func.func @transform_8(%arg0: i32) -> (i32, i32) {
    %c0_i32 = arith.constant 0 : i32
    %c0_i32_0 = arith.constant 0 : i32
    %c0_i32_1 = arith.constant 0 : i32
    return %c0_i32, %c0_i32_0 : i32, i32
  }
  func.func @transform_9(%arg0: i32) -> (i32, i32) {
    %c0_i32 = arith.constant 0 : i32
    %c0_i32_0 = arith.constant 0 : i32
    return %arg0, %c0_i32 : i32, i32
  }
}

</mosaic_0001>

<llo_original>
// kernel: tile.13
$region0: #{tile.13}
  #allocation0 [shape = 's32[1]{0}', space=sflag, size = 0x4, scoped, tag = 'scoped memory for tile.13']
  %s0 = inlined_call_operand.vmem [shape: f32[10], index: 0, kind: input, shape index: {}]
  %s1 = inlined_call_operand.vmem [shape: f32[12,10], index: 1, kind: output, shape index: {}]
  // Predicated region
  $region2: #{tile.13} parent=0 // pred_check
    _
  $region3: #{tile.13} parent=0 // pred_check_branch
    %3 = sbr.rel (0) target = $region5
  $region4: #{tile.13} parent=0 // pred_region
    _
  $region5: #{tile.13} parent=0 // pred_fallthru
    _
  %v4 = vld [vmem:[%s0] ss:$0 sm:$0xff]
  %5 = vst [vmem:[%s1] sm:$0xff] %v4
  %s6 = scalar_lea.vmem %s1, 8
  %7 = vst [vmem:[%s6] sm:$0xff] %v4

// kernel: tile.14
$region0: #{tile.14}
  %s0 = inlined_call_operand.vmem [shape: f32[12,10], index: 0, kind: input, shape index: {}]
  %s1 = inlined_call_operand.vmem [shape: f32[1,120], index: 1, kind: output, shape index: {}]
  $region1: #{tile.14} parent=0
    #allocation0 [shape = 'u8[4096]{0}', space=vmem, size = 0x1000, scoped, tag = 'scoped mem for output reshape']
    %v2 = vld [vmem:[%s0] sm:$0x1]
    %vm3 = vcmask 80896
    %4 = vst.msk [vmem:[#allocation0] sm:$0x1] %vm3, %v2
    %s5 = scalar_lea.vmem %s0, 11
    %v6 = vld [vmem:[%s5] sm:$0x1]
    %7 = vrot.lane.b32.xlu0 %v6, 110
    %v8 = vpop.permute.xlu0 %7
    %vm9 = vcmask 982896
    %10 = vst.msk [vmem:[#allocation0] sm:$0x1] %vm9, %v8
    %s11 = scalar_lea.vmem %s0, 10
    %v12 = vld [vmem:[%s11] sm:$0x1]
    %13 = vrot.lane.b32.xlu0 %v12, 100
    %v14 = vpop.permute.xlu0 %13
    %vm15 = vcmask 900896
    %16 = vst.msk [vmem:[#allocation0] sm:$0x1] %vm15, %v14
    %s17 = scalar_lea.vmem %s0, 9
    %v18 = vld [vmem:[%s17] sm:$0x1]
    %19 = vrot.lane.b32.xlu0 %v18, 90
    %v20 = vpop.permute.xlu0 %19
    %vm21 = vcmask 818896
    %22 = vst.msk [vmem:[#allocation0] sm:$0x1] %vm21, %v20
    %s23 = scalar_lea.vmem %s0, 8
    %v24 = vld [vmem:[%s23] sm:$0x1]
    %25 = vrot.lane.b32.xlu0 %v24, 80
    %v26 = vpop.permute.xlu0 %25
    %vm27 = vcmask 736896
    %28 = vst.msk [vmem:[#allocation0] sm:$0x1] %vm27, %v26
    %s29 = scalar_lea.vmem %s0, 7
    %v30 = vld [vmem:[%s29] sm:$0x1]
    %31 = vrot.lane.b32.xlu0 %v30, 70
    %v32 = vpop.permute.xlu0 %31
    %vm33 = vcmask 654896
    %34 = vst.msk [vmem:[#allocation0] sm:$0x1] %vm33, %v32
    %s35 = scalar_lea.vmem %s0, 6
    %v36 = vld [vmem:[%s35] sm:$0x1]
    %37 = vrot.lane.b32.xlu0 %v36, 60
    %v38 = vpop.permute.xlu0 %37
    %vm39 = vcmask 572896
    %40 = vst.msk [vmem:[#allocation0] sm:$0x1] %vm39, %v38
    %s41 = scalar_lea.vmem %s0, 5
    %v42 = vld [vmem:[%s41] sm:$0x1]
    %43 = vrot.lane.b32.xlu0 %v42, 50
    %v44 = vpop.permute.xlu0 %43
    %vm45 = vcmask 490896
    %46 = vst.msk [vmem:[#allocation0] sm:$0x1] %vm45, %v44
    %s47 = scalar_lea.vmem %s0, 4
    %v48 = vld [vmem:[%s47] sm:$0x1]
    %49 = vrot.lane.b32.xlu0 %v48, 40
    %v50 = vpop.permute.xlu0 %49
    %vm51 = vcmask 408896
    %52 = vst.msk [vmem:[#allocation0] sm:$0x1] %vm51, %v50
    %s53 = scalar_lea.vmem %s0, 3
    %v54 = vld [vmem:[%s53] sm:$0x1]
    %55 = vrot.lane.b32.xlu0 %v54, 30
    %v56 = vpop.permute.xlu0 %55
    %vm57 = vcmask 326896
    %58 = vst.msk [vmem:[#allocation0] sm:$0x1] %vm57, %v56
    %s59 = scalar_lea.vmem %s0, 2
    %v60 = vld [vmem:[%s59] sm:$0x1]
    %61 = vrot.lane.b32.xlu0 %v60, 20
    %v62 = vpop.permute.xlu0 %61
    %vm63 = vcmask 244896
    %64 = vst.msk [vmem:[#allocation0] sm:$0x1] %vm63, %v62
    %s65 = scalar_lea.vmem %s0, 1
    %v66 = vld [vmem:[%s65] sm:$0x1]
    %67 = vrot.lane.b32.xlu0 %v66, 10
    %v68 = vpop.permute.xlu0 %67
    %vm69 = vcmask 162896
    %70 = vst.msk [vmem:[#allocation0] sm:$0x1] %vm69, %v68
    %s72 = sshll.u32 1, 1
    %s73 = ssub.s32 %s72, 1
    %v75 = vld [vmem:[#allocation0] sm:%s73]
    %s76 = sshll.u32 1, 1
    %s77 = ssub.s32 %s76, 1
    %78 = vst [vmem:[%s1] sm:%s77] %v75

// kernel: tile.18
$region0: #{tile.18}
  #allocation0 [shape = 's32[1]{0}', space=sflag, size = 0x4, scoped, tag = 'scoped memory for tile.18']
  %s0 = inlined_call_operand.vmem [shape: f32[20], index: 0, kind: input, shape index: {}]
  %s1 = inlined_call_operand.vmem [shape: f32[4,20], index: 1, kind: output, shape index: {}]
  // Predicated region
  $region2: #{tile.18} parent=0 // pred_check
    _
  $region3: #{tile.18} parent=0 // pred_check_branch
    %3 = sbr.rel (0) target = $region5
  $region4: #{tile.18} parent=0 // pred_region
    _
  $region5: #{tile.18} parent=0 // pred_fallthru
    _
  %v4 = vld [vmem:[%s0] ss:$0 sm:$0xff]
  %5 = vst [vmem:[%s1] sm:$0xf] %v4

// kernel: tile.19
$region0: #{tile.19}
  %s0 = inlined_call_operand.vmem [shape: f32[4,20], index: 0, kind: input, shape index: {}]
  %s1 = inlined_call_operand.vmem [shape: f32[1,80], index: 1, kind: output, shape index: {}]
  $region1: #{tile.19} parent=0
    #allocation0 [shape = 'u8[4096]{0}', space=vmem, size = 0x1000, scoped, tag = 'scoped mem for output reshape']
    #allocation1 [shape = 'u8[4096]{0}', space=vmem, size = 0x1000, scoped, tag = 'scoped mem for input reshape']
    %s3 = sshll.u32 1, 4
    %s4 = ssub.s32 %s3, 1
    %v5 = vld [vmem:[%s0] sm:%s4]
    %6 = vst [vmem:[#allocation1] sm:%s4] %v5
    %v7 = vld [vmem:[#allocation1] sm:$0x1]
    %vm8 = vcmask 162816
    %9 = vst.msk [vmem:[#allocation0] sm:$0x1] %vm8, %v7
    %s10 = scalar_lea.vmem [#allocation1], 3
    %v11 = vld [vmem:[%s10] sm:$0x1]
    %12 = vrot.lane.b32.xlu0 %v11, 60
    %v13 = vpop.permute.xlu0 %12
    %vm14 = vcmask 654816
    %15 = vst.msk [vmem:[#allocation0] sm:$0x1] %vm14, %v13
    %s16 = scalar_lea.vmem [#allocation1], 2
    %v17 = vld [vmem:[%s16] sm:$0x1]
    %18 = vrot.lane.b32.xlu0 %v17, 40
    %v19 = vpop.permute.xlu0 %18
    %vm20 = vcmask 490816
    %21 = vst.msk [vmem:[#allocation0] sm:$0x1] %vm20, %v19
    %s22 = scalar_lea.vmem [#allocation1], 1
    %v23 = vld [vmem:[%s22] sm:$0x1]
    %24 = vrot.lane.b32.xlu0 %v23, 20
    %v25 = vpop.permute.xlu0 %24
    %vm26 = vcmask 326816
    %27 = vst.msk [vmem:[#allocation0] sm:$0x1] %vm26, %v25
    %s29 = sshll.u32 1, 1
    %s30 = ssub.s32 %s29, 1
    %v32 = vld [vmem:[#allocation0] sm:%s30]
    %s33 = sshll.u32 1, 1
    %s34 = ssub.s32 %s33, 1
    %35 = vst [vmem:[%s1] sm:%s34] %v32

// kernel: mnist_cnn_forward.1
$region0: #{mnist_cnn_forward.1}
  #allocation0 [shape = 'u32[]', space=smem, size = 0x4, offset = 0x4, fixed_abs, tag = 'smem constant byte address 0x4 - core index']
  #allocation1 [shape = 'u32[144,128]{1,0:T(1,128)}', space=vmem, size = 0x12000, scoped, tag = 'internal scratch']
  %s0 = inlined_call_operand.vmem [shape: bf16[2,448,28], index: 0, kind: input, shape index: {}]
  %s1 = inlined_call_operand.vmem [shape: bf16[5,28,240], index: 1, kind: input, shape index: {}]
  %s2 = inlined_call_operand.vmem [shape: f32[1,120], index: 2, kind: input, shape index: {}]
  %s3 = inlined_call_operand.vmem [shape: bf16[5,120,160], index: 3, kind: input, shape index: {}]
  %s4 = inlined_call_operand.vmem [shape: f32[1,80], index: 4, kind: input, shape index: {}]
  %s5 = inlined_call_operand.vmem [shape: bf16[320,50], index: 5, kind: input, shape index: {}]
  %s6 = inlined_call_operand.vmem [shape: f32[1,50], index: 6, kind: input, shape index: {}]
  %s7 = inlined_call_operand.vmem [shape: bf16[50,10], index: 7, kind: input, shape index: {}]
  %s8 = inlined_call_operand.vmem [shape: f32[1,10], index: 8, kind: input, shape index: {}]
  %s9 = inlined_call_operand.vmem [shape: f32[32,10], index: 9, kind: output, shape index: {}]
  %s10 = sld [smem:[#allocation0]]
  $region69: #{mnist_cnn_forward.1} parent=0
    _
  %s12 = ssub.s32 1, %s10
  %s13 = scalar_select 0, %s12, %s10
  loop: start=0, step=1, limit=4
  $region2: #{mnist_cnn_forward.1} parent=0 // loop_pre_header
    _
  $region3: #{mnist_cnn_forward.1} parent=0 // loop_header
    %s15 = sphi 0, %s19
    %p16 = scmp.ge.s32.totalorder %s15, 4
    %s25 = sphi 0, %s27
    %s28 = sphi 0, %s25
    %s29 = sphi 0, %s28
    %s45 = sphi 0, %s29
    %s49 = sphi 0, %s49
    %s51 = sphi 0, %s49
    %s52 = sphi 0, %s51
    %s66 = sphi 0, %s52
    %s70 = sphi 0, %s70
    %s72 = sphi 0, %s70
    %s73 = sphi 0, %s72
    %s87 = sphi 0, %s73
    %s91 = sphi 0, %s91
    %s93 = sphi 0, %s91
    %s94 = sphi 0, %s93
    %s108 = sphi 0, %s94
    %s112 = sphi 0, %s112
    %s114 = sphi 0, %s112
    %s115 = sphi 0, %s114
    %s129 = sphi 0, %s115
    %s133 = sphi 0, %s133
    %s135 = sphi 0, %s133
    %s136 = sphi 0, %s135
    %s150 = sphi 0, %s136
    %s154 = sphi 0, %s154
    %s156 = sphi 0, %s154
    %s157 = sphi 0, %s156
    %s171 = sphi 0, %s157
    %s175 = sphi 0, %s175
    %s177 = sphi 0, %s175
    %s178 = sphi 0, %s177
    %s192 = sphi 0, %s178
    %s196 = sphi 0, %s196
    %s198 = sphi 0, %s196
    %s199 = sphi 0, %s198
    %s213 = sphi 0, %s199
    %s219 = sphi 0, %s221
    %s222 = sphi 0, %s219
    %s223 = sphi 0, %s222
    %s239 = sphi 0, %s223
  $region4: #{mnist_cnn_forward.1} parent=0 // loop_header_branch
    %18 = sbr.rel (%p16) target = $region8
  $region5: #{mnist_cnn_forward.1} parent=0 // loop_body
    %s20 = ssub.s32 %s15, 1
    %s21 = ssub.s32 %s15, 2
    %s22 = sadd.s32 %s15, 1
    %s23 = ssub.s32 %s15, %s22
    %p24 = scmp.eq.s32.totalorder %s23, 0
    %s26 = sadd.s32 %s25, 1
    %s27 = scalar_select %p24, %s25, %s26
    %p30 = pneg %p24
    %p31 = scmp.eq.s32.totalorder %s15, 1
    %p32 = por %p30, %p31
    %p33 = scmp.ne.s32.totalorder %s25, %s28
    %p34 = scmp.eq.s32.totalorder %s15, 0
    %p35 = por %p33, %p34
    %p36 = scmp.ne.s32.totalorder %s25, %s28
    %p37 = scmp.eq.s32.totalorder %s20, 1
    %p38 = por %p36, %p37
    %p39 = scmp.ne.s32.totalorder %s28, %s29
    %p40 = scmp.eq.s32.totalorder %s20, 0
    %p41 = por %p39, %p40
    %p42 = scmp.ne.s32.totalorder %s28, %s29
    %p43 = scmp.eq.s32.totalorder %s21, 1
    %p44 = por %p42, %p43
    %p46 = scmp.ne.s32.totalorder %s29, %s45
    %p47 = scmp.eq.s32.totalorder %s21, 0
    %p48 = por %p46, %p47
    %s50 = sadd.s32 %s49, 1
    %p53 = scmp.eq.s32.totalorder %s15, 1
    %p54 = scmp.ne.s32.totalorder %s49, %s51
    %p55 = scmp.eq.s32.totalorder %s15, 0
    %p56 = por %p54, %p55
    %p57 = scmp.ne.s32.totalorder %s49, %s51
    %p58 = scmp.eq.s32.totalorder %s20, 1
    %p59 = por %p57, %p58
    %p60 = scmp.ne.s32.totalorder %s51, %s52
    %p61 = scmp.eq.s32.totalorder %s20, 0
    %p62 = por %p60, %p61
    %p63 = scmp.ne.s32.totalorder %s51, %s52
    %p64 = scmp.eq.s32.totalorder %s21, 1
    %p65 = por %p63, %p64
    %p67 = scmp.ne.s32.totalorder %s52, %s66
    %p68 = scmp.eq.s32.totalorder %s21, 0
    %p69 = por %p67, %p68
    %s71 = sadd.s32 %s70, 1
    %p74 = scmp.eq.s32.totalorder %s15, 1
    %p75 = scmp.ne.s32.totalorder %s70, %s72
    %p76 = scmp.eq.s32.totalorder %s15, 0
    %p77 = por %p75, %p76
    %p78 = scmp.ne.s32.totalorder %s70, %s72
    %p79 = scmp.eq.s32.totalorder %s20, 1
    %p80 = por %p78, %p79
    %p81 = scmp.ne.s32.totalorder %s72, %s73
    %p82 = scmp.eq.s32.totalorder %s20, 0
    %p83 = por %p81, %p82
    %p84 = scmp.ne.s32.totalorder %s72, %s73
    %p85 = scmp.eq.s32.totalorder %s21, 1
    %p86 = por %p84, %p85
    %p88 = scmp.ne.s32.totalorder %s73, %s87
    %p89 = scmp.eq.s32.totalorder %s21, 0
    %p90 = por %p88, %p89
    %s92 = sadd.s32 %s91, 1
    %p95 = scmp.eq.s32.totalorder %s15, 1
    %p96 = scmp.ne.s32.totalorder %s91, %s93
    %p97 = scmp.eq.s32.totalorder %s15, 0
    %p98 = por %p96, %p97
    %p99 = scmp.ne.s32.totalorder %s91, %s93
    %p100 = scmp.eq.s32.totalorder %s20, 1
    %p101 = por %p99, %p100
    %p102 = scmp.ne.s32.totalorder %s93, %s94
    %p103 = scmp.eq.s32.totalorder %s20, 0
    %p104 = por %p102, %p103
    %p105 = scmp.ne.s32.totalorder %s93, %s94
    %p106 = scmp.eq.s32.totalorder %s21, 1
    %p107 = por %p105, %p106
    %p109 = scmp.ne.s32.totalorder %s94, %s108
    %p110 = scmp.eq.s32.totalorder %s21, 0
    %p111 = por %p109, %p110
    %s113 = sadd.s32 %s112, 1
    %p116 = scmp.eq.s32.totalorder %s15, 1
    %p117 = scmp.ne.s32.totalorder %s112, %s114
    %p118 = scmp.eq.s32.totalorder %s15, 0
    %p119 = por %p117, %p118
    %p120 = scmp.ne.s32.totalorder %s112, %s114
    %p121 = scmp.eq.s32.totalorder %s20, 1
    %p122 = por %p120, %p121
    %p123 = scmp.ne.s32.totalorder %s114, %s115
    %p124 = scmp.eq.s32.totalorder %s20, 0
    %p125 = por %p123, %p124
    %p126 = scmp.ne.s32.totalorder %s114, %s115
    %p127 = scmp.eq.s32.totalorder %s21, 1
    %p128 = por %p126, %p127
    %p130 = scmp.ne.s32.totalorder %s115, %s129
    %p131 = scmp.eq.s32.totalorder %s21, 0
    %p132 = por %p130, %p131
    %s134 = sadd.s32 %s133, 1
    %p137 = scmp.eq.s32.totalorder %s15, 1
    %p138 = scmp.ne.s32.totalorder %s133, %s135
    %p139 = scmp.eq.s32.totalorder %s15, 0
    %p140 = por %p138, %p139
    %p141 = scmp.ne.s32.totalorder %s133, %s135
    %p142 = scmp.eq.s32.totalorder %s20, 1
    %p143 = por %p141, %p142
    %p144 = scmp.ne.s32.totalorder %s135, %s136
    %p145 = scmp.eq.s32.totalorder %s20, 0
    %p146 = por %p144, %p145
    %p147 = scmp.ne.s32.totalorder %s135, %s136
    %p148 = scmp.eq.s32.totalorder %s21, 1
    %p149 = por %p147, %p148
    %p151 = scmp.ne.s32.totalorder %s136, %s150
    %p152 = scmp.eq.s32.totalorder %s21, 0
    %p153 = por %p151, %p152
    %s155 = sadd.s32 %s154, 1
    %p158 = scmp.eq.s32.totalorder %s15, 1
    %p159 = scmp.ne.s32.totalorder %s154, %s156
    %p160 = scmp.eq.s32.totalorder %s15, 0
    %p161 = por %p159, %p160
    %p162 = scmp.ne.s32.totalorder %s154, %s156
    %p163 = scmp.eq.s32.totalorder %s20, 1
    %p164 = por %p162, %p163
    %p165 = scmp.ne.s32.totalorder %s156, %s157
    %p166 = scmp.eq.s32.totalorder %s20, 0
    %p167 = por %p165, %p166
    %p168 = scmp.ne.s32.totalorder %s156, %s157
    %p169 = scmp.eq.s32.totalorder %s21, 1
    %p170 = por %p168, %p169
    %p172 = scmp.ne.s32.totalorder %s157, %s171
    %p173 = scmp.eq.s32.totalorder %s21, 0
    %p174 = por %p172, %p173
    %s176 = sadd.s32 %s175, 1
    %p179 = scmp.eq.s32.totalorder %s15, 1
    %p180 = scmp.ne.s32.totalorder %s175, %s177
    %p181 = scmp.eq.s32.totalorder %s15, 0
    %p182 = por %p180, %p181
    %p183 = scmp.ne.s32.totalorder %s175, %s177
    %p184 = scmp.eq.s32.totalorder %s20, 1
    %p185 = por %p183, %p184
    %p186 = scmp.ne.s32.totalorder %s177, %s178
    %p187 = scmp.eq.s32.totalorder %s20, 0
    %p188 = por %p186, %p187
    %p189 = scmp.ne.s32.totalorder %s177, %s178
    %p190 = scmp.eq.s32.totalorder %s21, 1
    %p191 = por %p189, %p190
    %p193 = scmp.ne.s32.totalorder %s178, %s192
    %p194 = scmp.eq.s32.totalorder %s21, 0
    %p195 = por %p193, %p194
    %s197 = sadd.s32 %s196, 1
    %p200 = scmp.eq.s32.totalorder %s15, 1
    %p201 = scmp.ne.s32.totalorder %s196, %s198
    %p202 = scmp.eq.s32.totalorder %s15, 0
    %p203 = por %p201, %p202
    %p204 = scmp.ne.s32.totalorder %s196, %s198
    %p205 = scmp.eq.s32.totalorder %s20, 1
    %p206 = por %p204, %p205
    %p207 = scmp.ne.s32.totalorder %s198, %s199
    %p208 = scmp.eq.s32.totalorder %s20, 0
    %p209 = por %p207, %p208
    %p210 = scmp.ne.s32.totalorder %s198, %s199
    %p211 = scmp.eq.s32.totalorder %s21, 1
    %p212 = por %p210, %p211
    %p214 = scmp.ne.s32.totalorder %s199, %s213
    %p215 = scmp.eq.s32.totalorder %s21, 0
    %p216 = por %p214, %p215
    %s217 = ssub.s32 %s15, %s22
    %p218 = scmp.eq.s32.totalorder %s217, 0
    %s220 = sadd.s32 %s219, 1
    %s221 = scalar_select %p218, %s219, %s220
    %p224 = pneg %p218
    %p225 = scmp.eq.s32.totalorder %s15, 1
    %p226 = por %p224, %p225
    %p227 = scmp.ne.s32.totalorder %s219, %s222
    %p228 = scmp.eq.s32.totalorder %s15, 0
    %p229 = por %p227, %p228
    %p230 = scmp.ne.s32.totalorder %s219, %s222
    %p231 = scmp.eq.s32.totalorder %s20, 1
    %p232 = por %p230, %p231
    %p233 = scmp.ne.s32.totalorder %s222, %s223
    %p234 = scmp.eq.s32.totalorder %s20, 0
    %p235 = por %p233, %p234
    %p236 = scmp.ne.s32.totalorder %s222, %s223
    %p237 = scmp.eq.s32.totalorder %s21, 1
    %p238 = por %p236, %p237
    %p240 = scmp.ne.s32.totalorder %s223, %s239
    %p241 = scmp.eq.s32.totalorder %s21, 0
    %p242 = por %p240, %p241
    %p243 = scmp.le.s32.totalorder 1, %s15
    %p244 = scmp.lt.s32.totalorder %s15, 3
    %p245 = pnand %p243, %p244
    %p246 = pneg %p245
    // Predicated region
    $region9: #{mnist_cnn_forward.1} parent=5 // pred_check
      _
    $region10: #{mnist_cnn_forward.1} parent=5 // pred_check_branch
      %248 = sbr.rel (%p245) target = $region12
    $region11: #{mnist_cnn_forward.1} parent=5 // pred_region
      %s249 = ssub.s32 %s15, 1
      // Predicated region
      $region13: #{mnist_cnn_forward.1} parent=11 // pred_check
        %p250 = pneg %p62
      $region14: #{mnist_cnn_forward.1} parent=11 // pred_check_branch
        %252 = sbr.rel (%p250) target = $region16
      $region15: #{mnist_cnn_forward.1} parent=11 // pred_region
        _
      $region16: #{mnist_cnn_forward.1} parent=11 // pred_fallthru
        _
      // Predicated region
      $region17: #{mnist_cnn_forward.1} parent=11 // pred_check
        %p253 = pneg %p83
      $region18: #{mnist_cnn_forward.1} parent=11 // pred_check_branch
        %255 = sbr.rel (%p253) target = $region20
      $region19: #{mnist_cnn_forward.1} parent=11 // pred_region
        _
      $region20: #{mnist_cnn_forward.1} parent=11 // pred_fallthru
        _
      // Predicated region
      $region21: #{mnist_cnn_forward.1} parent=11 // pred_check
        %p256 = pneg %p104
      $region22: #{mnist_cnn_forward.1} parent=11 // pred_check_branch
        %258 = sbr.rel (%p256) target = $region24
      $region23: #{mnist_cnn_forward.1} parent=11 // pred_region
        _
      $region24: #{mnist_cnn_forward.1} parent=11 // pred_fallthru
        _
      // Predicated region
      $region25: #{mnist_cnn_forward.1} parent=11 // pred_check
        %p259 = pneg %p125
      $region26: #{mnist_cnn_forward.1} parent=11 // pred_check_branch
        %261 = sbr.rel (%p259) target = $region28
      $region27: #{mnist_cnn_forward.1} parent=11 // pred_region
        _
      $region28: #{mnist_cnn_forward.1} parent=11 // pred_fallthru
        _
      // Predicated region
      $region29: #{mnist_cnn_forward.1} parent=11 // pred_check
        %p262 = pneg %p146
      $region30: #{mnist_cnn_forward.1} parent=11 // pred_check_branch
        %264 = sbr.rel (%p262) target = $region32
      $region31: #{mnist_cnn_forward.1} parent=11 // pred_region
        _
      $region32: #{mnist_cnn_forward.1} parent=11 // pred_fallthru
        _
      // Predicated region
      $region33: #{mnist_cnn_forward.1} parent=11 // pred_check
        %p265 = pneg %p167
      $region34: #{mnist_cnn_forward.1} parent=11 // pred_check_branch
        %267 = sbr.rel (%p265) target = $region36
      $region35: #{mnist_cnn_forward.1} parent=11 // pred_region
        _
      $region36: #{mnist_cnn_forward.1} parent=11 // pred_fallthru
        _
      // Predicated region
      $region37: #{mnist_cnn_forward.1} parent=11 // pred_check
        %p268 = pneg %p188
      $region38: #{mnist_cnn_forward.1} parent=11 // pred_check_branch
        %270 = sbr.rel (%p268) target = $region40
      $region39: #{mnist_cnn_forward.1} parent=11 // pred_region
        _
      $region40: #{mnist_cnn_forward.1} parent=11 // pred_fallthru
        _
      // Predicated region
      $region41: #{mnist_cnn_forward.1} parent=11 // pred_check
        %p271 = pneg %p209
      $region42: #{mnist_cnn_forward.1} parent=11 // pred_check_branch
        %273 = sbr.rel (%p271) target = $region44
      $region43: #{mnist_cnn_forward.1} parent=11 // pred_region
        _
      $region44: #{mnist_cnn_forward.1} parent=11 // pred_fallthru
        _
    $region12: #{mnist_cnn_forward.1} parent=5 // pred_fallthru
      _
    %p274 = scmp.lt.s32.totalorder %s15, 2
    // Predicated region
    $region45: #{mnist_cnn_forward.1} parent=5 // pred_check
      %p275 = pneg %p274
    $region46: #{mnist_cnn_forward.1} parent=5 // pred_check_branch
      %277 = sbr.rel (%p275) target = $region48
    $region47: #{mnist_cnn_forward.1} parent=5 // pred_region
      // Predicated region
      $region49: #{mnist_cnn_forward.1} parent=47 // pred_check
        %p278 = pneg %p35
      $region50: #{mnist_cnn_forward.1} parent=47 // pred_check_branch
        %280 = sbr.rel (%p278) target = $region52
      $region51: #{mnist_cnn_forward.1} parent=47 // pred_region
        %p281 = scmp.lt.s32.totalorder %s15, 1
        %s282 = scalar_select %p281, %s15, 1
        %s283 = smul.addr %s282, 56
        %s284 = smul.addr %s283, 4
        %s285 = scalar_lea.vmem %s0, %s284
      $region52: #{mnist_cnn_forward.1} parent=47 // pred_fallthru
        _
    $region48: #{mnist_cnn_forward.1} parent=5 // pred_fallthru
      _
    %p286 = scmp.le.s32.totalorder 1, %s15
    %p287 = scmp.lt.s32.totalorder %s15, 3
    %p288 = pnand %p286, %p287
    %p289 = pneg %p288
    // Predicated region
    $region53: #{mnist_cnn_forward.1} parent=5 // pred_check
      _
    $region54: #{mnist_cnn_forward.1} parent=5 // pred_check_branch
      %291 = sbr.rel (%p288) target = $region56
    $region55: #{mnist_cnn_forward.1} parent=5 // pred_region
      %s292 = ssub.s32 %s15, 1
      %p293 = scmp.lt.s32.totalorder %s20, 1
      %s294 = scalar_select %p293, %s20, 1
      %s295 = smul.addr %s294, 56
      %s296 = smul.addr %s295, 4
      %s297 = scalar_lea.vmem %s0, %s296
      %p298 = pneg %p41
      %p299 = pneg %p38
      %p300 = pneg %p62
      %p301 = pneg %p59
      %p302 = pneg %p83
      %p303 = pneg %p80
      %p304 = pneg %p104
      %p305 = pneg %p101
      %p306 = pneg %p125
      %p307 = pneg %p122
      %p308 = pneg %p146
      %p309 = pneg %p143
      %p310 = pneg %p167
      %p311 = pneg %p164
      %p312 = pneg %p188
      %p313 = pneg %p185
      %p314 = pneg %p209
      %p315 = pneg %p206
      %p316 = pneg %p235
      %p317 = pneg %p232
      %s318 = smul.u32 2, %s20
      %p319 = scmp.lt.s32.totalorder %s318, 3
      %s320 = scalar_select %p319, %s318, 3
      %s321 = smul.addr %s320, 8
      %s322 = scalar_lea.vmem %s9, %s321
      %p323 = scmp.lt.s32.totalorder %s20, 1
      %s324 = scalar_select %p323, %s20, 1
      %s325 = smul.addr %s324, 56
      %s326 = smul.addr %s325, 4
      %s327 = scalar_lea.vmem %s0, %s326
      %s328 = smul.u32 2, %s20
      %p329 = scmp.lt.s32.totalorder %s328, 3
      %s330 = scalar_select %p329, %s328, 3
      %s331 = smul.addr %s330, 8
      %s332 = scalar_lea.vmem %s9, %s331
      %s333 = smul.u32 2, %s20
      %v335 = vld [vmem:[%s327] sm:$0xf]
      %v336 = vld [vmem:[%s327 + $0x4] sm:$0xf]
      %v337 = vld [vmem:[%s327 + $0x8] sm:$0xf]
      %v338 = vld [vmem:[%s327 + $0xc] sm:$0xf]
      %v339 = vld [vmem:[%s327 + $0x10] sm:$0xf]
      %v340 = vld [vmem:[%s327 + $0x14] sm:$0xf]
      %v341 = vld [vmem:[%s327 + $0x18] sm:$0xf]
      %v342 = vld [vmem:[%s327 + $0x1c] sm:$0xf]
      %v343 = vld [vmem:[%s327 + $0x20] sm:$0xf]
      %v344 = vld [vmem:[%s327 + $0x24] sm:$0xf]
      %v345 = vld [vmem:[%s327 + $0x28] sm:$0xf]
      %v346 = vld [vmem:[%s327 + $0x2c] sm:$0xf]
      %v347 = vld [vmem:[%s327 + $0x30] sm:$0xf]
      %v348 = vld [vmem:[%s327 + $0x34] sm:$0xf]
      %v349 = vld [vmem:[%s327 + $0x38] sm:$0xf]
      %v350 = vld [vmem:[%s327 + $0x3c] sm:$0xf]
      %v351 = vld [vmem:[%s327 + $0x40] sm:$0xf]
      %v352 = vld [vmem:[%s327 + $0x44] sm:$0xf]
      %v353 = vld [vmem:[%s327 + $0x48] sm:$0xf]
      %v354 = vld [vmem:[%s327 + $0x4c] sm:$0xf]
      %v355 = vld [vmem:[%s327 + $0x50] sm:$0xf]
      %v356 = vld [vmem:[%s327 + $0x54] sm:$0xf]
      %v357 = vld [vmem:[%s327 + $0x58] sm:$0xf]
      %v358 = vld [vmem:[%s327 + $0x5c] sm:$0xf]
      %v359 = vld [vmem:[%s327 + $0x60] sm:$0xf]
      %v360 = vld [vmem:[%s327 + $0x64] sm:$0xf]
      %v361 = vld [vmem:[%s327 + $0x68] sm:$0xf]
      %v362 = vld [vmem:[%s327 + $0x6c] sm:$0xf]
      %v363 = vld [vmem:[%s327 + $0x70] sm:$0xf]
      %v364 = vld [vmem:[%s327 + $0x74] sm:$0xf]
      %v365 = vld [vmem:[%s327 + $0x78] sm:$0xf]
      %v366 = vld [vmem:[%s327 + $0x7c] sm:$0xf]
      %v367 = vld [vmem:[%s327 + $0x80] sm:$0xf]
      %v368 = vld [vmem:[%s327 + $0x84] sm:$0xf]
      %v369 = vld [vmem:[%s327 + $0x88] sm:$0xf]
      %v370 = vld [vmem:[%s327 + $0x8c] sm:$0xf]
      %v371 = vld [vmem:[%s327 + $0x90] sm:$0xf]
      %v372 = vld [vmem:[%s327 + $0x94] sm:$0xf]
      %v373 = vld [vmem:[%s327 + $0x98] sm:$0xf]
      %v374 = vld [vmem:[%s327 + $0x9c] sm:$0xf]
      %v375 = vld [vmem:[%s327 + $0xa0] sm:$0xf]
      %v376 = vld [vmem:[%s327 + $0xa4] sm:$0xf]
      %v377 = vld [vmem:[%s327 + $0xa8] sm:$0xf]
      %v378 = vld [vmem:[%s327 + $0xac] sm:$0xf]
      %v379 = vld [vmem:[%s327 + $0xb0] sm:$0xf]
      %v380 = vld [vmem:[%s327 + $0xb4] sm:$0xf]
      %v381 = vld [vmem:[%s327 + $0xb8] sm:$0xf]
      %v382 = vld [vmem:[%s327 + $0xbc] sm:$0xf]
      %v383 = vld [vmem:[%s327 + $0xc0] sm:$0xf]
      %v384 = vld [vmem:[%s327 + $0xc4] sm:$0xf]
      %v385 = vld [vmem:[%s327 + $0xc8] sm:$0xf]
      %v386 = vld [vmem:[%s327 + $0xcc] sm:$0xf]
      %v387 = vld [vmem:[%s327 + $0xd0] sm:$0xf]
      %v388 = vld [vmem:[%s327 + $0xd4] sm:$0xf]
      %v389 = vld [vmem:[%s327 + $0xd8] sm:$0xf]
      %v390 = vld [vmem:[%s327 + $0xdc] sm:$0xf]
      %v391 = vld [vmem:[%s1] sm:$0xff]
      %v392 = vld [vmem:[%s1 + $0x8] sm:$0xff]
      %v393 = vld [vmem:[%s1 + $0x10] sm:$0xff]
      %v394 = vld [vmem:[%s1 + $0x18] sm:$0x33]
      %s395 = scalar_lea.vmem %s1, 32
      %v396 = vld [vmem:[%s395] sm:$0xff]
      %v397 = vld [vmem:[%s395 + $0x8] sm:$0xff]
      %v398 = vld [vmem:[%s395 + $0x10] sm:$0xff]
      %v399 = vld [vmem:[%s395 + $0x18] sm:$0x33]
      %v448 = vunpack.c.l.b16 %v337
      %v449 = vunpack.c.l.b16 %v338
      %v450 = vunpack.c.l.b16 %v339
      %v451 = vunpack.c.l.b16 %v340
      %v452 = vunpack.c.l.b16 %v341
      %v453 = vunpack.c.l.b16 %v342
      %v454 = vunpack.c.l.b16 %v343
      %v455 = vunpack.c.l.b16 %v344
      %v456 = vunpack.c.l.b16 %v345
      %v457 = vunpack.c.l.b16 %v346
      %v458 = vunpack.c.l.b16 %v347
      %v459 = vunpack.c.l.b16 %v348
      %v460 = vunpack.c.l.b16 %v349
      %v461 = vunpack.c.l.b16 %v350
      %v462 = vunpack.c.l.b16 %v351
      %v463 = vunpack.c.l.b16 %v352
      %v464 = vunpack.c.l.b16 %v353
      %v465 = vunpack.c.l.b16 %v354
      %v466 = vunpack.c.l.b16 %v355
      %v467 = vunpack.c.l.b16 %v356
      %v468 = vunpack.c.l.b16 %v357
      %v469 = vunpack.c.l.b16 %v358
      %v470 = vunpack.c.l.b16 %v359
      %v471 = vunpack.c.l.b16 %v360
      %v472 = vunpack.c.l.b16 %v361
      %v473 = vunpack.c.l.b16 %v362
      %v474 = vunpack.c.l.b16 %v363
      %v475 = vunpack.c.l.b16 %v364
      %v476 = vunpack.c.l.b16 %v365
      %v477 = vunpack.c.l.b16 %v366
      %v478 = vunpack.c.l.b16 %v367
      %v479 = vunpack.c.l.b16 %v368
      %v480 = vunpack.c.l.b16 %v369
      %v481 = vunpack.c.l.b16 %v370
      %v482 = vunpack.c.l.b16 %v371
      %v483 = vunpack.c.l.b16 %v372
      %v484 = vunpack.c.l.b16 %v373
      %v485 = vunpack.c.l.b16 %v374
      %v486 = vunpack.c.l.b16 %v375
      %v487 = vunpack.c.l.b16 %v376
      %v488 = vunpack.c.l.b16 %v377
      %v489 = vunpack.c.l.b16 %v378
      %v490 = vunpack.c.l.b16 %v379
      %v491 = vunpack.c.l.b16 %v380
      %v492 = vunpack.c.l.b16 %v381
      %v493 = vunpack.c.l.b16 %v382
      %v494 = vunpack.c.l.b16 %v383
      %v495 = vunpack.c.l.b16 %v384
      %v496 = vpack.c.b16 %v449, %v448
      %v497 = vpack.c.b16 %v451, %v450
      %v498 = vpack.c.b16 %v453, %v452
      %v499 = vpack.c.b16 %v455, %v454
      %v500 = vpack.c.b16 %v457, %v456
      %v501 = vpack.c.b16 %v459, %v458
      %v502 = vpack.c.b16 %v461, %v460
      %v503 = vpack.c.b16 %v463, %v462
      %v504 = vpack.c.b16 %v465, %v464
      %v505 = vpack.c.b16 %v467, %v466
      %v506 = vpack.c.b16 %v469, %v468
      %v507 = vpack.c.b16 %v471, %v470
      %v508 = vpack.c.b16 %v473, %v472
      %v509 = vpack.c.b16 %v475, %v474
      %v510 = vpack.c.b16 %v477, %v476
      %v511 = vpack.c.b16 %v479, %v478
      %v512 = vpack.c.b16 %v481, %v480
      %v513 = vpack.c.b16 %v483, %v482
      %v514 = vpack.c.b16 %v485, %v484
      %v515 = vpack.c.b16 %v487, %v486
      %v516 = vpack.c.b16 %v489, %v488
      %v517 = vpack.c.b16 %v491, %v490
      %v518 = vpack.c.b16 %v493, %v492
      %v519 = vpack.c.b16 %v495, %v494
      %v524 = vunpack.c.l.b16 %v396
      %v525 = vunpack.c.h.b16 %v396
      %v526 = vunpack.c.l.b16 %v397
      %v527 = vunpack.c.h.b16 %v397
      %v528 = vunpack.c.l.b16 %v398
      %v529 = vunpack.c.h.b16 %v398
      %v530 = vunpack.c.l.b16 %v399
      %v531 = vunpack.c.h.b16 %v399
      %v532 = vpack.c.b16 %v526, %v524
      %v533 = vpack.c.b16 %v527, %v525
      %v534 = vpack.c.b16 %v530, %v528
      %v535 = vpack.c.b16 %v531, %v529
      %vm538 = vcmask 228352
      %v540 = vsel %vm538, %v496, 0
      %v543 = vsel %vm538, %v497, 0
      %v546 = vsel %vm538, %v498, 0
      %v549 = vsel %vm538, %v499, 0
      %v552 = vsel %vm538, %v500, 0
      %v555 = vsel %vm538, %v501, 0
      %v558 = vsel %vm538, %v502, 0
      %v561 = vsel %vm538, %v503, 0
      %v564 = vsel %vm538, %v504, 0
      %v567 = vsel %vm538, %v505, 0
      %v570 = vsel %vm538, %v506, 0
      %v573 = vsel %vm538, %v507, 0
      %v576 = vsel %vm538, %v508, 0
      %v579 = vsel %vm538, %v509, 0
      %v582 = vsel %vm538, %v510, 0
      %v585 = vsel %vm538, %v511, 0
      %v588 = vsel %vm538, %v512, 0
      %v591 = vsel %vm538, %v513, 0
      %v594 = vsel %vm538, %v514, 0
      %v597 = vsel %vm538, %v515, 0
      %v600 = vsel %vm538, %v516, 0
      %v603 = vsel %vm538, %v517, 0
      %v606 = vsel %vm538, %v518, 0
      %v609 = vsel %vm538, %v519, 0
      %vm611 = vcmask 1045504
      %v613 = vsel %vm611, %v534, 0
      %v616 = vsel %vm611, %v535, 0
      %618 = vmatprep.subr.bf16.mxu0 0
      %619 = vmatpush1.bf16.msra.mxu0 0
      %620 = vmatprep.subr.bf16.mxu0 0
      %621 = vmatpush1.bf16.msra.mxu0 0
      %622 = vmatprep.subr.bf16.mxu0 0
      %623 = vmatpush1.bf16.msra.mxu0 0
      %624 = vmatprep.subr.bf16.mxu0 0
      %625 = vmatpush1.bf16.msra.mxu0 0
      %626 = vmatprep.subr.bf16.mxu0 0
      %627 = vmatpush1.bf16.msra.mxu0 0
      %628 = vmatprep.subr.bf16.mxu0 0
      %629 = vmatpush1.bf16.msra.mxu0 0
      %630 = vmatprep.subr.bf16.mxu0 %v616
      %631 = vmatpush1.bf16.msra.mxu0 %v613
      %632 = vmatprep.subr.bf16.mxu0 %v533
      %633 = vmatpush1.bf16.msra.mxu0 %v532
      %634 = vmatprep.subr.bf16.mxu0 0
      %635 = vmatpush2.bf16.msra.mxu0 0
      %636 = vmatprep.subr.bf16.mxu0 0
      %637 = vmatpush2.bf16.msra.mxu0 0
      %638 = vmatprep.subr.bf16.mxu0 0
      %639 = vmatpush2.bf16.msra.mxu0 0
      %640 = vmatprep.subr.bf16.mxu0 0
      %641 = vmatpush2.bf16.msra.mxu0 0
      %642 = vmatprep.subr.bf16.mxu0 0
      %643 = vmatpush2.bf16.msra.mxu0 0
      %644 = vmatprep.subr.bf16.mxu0 0
      %645 = vmatpush2.bf16.msra.mxu0 0
      %646 = vmatprep.subr.bf16.mxu0 0
      %647 = vmatpush2.bf16.msra.mxu0 0
      %648 = vmatprep.subr.bf16.mxu0 0
      %649 = vmatpush2.bf16.msra.mxu0 0
      %650 = vmatprep.mubr.bf16.mxu0 0
      %651 = vmatmul.mubr.bf16.gmra.mxu0 %v540
      %v652 = vpop.f32.mrf.mxu0
      %v653 = vadd.f32 0.0, %v652
      %v654 = vpop.f32.mrf.mxu0
      %v655 = vadd.f32 0.0, %v654
      %v656 = vpop.f32.mrf.mxu0
      %v657 = vadd.f32 0.0, %v656
      %v658 = vpop.f32.mrf.mxu0
      %v659 = vadd.f32 0.0, %v658
      %660 = vmatprep.mubr.bf16.mxu0 0
      %661 = vmatmul.mubr.bf16.gmra.mxu0 %v543
      %v662 = vpop.f32.mrf.mxu0
      %v663 = vadd.f32 0.0, %v662
      %v664 = vpop.f32.mrf.mxu0
      %v665 = vadd.f32 0.0, %v664
      %v666 = vpop.f32.mrf.mxu0
      %v667 = vadd.f32 0.0, %v666
      %v668 = vpop.f32.mrf.mxu0
      %v669 = vadd.f32 0.0, %v668
      %670 = vmatprep.mubr.bf16.mxu0 0
      %671 = vmatmul.mubr.bf16.gmra.mxu0 %v546
      %v672 = vpop.f32.mrf.mxu0
      %v673 = vadd.f32 0.0, %v672
      %v674 = vpop.f32.mrf.mxu0
      %v675 = vadd.f32 0.0, %v674
      %v676 = vpop.f32.mrf.mxu0
      %v677 = vadd.f32 0.0, %v676
      %v678 = vpop.f32.mrf.mxu0
      %v679 = vadd.f32 0.0, %v678
      %680 = vmatprep.mubr.bf16.mxu0 0
      %681 = vmatmul.mubr.bf16.gmra.mxu0 %v549
      %v682 = vpop.f32.mrf.mxu0
      %v683 = vadd.f32 0.0, %v682
      %v684 = vpop.f32.mrf.mxu0
      %v685 = vadd.f32 0.0, %v684
      %v686 = vpop.f32.mrf.mxu0
      %v687 = vadd.f32 0.0, %v686
      %v688 = vpop.f32.mrf.mxu0
      %v689 = vadd.f32 0.0, %v688
      %690 = vmatprep.mubr.bf16.mxu0 0
      %691 = vmatmul.mubr.bf16.gmra.mxu0 %v552
      %v692 = vpop.f32.mrf.mxu0
      %v693 = vadd.f32 0.0, %v692
      %v694 = vpop.f32.mrf.mxu0
      %v695 = vadd.f32 0.0, %v694
      %v696 = vpop.f32.mrf.mxu0
      %v697 = vadd.f32 0.0, %v696
      %v698 = vpop.f32.mrf.mxu0
      %v699 = vadd.f32 0.0, %v698
      %700 = vmatprep.mubr.bf16.mxu0 0
      %701 = vmatmul.mubr.bf16.gmra.mxu0 %v555
      %v702 = vpop.f32.mrf.mxu0
      %v703 = vadd.f32 0.0, %v702
      %v704 = vpop.f32.mrf.mxu0
      %v705 = vadd.f32 0.0, %v704
      %v706 = vpop.f32.mrf.mxu0
      %v707 = vadd.f32 0.0, %v706
      %v708 = vpop.f32.mrf.mxu0
      %v709 = vadd.f32 0.0, %v708
      %710 = vmatprep.mubr.bf16.mxu0 0
      %711 = vmatmul.mubr.bf16.gmra.mxu0 %v558
      %v712 = vpop.f32.mrf.mxu0
      %v713 = vadd.f32 0.0, %v712
      %v714 = vpop.f32.mrf.mxu0
      %v715 = vadd.f32 0.0, %v714
      %v716 = vpop.f32.mrf.mxu0
      %v717 = vadd.f32 0.0, %v716
      %v718 = vpop.f32.mrf.mxu0
      %v719 = vadd.f32 0.0, %v718
      %720 = vmatprep.mubr.bf16.mxu0 0
      %721 = vmatmul.mubr.bf16.gmra.mxu0 %v561
      %v722 = vpop.f32.mrf.mxu0
      %v723 = vadd.f32 0.0, %v722
      %v724 = vpop.f32.mrf.mxu0
      %v725 = vadd.f32 0.0, %v724
      %v726 = vpop.f32.mrf.mxu0
      %v727 = vadd.f32 0.0, %v726
      %v728 = vpop.f32.mrf.mxu0
      %v729 = vadd.f32 0.0, %v728
      %730 = vmatprep.mubr.bf16.mxu0 0
      %731 = vmatmul.mubr.bf16.gmra.mxu0 %v564
      %v732 = vpop.f32.mrf.mxu0
      %v733 = vadd.f32 0.0, %v732
      %v734 = vpop.f32.mrf.mxu0
      %v735 = vadd.f32 0.0, %v734
      %v736 = vpop.f32.mrf.mxu0
      %v737 = vadd.f32 0.0, %v736
      %v738 = vpop.f32.mrf.mxu0
      %v739 = vadd.f32 0.0, %v738
      %740 = vmatprep.mubr.bf16.mxu0 0
      %741 = vmatmul.mubr.bf16.gmra.mxu0 %v567
      %v742 = vpop.f32.mrf.mxu0
      %v743 = vadd.f32 0.0, %v742
      %v744 = vpop.f32.mrf.mxu0
      %v745 = vadd.f32 0.0, %v744
      %v746 = vpop.f32.mrf.mxu0
      %v747 = vadd.f32 0.0, %v746
      %v748 = vpop.f32.mrf.mxu0
      %v749 = vadd.f32 0.0, %v748
      %750 = vmatprep.mubr.bf16.mxu0 0
      %751 = vmatmul.mubr.bf16.gmra.mxu0 %v570
      %v752 = vpop.f32.mrf.mxu0
      %v753 = vadd.f32 0.0, %v752
      %v754 = vpop.f32.mrf.mxu0
      %v755 = vadd.f32 0.0, %v754
      %v756 = vpop.f32.mrf.mxu0
      %v757 = vadd.f32 0.0, %v756
      %v758 = vpop.f32.mrf.mxu0
      %v759 = vadd.f32 0.0, %v758
      %760 = vmatprep.mubr.bf16.mxu0 0
      %761 = vmatmul.mubr.bf16.gmra.mxu0 %v573
      %v762 = vpop.f32.mrf.mxu0
      %v763 = vadd.f32 0.0, %v762
      %v764 = vpop.f32.mrf.mxu0
      %v765 = vadd.f32 0.0, %v764
      %v766 = vpop.f32.mrf.mxu0
      %v767 = vadd.f32 0.0, %v766
      %v768 = vpop.f32.mrf.mxu0
      %v769 = vadd.f32 0.0, %v768
      %770 = vmatprep.mubr.bf16.mxu0 0
      %771 = vmatmul.mubr.bf16.gmra.mxu0 %v576
      %v772 = vpop.f32.mrf.mxu0
      %v773 = vadd.f32 0.0, %v772
      %v774 = vpop.f32.mrf.mxu0
      %v775 = vadd.f32 0.0, %v774
      %v776 = vpop.f32.mrf.mxu0
      %v777 = vadd.f32 0.0, %v776
      %v778 = vpop.f32.mrf.mxu0
      %v779 = vadd.f32 0.0, %v778
      %780 = vmatprep.mubr.bf16.mxu0 0
      %781 = vmatmul.mubr.bf16.gmra.mxu0 %v579
      %v782 = vpop.f32.mrf.mxu0
      %v783 = vadd.f32 0.0, %v782
      %v784 = vpop.f32.mrf.mxu0
      %v785 = vadd.f32 0.0, %v784
      %v786 = vpop.f32.mrf.mxu0
      %v787 = vadd.f32 0.0, %v786
      %v788 = vpop.f32.mrf.mxu0
      %v789 = vadd.f32 0.0, %v788
      %790 = vmatprep.mubr.bf16.mxu0 0
      %791 = vmatmul.mubr.bf16.gmra.mxu0 %v582
      %v792 = vpop.f32.mrf.mxu0
      %v793 = vadd.f32 0.0, %v792
      %v794 = vpop.f32.mrf.mxu0
      %v795 = vadd.f32 0.0, %v794
      %v796 = vpop.f32.mrf.mxu0
      %v797 = vadd.f32 0.0, %v796
      %v798 = vpop.f32.mrf.mxu0
      %v799 = vadd.f32 0.0, %v798
      %800 = vmatprep.mubr.bf16.mxu0 0
      %801 = vmatmul.mubr.bf16.gmra.mxu0 %v585
      %v802 = vpop.f32.mrf.mxu0
      %v803 = vadd.f32 0.0, %v802
      %v804 = vpop.f32.mrf.mxu0
      %v805 = vadd.f32 0.0, %v804
      %v806 = vpop.f32.mrf.mxu0
      %v807 = vadd.f32 0.0, %v806
      %v808 = vpop.f32.mrf.mxu0
      %v809 = vadd.f32 0.0, %v808
      %810 = vmatprep.mubr.bf16.mxu0 0
      %811 = vmatmul.mubr.bf16.gmra.mxu0 %v588
      %v812 = vpop.f32.mrf.mxu0
      %v813 = vadd.f32 0.0, %v812
      %v814 = vpop.f32.mrf.mxu0
      %v815 = vadd.f32 0.0, %v814
      %v816 = vpop.f32.mrf.mxu0
      %v817 = vadd.f32 0.0, %v816
      %v818 = vpop.f32.mrf.mxu0
      %v819 = vadd.f32 0.0, %v818
      %820 = vmatprep.mubr.bf16.mxu0 0
      %821 = vmatmul.mubr.bf16.gmra.mxu0 %v591
      %v822 = vpop.f32.mrf.mxu0
      %v823 = vadd.f32 0.0, %v822
      %v824 = vpop.f32.mrf.mxu0
      %v825 = vadd.f32 0.0, %v824
      %v826 = vpop.f32.mrf.mxu0
      %v827 = vadd.f32 0.0, %v826
      %v828 = vpop.f32.mrf.mxu0
      %v829 = vadd.f32 0.0, %v828
      %830 = vmatprep.mubr.bf16.mxu0 0
      %831 = vmatmul.mubr.bf16.gmra.mxu0 %v594
      %v832 = vpop.f32.mrf.mxu0
      %v833 = vadd.f32 0.0, %v832
      %v834 = vpop.f32.mrf.mxu0
      %v835 = vadd.f32 0.0, %v834
      %v836 = vpop.f32.mrf.mxu0
      %v837 = vadd.f32 0.0, %v836
      %v838 = vpop.f32.mrf.mxu0
      %v839 = vadd.f32 0.0, %v838
      %840 = vmatprep.mubr.bf16.mxu0 0
      %841 = vmatmul.mubr.bf16.gmra.mxu0 %v597
      %v842 = vpop.f32.mrf.mxu0
      %v843 = vadd.f32 0.0, %v842
      %v844 = vpop.f32.mrf.mxu0
      %v845 = vadd.f32 0.0, %v844
      %v846 = vpop.f32.mrf.mxu0
      %v847 = vadd.f32 0.0, %v846
      %v848 = vpop.f32.mrf.mxu0
      %v849 = vadd.f32 0.0, %v848
      %850 = vmatprep.mubr.bf16.mxu0 0
      %851 = vmatmul.mubr.bf16.gmra.mxu0 %v600
      %v852 = vpop.f32.mrf.mxu0
      %v853 = vadd.f32 0.0, %v852
      %v854 = vpop.f32.mrf.mxu0
      %v855 = vadd.f32 0.0, %v854
      %v856 = vpop.f32.mrf.mxu0
      %v857 = vadd.f32 0.0, %v856
      %v858 = vpop.f32.mrf.mxu0
      %v859 = vadd.f32 0.0, %v858
      %860 = vmatprep.mubr.bf16.mxu0 0
      %861 = vmatmul.mubr.bf16.gmra.mxu0 %v603
      %v862 = vpop.f32.mrf.mxu0
      %v863 = vadd.f32 0.0, %v862
      %v864 = vpop.f32.mrf.mxu0
      %v865 = vadd.f32 0.0, %v864
      %v866 = vpop.f32.mrf.mxu0
      %v867 = vadd.f32 0.0, %v866
      %v868 = vpop.f32.mrf.mxu0
      %v869 = vadd.f32 0.0, %v868
      %870 = vmatprep.mubr.bf16.mxu0 0
      %871 = vmatmul.mubr.bf16.gmra.mxu0 %v606
      %v872 = vpop.f32.mrf.mxu0
      %v873 = vadd.f32 0.0, %v872
      %v874 = vpop.f32.mrf.mxu0
      %v875 = vadd.f32 0.0, %v874
      %v876 = vpop.f32.mrf.mxu0
      %v877 = vadd.f32 0.0, %v876
      %v878 = vpop.f32.mrf.mxu0
      %v879 = vadd.f32 0.0, %v878
      %880 = vmatprep.mubr.bf16.mxu0 0
      %881 = vmatmul.mubr.bf16.gmra.mxu0 %v609
      %v882 = vpop.f32.mrf.mxu0
      %v883 = vadd.f32 0.0, %v882
      %v884 = vpop.f32.mrf.mxu0
      %v885 = vadd.f32 0.0, %v884
      %v886 = vpop.f32.mrf.mxu0
      %v887 = vadd.f32 0.0, %v886
      %v888 = vpop.f32.mrf.mxu0
      %v889 = vadd.f32 0.0, %v888
      %890 = vdwg.mxu0
      %v893 = vunpack.c.l.b16 %v335
      %v894 = vunpack.c.l.b16 %v336
      %v895 = vpack.c.b16 %v894, %v893
      %v900 = vunpack.c.l.b16 %v391
      %v901 = vunpack.c.h.b16 %v391
      %v902 = vunpack.c.l.b16 %v392
      %v903 = vunpack.c.h.b16 %v392
      %v904 = vunpack.c.l.b16 %v393
      %v905 = vunpack.c.h.b16 %v393
      %v906 = vunpack.c.l.b16 %v394
      %v907 = vunpack.c.h.b16 %v394
      %v908 = vpack.c.b16 %v902, %v900
      %v909 = vpack.c.b16 %v903, %v901
      %v910 = vpack.c.b16 %v906, %v904
      %v911 = vpack.c.b16 %v907, %v905
      %v915 = vsel %vm538, %v895, 0
      %v918 = vsel %vm611, %v910, 0
      %v921 = vsel %vm611, %v911, 0
      %923 = vmatprep.subr.bf16.mxu0 0
      %924 = vmatpush1.bf16.msra.mxu0 0
      %925 = vmatprep.subr.bf16.mxu0 0
      %926 = vmatpush1.bf16.msra.mxu0 0
      %927 = vmatprep.subr.bf16.mxu0 0
      %928 = vmatpush1.bf16.msra.mxu0 0
      %929 = vmatprep.subr.bf16.mxu0 0
      %930 = vmatpush1.bf16.msra.mxu0 0
      %931 = vmatprep.subr.bf16.mxu0 0
      %932 = vmatpush1.bf16.msra.mxu0 0
      %933 = vmatprep.subr.bf16.mxu0 0
      %934 = vmatpush1.bf16.msra.mxu0 0
      %935 = vmatprep.subr.bf16.mxu0 %v921
      %936 = vmatpush1.bf16.msra.mxu0 %v918
      %937 = vmatprep.subr.bf16.mxu0 %v909
      %938 = vmatpush1.bf16.msra.mxu0 %v908
      %939 = vmatprep.subr.bf16.mxu0 0
      %940 = vmatpush2.bf16.msra.mxu0 0
      %941 = vmatprep.subr.bf16.mxu0 0
      %942 = vmatpush2.bf16.msra.mxu0 0
      %943 = vmatprep.subr.bf16.mxu0 0
      %944 = vmatpush2.bf16.msra.mxu0 0
      %945 = vmatprep.subr.bf16.mxu0 0
      %946 = vmatpush2.bf16.msra.mxu0 0
      %947 = vmatprep.subr.bf16.mxu0 0
      %948 = vmatpush2.bf16.msra.mxu0 0
      %949 = vmatprep.subr.bf16.mxu0 0
      %950 = vmatpush2.bf16.msra.mxu0 0
      %951 = vmatprep.subr.bf16.mxu0 0
      %952 = vmatpush2.bf16.msra.mxu0 0
      %953 = vmatprep.subr.bf16.mxu0 0
      %954 = vmatpush2.bf16.msra.mxu0 0
      %955 = vmatprep.mubr.bf16.mxu0 0
      %956 = vmatmul.mubr.bf16.gmra.mxu0 %v915
      %v957 = vpop.f32.mrf.mxu0
      %v958 = vadd.f32 %v653, %v957
      %v959 = vpop.f32.mrf.mxu0
      %v960 = vadd.f32 %v655, %v959
      %v961 = vpop.f32.mrf.mxu0
      %v962 = vadd.f32 %v657, %v961
      %v963 = vpop.f32.mrf.mxu0
      %v964 = vadd.f32 %v659, %v963
      %965 = vmatprep.mubr.bf16.mxu0 0
      %966 = vmatmul.mubr.bf16.gmra.mxu0 %v540
      %v967 = vpop.f32.mrf.mxu0
      %v968 = vadd.f32 %v663, %v967
      %v969 = vpop.f32.mrf.mxu0
      %v970 = vadd.f32 %v665, %v969
      %v971 = vpop.f32.mrf.mxu0
      %v972 = vadd.f32 %v667, %v971
      %v973 = vpop.f32.mrf.mxu0
      %v974 = vadd.f32 %v669, %v973
      %975 = vmatprep.mubr.bf16.mxu0 0
      %976 = vmatmul.mubr.bf16.gmra.mxu0 %v543
      %v977 = vpop.f32.mrf.mxu0
      %v978 = vadd.f32 %v673, %v977
      %v979 = vpop.f32.mrf.mxu0
      %v980 = vadd.f32 %v675, %v979
      %v981 = vpop.f32.mrf.mxu0
      %v982 = vadd.f32 %v677, %v981
      %v983 = vpop.f32.mrf.mxu0
      %v984 = vadd.f32 %v679, %v983
      %985 = vmatprep.mubr.bf16.mxu0 0
      %986 = vmatmul.mubr.bf16.gmra.mxu0 %v546
      %v987 = vpop.f32.mrf.mxu0
      %v988 = vadd.f32 %v683, %v987
      %v989 = vpop.f32.mrf.mxu0
      %v990 = vadd.f32 %v685, %v989
      %v991 = vpop.f32.mrf.mxu0
      %v992 = vadd.f32 %v687, %v991
      %v993 = vpop.f32.mrf.mxu0
      %v994 = vadd.f32 %v689, %v993
      %995 = vmatprep.mubr.bf16.mxu0 0
      %996 = vmatmul.mubr.bf16.gmra.mxu0 %v549
      %v997 = vpop.f32.mrf.mxu0
      %v998 = vadd.f32 %v693, %v997
      %v999 = vpop.f32.mrf.mxu0
      %v1000 = vadd.f32 %v695, %v999
      %v1001 = vpop.f32.mrf.mxu0
      %v1002 = vadd.f32 %v697, %v1001
      %v1003 = vpop.f32.mrf.mxu0
      %v1004 = vadd.f32 %v699, %v1003
      %1005 = vmatprep.mubr.bf16.mxu0 0
      %1006 = vmatmul.mubr.bf16.gmra.mxu0 %v552
      %v1007 = vpop.f32.mrf.mxu0
      %v1008 = vadd.f32 %v703, %v1007
      %v1009 = vpop.f32.mrf.mxu0
      %v1010 = vadd.f32 %v705, %v1009
      %v1011 = vpop.f32.mrf.mxu0
      %v1012 = vadd.f32 %v707, %v1011
      %v1013 = vpop.f32.mrf.mxu0
      %v1014 = vadd.f32 %v709, %v1013
      %1015 = vmatprep.mubr.bf16.mxu0 0
      %1016 = vmatmul.mubr.bf16.gmra.mxu0 %v555
      %v1017 = vpop.f32.mrf.mxu0
      %v1018 = vadd.f32 %v713, %v1017
      %v1019 = vpop.f32.mrf.mxu0
      %v1020 = vadd.f32 %v715, %v1019
      %v1021 = vpop.f32.mrf.mxu0
      %v1022 = vadd.f32 %v717, %v1021
      %v1023 = vpop.f32.mrf.mxu0
      %v1024 = vadd.f32 %v719, %v1023
      %1025 = vmatprep.mubr.bf16.mxu0 0
      %1026 = vmatmul.mubr.bf16.gmra.mxu0 %v558
      %v1027 = vpop.f32.mrf.mxu0
      %v1028 = vadd.f32 %v723, %v1027
      %v1029 = vpop.f32.mrf.mxu0
      %v1030 = vadd.f32 %v725, %v1029
      %v1031 = vpop.f32.mrf.mxu0
      %v1032 = vadd.f32 %v727, %v1031
      %v1033 = vpop.f32.mrf.mxu0
      %v1034 = vadd.f32 %v729, %v1033
      %1035 = vmatprep.mubr.bf16.mxu0 0
      %1036 = vmatmul.mubr.bf16.gmra.mxu0 %v561
      %v1037 = vpop.f32.mrf.mxu0
      %v1038 = vadd.f32 %v733, %v1037
      %v1039 = vpop.f32.mrf.mxu0
      %v1040 = vadd.f32 %v735, %v1039
      %v1041 = vpop.f32.mrf.mxu0
      %v1042 = vadd.f32 %v737, %v1041
      %v1043 = vpop.f32.mrf.mxu0
      %v1044 = vadd.f32 %v739, %v1043
      %1045 = vmatprep.mubr.bf16.mxu0 0
      %1046 = vmatmul.mubr.bf16.gmra.mxu0 %v564
      %v1047 = vpop.f32.mrf.mxu0
      %v1048 = vadd.f32 %v743, %v1047
      %v1049 = vpop.f32.mrf.mxu0
      %v1050 = vadd.f32 %v745, %v1049
      %v1051 = vpop.f32.mrf.mxu0
      %v1052 = vadd.f32 %v747, %v1051
      %v1053 = vpop.f32.mrf.mxu0
      %v1054 = vadd.f32 %v749, %v1053
      %1055 = vmatprep.mubr.bf16.mxu0 0
      %1056 = vmatmul.mubr.bf16.gmra.mxu0 %v567
      %v1057 = vpop.f32.mrf.mxu0
      %v1058 = vadd.f32 %v753, %v1057
      %v1059 = vpop.f32.mrf.mxu0
      %v1060 = vadd.f32 %v755, %v1059
      %v1061 = vpop.f32.mrf.mxu0
      %v1062 = vadd.f32 %v757, %v1061
      %v1063 = vpop.f32.mrf.mxu0
      %v1064 = vadd.f32 %v759, %v1063
      %1065 = vmatprep.mubr.bf16.mxu0 0
      %1066 = vmatmul.mubr.bf16.gmra.mxu0 %v570
      %v1067 = vpop.f32.mrf.mxu0
      %v1068 = vadd.f32 %v763, %v1067
      %v1069 = vpop.f32.mrf.mxu0
      %v1070 = vadd.f32 %v765, %v1069
      %v1071 = vpop.f32.mrf.mxu0
      %v1072 = vadd.f32 %v767, %v1071
      %v1073 = vpop.f32.mrf.mxu0
      %v1074 = vadd.f32 %v769, %v1073
      %1075 = vmatprep.mubr.bf16.mxu0 0
      %1076 = vmatmul.mubr.bf16.gmra.mxu0 %v573
      %v1077 = vpop.f32.mrf.mxu0
      %v1078 = vadd.f32 %v773, %v1077
      %v1079 = vpop.f32.mrf.mxu0
      %v1080 = vadd.f32 %v775, %v1079
      %v1081 = vpop.f32.mrf.mxu0
      %v1082 = vadd.f32 %v777, %v1081
      %v1083 = vpop.f32.mrf.mxu0
      %v1084 = vadd.f32 %v779, %v1083
      %1085 = vmatprep.mubr.bf16.mxu0 0
      %1086 = vmatmul.mubr.bf16.gmra.mxu0 %v576
      %v1087 = vpop.f32.mrf.mxu0
      %v1088 = vadd.f32 %v783, %v1087
      %v1089 = vpop.f32.mrf.mxu0
      %v1090 = vadd.f32 %v785, %v1089
      %v1091 = vpop.f32.mrf.mxu0
      %v1092 = vadd.f32 %v787, %v1091
      %v1093 = vpop.f32.mrf.mxu0
      %v1094 = vadd.f32 %v789, %v1093
      %1095 = vmatprep.mubr.bf16.mxu0 0
      %1096 = vmatmul.mubr.bf16.gmra.mxu0 %v579
      %v1097 = vpop.f32.mrf.mxu0
      %v1098 = vadd.f32 %v793, %v1097
      %v1099 = vpop.f32.mrf.mxu0
      %v1100 = vadd.f32 %v795, %v1099
      %v1101 = vpop.f32.mrf.mxu0
      %v1102 = vadd.f32 %v797, %v1101
      %v1103 = vpop.f32.mrf.mxu0
      %v1104 = vadd.f32 %v799, %v1103
      %1105 = vmatprep.mubr.bf16.mxu0 0
      %1106 = vmatmul.mubr.bf16.gmra.mxu0 %v582
      %v1107 = vpop.f32.mrf.mxu0
      %v1108 = vadd.f32 %v803, %v1107
      %v1109 = vpop.f32.mrf.mxu0
      %v1110 = vadd.f32 %v805, %v1109
      %v1111 = vpop.f32.mrf.mxu0
      %v1112 = vadd.f32 %v807, %v1111
      %v1113 = vpop.f32.mrf.mxu0
      %v1114 = vadd.f32 %v809, %v1113
      %1115 = vmatprep.mubr.bf16.mxu0 0
      %1116 = vmatmul.mubr.bf16.gmra.mxu0 %v585
      %v1117 = vpop.f32.mrf.mxu0
      %v1118 = vadd.f32 %v813, %v1117
      %v1119 = vpop.f32.mrf.mxu0
      %v1120 = vadd.f32 %v815, %v1119
      %v1121 = vpop.f32.mrf.mxu0
      %v1122 = vadd.f32 %v817, %v1121
      %v1123 = vpop.f32.mrf.mxu0
      %v1124 = vadd.f32 %v819, %v1123
      %1125 = vmatprep.mubr.bf16.mxu0 0
      %1126 = vmatmul.mubr.bf16.gmra.mxu0 %v588
      %v1127 = vpop.f32.mrf.mxu0
      %v1128 = vadd.f32 %v823, %v1127
      %v1129 = vpop.f32.mrf.mxu0
      %v1130 = vadd.f32 %v825, %v1129
      %v1131 = vpop.f32.mrf.mxu0
      %v1132 = vadd.f32 %v827, %v1131
      %v1133 = vpop.f32.mrf.mxu0
      %v1134 = vadd.f32 %v829, %v1133
      %1135 = vmatprep.mubr.bf16.mxu0 0
      %1136 = vmatmul.mubr.bf16.gmra.mxu0 %v591
      %v1137 = vpop.f32.mrf.mxu0
      %v1138 = vadd.f32 %v833, %v1137
      %v1139 = vpop.f32.mrf.mxu0
      %v1140 = vadd.f32 %v835, %v1139
      %v1141 = vpop.f32.mrf.mxu0
      %v1142 = vadd.f32 %v837, %v1141
      %v1143 = vpop.f32.mrf.mxu0
      %v1144 = vadd.f32 %v839, %v1143
      %1145 = vmatprep.mubr.bf16.mxu0 0
      %1146 = vmatmul.mubr.bf16.gmra.mxu0 %v594
      %v1147 = vpop.f32.mrf.mxu0
      %v1148 = vadd.f32 %v843, %v1147
      %v1149 = vpop.f32.mrf.mxu0
      %v1150 = vadd.f32 %v845, %v1149
      %v1151 = vpop.f32.mrf.mxu0
      %v1152 = vadd.f32 %v847, %v1151
      %v1153 = vpop.f32.mrf.mxu0
      %v1154 = vadd.f32 %v849, %v1153
      %1155 = vmatprep.mubr.bf16.mxu0 0
      %1156 = vmatmul.mubr.bf16.gmra.mxu0 %v597
      %v1157 = vpop.f32.mrf.mxu0
      %v1158 = vadd.f32 %v853, %v1157
      %v1159 = vpop.f32.mrf.mxu0
      %v1160 = vadd.f32 %v855, %v1159
      %v1161 = vpop.f32.mrf.mxu0
      %v1162 = vadd.f32 %v857, %v1161
      %v1163 = vpop.f32.mrf.mxu0
      %v1164 = vadd.f32 %v859, %v1163
      %1165 = vmatprep.mubr.bf16.mxu0 0
      %1166 = vmatmul.mubr.bf16.gmra.mxu0 %v600
      %v1167 = vpop.f32.mrf.mxu0
      %v1168 = vadd.f32 %v863, %v1167
      %v1169 = vpop.f32.mrf.mxu0
      %v1170 = vadd.f32 %v865, %v1169
      %v1171 = vpop.f32.mrf.mxu0
      %v1172 = vadd.f32 %v867, %v1171
      %v1173 = vpop.f32.mrf.mxu0
      %v1174 = vadd.f32 %v869, %v1173
      %1175 = vmatprep.mubr.bf16.mxu0 0
      %1176 = vmatmul.mubr.bf16.gmra.mxu0 %v603
      %v1177 = vpop.f32.mrf.mxu0
      %v1178 = vadd.f32 %v873, %v1177
      %v1179 = vpop.f32.mrf.mxu0
      %v1180 = vadd.f32 %v875, %v1179
      %v1181 = vpop.f32.mrf.mxu0
      %v1182 = vadd.f32 %v877, %v1181
      %v1183 = vpop.f32.mrf.mxu0
      %v1184 = vadd.f32 %v879, %v1183
      %1185 = vmatprep.mubr.bf16.mxu0 0
      %1186 = vmatmul.mubr.bf16.gmra.mxu0 %v606
      %v1187 = vpop.f32.mrf.mxu0
      %v1188 = vadd.f32 %v883, %v1187
      %v1189 = vpop.f32.mrf.mxu0
      %v1190 = vadd.f32 %v885, %v1189
      %v1191 = vpop.f32.mrf.mxu0
      %v1192 = vadd.f32 %v887, %v1191
      %v1193 = vpop.f32.mrf.mxu0
      %v1194 = vadd.f32 %v889, %v1193
      %1195 = vdwg.mxu0
      %s1196 = scalar_lea.vmem %s1, 64
      %v1197 = vld [vmem:[%s1196] sm:$0xff]
      %v1198 = vld [vmem:[%s1196 + $0x8] sm:$0xff]
      %v1199 = vld [vmem:[%s1196 + $0x10] sm:$0xff]
      %v1200 = vld [vmem:[%s1196 + $0x18] sm:$0x33]
      %v1203 = vunpack.c.l.b16 %v385
      %v1204 = vunpack.c.l.b16 %v386
      %v1205 = vpack.c.b16 %v1204, %v1203
      %v1210 = vunpack.c.l.b16 %v1197
      %v1211 = vunpack.c.h.b16 %v1197
      %v1212 = vunpack.c.l.b16 %v1198
      %v1213 = vunpack.c.h.b16 %v1198
      %v1214 = vunpack.c.l.b16 %v1199
      %v1215 = vunpack.c.h.b16 %v1199
      %v1216 = vunpack.c.l.b16 %v1200
      %v1217 = vunpack.c.h.b16 %v1200
      %v1218 = vpack.c.b16 %v1212, %v1210
      %v1219 = vpack.c.b16 %v1213, %v1211
      %v1220 = vpack.c.b16 %v1216, %v1214
      %v1221 = vpack.c.b16 %v1217, %v1215
      %v1225 = vsel %vm538, %v1205, 0
      %v1228 = vsel %vm611, %v1220, 0
      %v1231 = vsel %vm611, %v1221, 0
      %1233 = vmatprep.subr.bf16.mxu0 0
      %1234 = vmatpush1.bf16.msra.mxu0 0
      %1235 = vmatprep.subr.bf16.mxu0 0
      %1236 = vmatpush1.bf16.msra.mxu0 0
      %1237 = vmatprep.subr.bf16.mxu0 0
      %1238 = vmatpush1.bf16.msra.mxu0 0
      %1239 = vmatprep.subr.bf16.mxu0 0
      %1240 = vmatpush1.bf16.msra.mxu0 0
      %1241 = vmatprep.subr.bf16.mxu0 0
      %1242 = vmatpush1.bf16.msra.mxu0 0
      %1243 = vmatprep.subr.bf16.mxu0 0
      %1244 = vmatpush1.bf16.msra.mxu0 0
      %1245 = vmatprep.subr.bf16.mxu0 %v1231
      %1246 = vmatpush1.bf16.msra.mxu0 %v1228
      %1247 = vmatprep.subr.bf16.mxu0 %v1219
      %1248 = vmatpush1.bf16.msra.mxu0 %v1218
      %1249 = vmatprep.subr.bf16.mxu0 0
      %1250 = vmatpush2.bf16.msra.mxu0 0
      %1251 = vmatprep.subr.bf16.mxu0 0
      %1252 = vmatpush2.bf16.msra.mxu0 0
      %1253 = vmatprep.subr.bf16.mxu0 0
      %1254 = vmatpush2.bf16.msra.mxu0 0
      %1255 = vmatprep.subr.bf16.mxu0 0
      %1256 = vmatpush2.bf16.msra.mxu0 0
      %1257 = vmatprep.subr.bf16.mxu0 0
      %1258 = vmatpush2.bf16.msra.mxu0 0
      %1259 = vmatprep.subr.bf16.mxu0 0
      %1260 = vmatpush2.bf16.msra.mxu0 0
      %1261 = vmatprep.subr.bf16.mxu0 0
      %1262 = vmatpush2.bf16.msra.mxu0 0
      %1263 = vmatprep.subr.bf16.mxu0 0
      %1264 = vmatpush2.bf16.msra.mxu0 0
      %1265 = vmatprep.mubr.bf16.mxu0 0
      %1266 = vmatmul.mubr.bf16.gmra.mxu0 %v543
      %v1267 = vpop.f32.mrf.mxu0
      %v1268 = vadd.f32 0.0, %v1267
      %v1269 = vpop.f32.mrf.mxu0
      %v1270 = vadd.f32 0.0, %v1269
      %v1271 = vpop.f32.mrf.mxu0
      %v1272 = vadd.f32 0.0, %v1271
      %v1273 = vpop.f32.mrf.mxu0
      %v1274 = vadd.f32 0.0, %v1273
      %1275 = vmatprep.mubr.bf16.mxu0 0
      %1276 = vmatmul.mubr.bf16.gmra.mxu0 %v546
      %v1277 = vpop.f32.mrf.mxu0
      %v1278 = vadd.f32 0.0, %v1277
      %v1279 = vpop.f32.mrf.mxu0
      %v1280 = vadd.f32 0.0, %v1279
      %v1281 = vpop.f32.mrf.mxu0
      %v1282 = vadd.f32 0.0, %v1281
      %v1283 = vpop.f32.mrf.mxu0
      %v1284 = vadd.f32 0.0, %v1283
      %1285 = vmatprep.mubr.bf16.mxu0 0
      %1286 = vmatmul.mubr.bf16.gmra.mxu0 %v549
      %v1287 = vpop.f32.mrf.mxu0
      %v1288 = vadd.f32 0.0, %v1287
      %v1289 = vpop.f32.mrf.mxu0
      %v1290 = vadd.f32 0.0, %v1289
      %v1291 = vpop.f32.mrf.mxu0
      %v1292 = vadd.f32 0.0, %v1291
      %v1293 = vpop.f32.mrf.mxu0
      %v1294 = vadd.f32 0.0, %v1293
      %1295 = vmatprep.mubr.bf16.mxu0 0
      %1296 = vmatmul.mubr.bf16.gmra.mxu0 %v552
      %v1297 = vpop.f32.mrf.mxu0
      %v1298 = vadd.f32 0.0, %v1297
      %v1299 = vpop.f32.mrf.mxu0
      %v1300 = vadd.f32 0.0, %v1299
      %v1301 = vpop.f32.mrf.mxu0
      %v1302 = vadd.f32 0.0, %v1301
      %v1303 = vpop.f32.mrf.mxu0
      %v1304 = vadd.f32 0.0, %v1303
      %1305 = vmatprep.mubr.bf16.mxu0 0
      %1306 = vmatmul.mubr.bf16.gmra.mxu0 %v555
      %v1307 = vpop.f32.mrf.mxu0
      %v1308 = vadd.f32 0.0, %v1307
      %v1309 = vpop.f32.mrf.mxu0
      %v1310 = vadd.f32 0.0, %v1309
      %v1311 = vpop.f32.mrf.mxu0
      %v1312 = vadd.f32 0.0, %v1311
      %v1313 = vpop.f32.mrf.mxu0
      %v1314 = vadd.f32 0.0, %v1313
      %1315 = vmatprep.mubr.bf16.mxu0 0
      %1316 = vmatmul.mubr.bf16.gmra.mxu0 %v558
      %v1317 = vpop.f32.mrf.mxu0
      %v1318 = vadd.f32 0.0, %v1317
      %v1319 = vpop.f32.mrf.mxu0
      %v1320 = vadd.f32 0.0, %v1319
      %v1321 = vpop.f32.mrf.mxu0
      %v1322 = vadd.f32 0.0, %v1321
      %v1323 = vpop.f32.mrf.mxu0
      %v1324 = vadd.f32 0.0, %v1323
      %1325 = vmatprep.mubr.bf16.mxu0 0
      %1326 = vmatmul.mubr.bf16.gmra.mxu0 %v561
      %v1327 = vpop.f32.mrf.mxu0
      %v1328 = vadd.f32 0.0, %v1327
      %v1329 = vpop.f32.mrf.mxu0
      %v1330 = vadd.f32 0.0, %v1329
      %v1331 = vpop.f32.mrf.mxu0
      %v1332 = vadd.f32 0.0, %v1331
      %v1333 = vpop.f32.mrf.mxu0
      %v1334 = vadd.f32 0.0, %v1333
      %1335 = vmatprep.mubr.bf16.mxu0 0
      %1336 = vmatmul.mubr.bf16.gmra.mxu0 %v564
      %v1337 = vpop.f32.mrf.mxu0
      %v1338 = vadd.f32 0.0, %v1337
      %v1339 = vpop.f32.mrf.mxu0
      %v1340 = vadd.f32 0.0, %v1339
      %v1341 = vpop.f32.mrf.mxu0
      %v1342 = vadd.f32 0.0, %v1341
      %v1343 = vpop.f32.mrf.mxu0
      %v1344 = vadd.f32 0.0, %v1343
      %1345 = vmatprep.mubr.bf16.mxu0 0
      %1346 = vmatmul.mubr.bf16.gmra.mxu0 %v567
      %v1347 = vpop.f32.mrf.mxu0
      %v1348 = vadd.f32 0.0, %v1347
      %v1349 = vpop.f32.mrf.mxu0
      %v1350 = vadd.f32 0.0, %v1349
      %v1351 = vpop.f32.mrf.mxu0
      %v1352 = vadd.f32 0.0, %v1351
      %v1353 = vpop.f32.mrf.mxu0
      %v1354 = vadd.f32 0.0, %v1353
      %1355 = vmatprep.mubr.bf16.mxu0 0
      %1356 = vmatmul.mubr.bf16.gmra.mxu0 %v570
      %v1357 = vpop.f32.mrf.mxu0
      %v1358 = vadd.f32 0.0, %v1357
      %v1359 = vpop.f32.mrf.mxu0
      %v1360 = vadd.f32 0.0, %v1359
      %v1361 = vpop.f32.mrf.mxu0
      %v1362 = vadd.f32 0.0, %v1361
      %v1363 = vpop.f32.mrf.mxu0
      %v1364 = vadd.f32 0.0, %v1363
      %1365 = vmatprep.mubr.bf16.mxu0 0
      %1366 = vmatmul.mubr.bf16.gmra.mxu0 %v573
      %v1367 = vpop.f32.mrf.mxu0
      %v1368 = vadd.f32 0.0, %v1367
      %v1369 = vpop.f32.mrf.mxu0
      %v1370 = vadd.f32 0.0, %v1369
      %v1371 = vpop.f32.mrf.mxu0
      %v1372 = vadd.f32 0.0, %v1371
      %v1373 = vpop.f32.mrf.mxu0
      %v1374 = vadd.f32 0.0, %v1373
      %1375 = vmatprep.mubr.bf16.mxu0 0
      %1376 = vmatmul.mubr.bf16.gmra.mxu0 %v576
      %v1377 = vpop.f32.mrf.mxu0
      %v1378 = vadd.f32 0.0, %v1377
      %v1379 = vpop.f32.mrf.mxu0
      %v1380 = vadd.f32 0.0, %v1379
      %v1381 = vpop.f32.mrf.mxu0
      %v1382 = vadd.f32 0.0, %v1381
      %v1383 = vpop.f32.mrf.mxu0
      %v1384 = vadd.f32 0.0, %v1383
      %1385 = vmatprep.mubr.bf16.mxu0 0
      %1386 = vmatmul.mubr.bf16.gmra.mxu0 %v579
      %v1387 = vpop.f32.mrf.mxu0
      %v1388 = vadd.f32 0.0, %v1387
      %v1389 = vpop.f32.mrf.mxu0
      %v1390 = vadd.f32 0.0, %v1389
      %v1391 = vpop.f32.mrf.mxu0
      %v1392 = vadd.f32 0.0, %v1391
      %v1393 = vpop.f32.mrf.mxu0
      %v1394 = vadd.f32 0.0, %v1393
      %1395 = vmatprep.mubr.bf16.mxu0 0
      %1396 = vmatmul.mubr.bf16.gmra.mxu0 %v582
      %v1397 = vpop.f32.mrf.mxu0
      %v1398 = vadd.f32 0.0, %v1397
      %v1399 = vpop.f32.mrf.mxu0
      %v1400 = vadd.f32 0.0, %v1399
      %v1401 = vpop.f32.mrf.mxu0
      %v1402 = vadd.f32 0.0, %v1401
      %v1403 = vpop.f32.mrf.mxu0
      %v1404 = vadd.f32 0.0, %v1403
      %1405 = vmatprep.mubr.bf16.mxu0 0
      %1406 = vmatmul.mubr.bf16.gmra.mxu0 %v585
      %v1407 = vpop.f32.mrf.mxu0
      %v1408 = vadd.f32 0.0, %v1407
      %v1409 = vpop.f32.mrf.mxu0
      %v1410 = vadd.f32 0.0, %v1409
      %v1411 = vpop.f32.mrf.mxu0
      %v1412 = vadd.f32 0.0, %v1411
      %v1413 = vpop.f32.mrf.mxu0
      %v1414 = vadd.f32 0.0, %v1413
      %1415 = vmatprep.mubr.bf16.mxu0 0
      %1416 = vmatmul.mubr.bf16.gmra.mxu0 %v588
      %v1417 = vpop.f32.mrf.mxu0
      %v1418 = vadd.f32 0.0, %v1417
      %v1419 = vpop.f32.mrf.mxu0
      %v1420 = vadd.f32 0.0, %v1419
      %v1421 = vpop.f32.mrf.mxu0
      %v1422 = vadd.f32 0.0, %v1421
      %v1423 = vpop.f32.mrf.mxu0
      %v1424 = vadd.f32 0.0, %v1423
      %1425 = vmatprep.mubr.bf16.mxu0 0
      %1426 = vmatmul.mubr.bf16.gmra.mxu0 %v591
      %v1427 = vpop.f32.mrf.mxu0
      %v1428 = vadd.f32 0.0, %v1427
      %v1429 = vpop.f32.mrf.mxu0
      %v1430 = vadd.f32 0.0, %v1429
      %v1431 = vpop.f32.mrf.mxu0
      %v1432 = vadd.f32 0.0, %v1431
      %v1433 = vpop.f32.mrf.mxu0
      %v1434 = vadd.f32 0.0, %v1433
      %1435 = vmatprep.mubr.bf16.mxu0 0
      %1436 = vmatmul.mubr.bf16.gmra.mxu0 %v594
      %v1437 = vpop.f32.mrf.mxu0
      %v1438 = vadd.f32 0.0, %v1437
      %v1439 = vpop.f32.mrf.mxu0
      %v1440 = vadd.f32 0.0, %v1439
      %v1441 = vpop.f32.mrf.mxu0
      %v1442 = vadd.f32 0.0, %v1441
      %v1443 = vpop.f32.mrf.mxu0
      %v1444 = vadd.f32 0.0, %v1443
      %1445 = vmatprep.mubr.bf16.mxu0 0
      %1446 = vmatmul.mubr.bf16.gmra.mxu0 %v597
      %v1447 = vpop.f32.mrf.mxu0
      %v1448 = vadd.f32 0.0, %v1447
      %v1449 = vpop.f32.mrf.mxu0
      %v1450 = vadd.f32 0.0, %v1449
      %v1451 = vpop.f32.mrf.mxu0
      %v1452 = vadd.f32 0.0, %v1451
      %v1453 = vpop.f32.mrf.mxu0
      %v1454 = vadd.f32 0.0, %v1453
      %1455 = vmatprep.mubr.bf16.mxu0 0
      %1456 = vmatmul.mubr.bf16.gmra.mxu0 %v600
      %v1457 = vpop.f32.mrf.mxu0
      %v1458 = vadd.f32 0.0, %v1457
      %v1459 = vpop.f32.mrf.mxu0
      %v1460 = vadd.f32 0.0, %v1459
      %v1461 = vpop.f32.mrf.mxu0
      %v1462 = vadd.f32 0.0, %v1461
      %v1463 = vpop.f32.mrf.mxu0
      %v1464 = vadd.f32 0.0, %v1463
      %1465 = vmatprep.mubr.bf16.mxu0 0
      %1466 = vmatmul.mubr.bf16.gmra.mxu0 %v603
      %v1467 = vpop.f32.mrf.mxu0
      %v1468 = vadd.f32 0.0, %v1467
      %v1469 = vpop.f32.mrf.mxu0
      %v1470 = vadd.f32 0.0, %v1469
      %v1471 = vpop.f32.mrf.mxu0
      %v1472 = vadd.f32 0.0, %v1471
      %v1473 = vpop.f32.mrf.mxu0
      %v1474 = vadd.f32 0.0, %v1473
      %1475 = vmatprep.mubr.bf16.mxu0 0
      %1476 = vmatmul.mubr.bf16.gmra.mxu0 %v606
      %v1477 = vpop.f32.mrf.mxu0
      %v1478 = vadd.f32 0.0, %v1477
      %v1479 = vpop.f32.mrf.mxu0
      %v1480 = vadd.f32 0.0, %v1479
      %v1481 = vpop.f32.mrf.mxu0
      %v1482 = vadd.f32 0.0, %v1481
      %v1483 = vpop.f32.mrf.mxu0
      %v1484 = vadd.f32 0.0, %v1483
      %1485 = vmatprep.mubr.bf16.mxu0 0
      %1486 = vmatmul.mubr.bf16.gmra.mxu0 %v609
      %v1487 = vpop.f32.mrf.mxu0
      %v1488 = vadd.f32 0.0, %v1487
      %v1489 = vpop.f32.mrf.mxu0
      %v1490 = vadd.f32 0.0, %v1489
      %v1491 = vpop.f32.mrf.mxu0
      %v1492 = vadd.f32 0.0, %v1491
      %v1493 = vpop.f32.mrf.mxu0
      %v1494 = vadd.f32 0.0, %v1493
      %1495 = vmatprep.mubr.bf16.mxu0 0
      %1496 = vmatmul.mubr.bf16.gmra.mxu0 %v1225
      %v1497 = vpop.f32.mrf.mxu0
      %v1498 = vadd.f32 0.0, %v1497
      %v1499 = vpop.f32.mrf.mxu0
      %v1500 = vadd.f32 0.0, %v1499
      %v1501 = vpop.f32.mrf.mxu0
      %v1502 = vadd.f32 0.0, %v1501
      %v1503 = vpop.f32.mrf.mxu0
      %v1504 = vadd.f32 0.0, %v1503
      %1505 = vdwg.mxu0
      %v1506 = vadd.f32 %v958, %v1268
      %v1507 = vadd.f32 %v960, %v1270
      %v1508 = vadd.f32 %v962, %v1272
      %v1509 = vadd.f32 %v964, %v1274
      %v1510 = vadd.f32 %v968, %v1278
      %v1511 = vadd.f32 %v970, %v1280
      %v1512 = vadd.f32 %v972, %v1282
      %v1513 = vadd.f32 %v974, %v1284
      %v1514 = vadd.f32 %v978, %v1288
      %v1515 = vadd.f32 %v980, %v1290
      %v1516 = vadd.f32 %v982, %v1292
      %v1517 = vadd.f32 %v984, %v1294
      %v1518 = vadd.f32 %v988, %v1298
      %v1519 = vadd.f32 %v990, %v1300
      %v1520 = vadd.f32 %v992, %v1302
      %v1521 = vadd.f32 %v994, %v1304
      %v1522 = vadd.f32 %v998, %v1308
      %v1523 = vadd.f32 %v1000, %v1310
      %v1524 = vadd.f32 %v1002, %v1312
      %v1525 = vadd.f32 %v1004, %v1314
      %v1526 = vadd.f32 %v1008, %v1318
      %v1527 = vadd.f32 %v1010, %v1320
      %v1528 = vadd.f32 %v1012, %v1322
      %v1529 = vadd.f32 %v1014, %v1324
      %v1530 = vadd.f32 %v1018, %v1328
      %v1531 = vadd.f32 %v1020, %v1330
      %v1532 = vadd.f32 %v1022, %v1332
      %v1533 = vadd.f32 %v1024, %v1334
      %v1534 = vadd.f32 %v1028, %v1338
      %v1535 = vadd.f32 %v1030, %v1340
      %v1536 = vadd.f32 %v1032, %v1342
      %v1537 = vadd.f32 %v1034, %v1344
      %v1538 = vadd.f32 %v1038, %v1348
      %v1539 = vadd.f32 %v1040, %v1350
      %v1540 = vadd.f32 %v1042, %v1352
      %v1541 = vadd.f32 %v1044, %v1354
      %v1542 = vadd.f32 %v1048, %v1358
      %v1543 = vadd.f32 %v1050, %v1360
      %v1544 = vadd.f32 %v1052, %v1362
      %v1545 = vadd.f32 %v1054, %v1364
      %v1546 = vadd.f32 %v1058, %v1368
      %v1547 = vadd.f32 %v1060, %v1370
      %v1548 = vadd.f32 %v1062, %v1372
      %v1549 = vadd.f32 %v1064, %v1374
      %v1550 = vadd.f32 %v1068, %v1378
      %v1551 = vadd.f32 %v1070, %v1380
      %v1552 = vadd.f32 %v1072, %v1382
      %v1553 = vadd.f32 %v1074, %v1384
      %v1554 = vadd.f32 %v1078, %v1388
      %v1555 = vadd.f32 %v1080, %v1390
      %v1556 = vadd.f32 %v1082, %v1392
      %v1557 = vadd.f32 %v1084, %v1394
      %v1558 = vadd.f32 %v1088, %v1398
      %v1559 = vadd.f32 %v1090, %v1400
      %v1560 = vadd.f32 %v1092, %v1402
      %v1561 = vadd.f32 %v1094, %v1404
      %v1562 = vadd.f32 %v1098, %v1408
      %v1563 = vadd.f32 %v1100, %v1410
      %v1564 = vadd.f32 %v1102, %v1412
      %v1565 = vadd.f32 %v1104, %v1414
      %v1566 = vadd.f32 %v1108, %v1418
      %v1567 = vadd.f32 %v1110, %v1420
      %v1568 = vadd.f32 %v1112, %v1422
      %v1569 = vadd.f32 %v1114, %v1424
      %v1570 = vadd.f32 %v1118, %v1428
      %v1571 = vadd.f32 %v1120, %v1430
      %v1572 = vadd.f32 %v1122, %v1432
      %v1573 = vadd.f32 %v1124, %v1434
      %v1574 = vadd.f32 %v1128, %v1438
      %v1575 = vadd.f32 %v1130, %v1440
      %v1576 = vadd.f32 %v1132, %v1442
      %v1577 = vadd.f32 %v1134, %v1444
      %v1578 = vadd.f32 %v1138, %v1448
      %v1579 = vadd.f32 %v1140, %v1450
      %v1580 = vadd.f32 %v1142, %v1452
      %v1581 = vadd.f32 %v1144, %v1454
      %v1582 = vadd.f32 %v1148, %v1458
      %v1583 = vadd.f32 %v1150, %v1460
      %v1584 = vadd.f32 %v1152, %v1462
      %v1585 = vadd.f32 %v1154, %v1464
      %v1586 = vadd.f32 %v1158, %v1468
      %v1587 = vadd.f32 %v1160, %v1470
      %v1588 = vadd.f32 %v1162, %v1472
      %v1589 = vadd.f32 %v1164, %v1474
      %v1590 = vadd.f32 %v1168, %v1478
      %v1591 = vadd.f32 %v1170, %v1480
      %v1592 = vadd.f32 %v1172, %v1482
      %v1593 = vadd.f32 %v1174, %v1484
      %v1594 = vadd.f32 %v1178, %v1488
      %v1595 = vadd.f32 %v1180, %v1490
      %v1596 = vadd.f32 %v1182, %v1492
      %v1597 = vadd.f32 %v1184, %v1494
      %v1598 = vadd.f32 %v1188, %v1498
      %v1599 = vadd.f32 %v1190, %v1500
      %v1600 = vadd.f32 %v1192, %v1502
      %v1601 = vadd.f32 %v1194, %v1504
      %s1602 = scalar_lea.vmem %s1, 96
      %v1603 = vld [vmem:[%s1602] sm:$0xff]
      %v1604 = vld [vmem:[%s1602 + $0x8] sm:$0xff]
      %v1605 = vld [vmem:[%s1602 + $0x10] sm:$0xff]
      %v1606 = vld [vmem:[%s1602 + $0x18] sm:$0x33]
      %v1609 = vunpack.c.l.b16 %v387
      %v1610 = vunpack.c.l.b16 %v388
      %v1611 = vpack.c.b16 %v1610, %v1609
      %v1616 = vunpack.c.l.b16 %v1603
      %v1617 = vunpack.c.h.b16 %v1603
      %v1618 = vunpack.c.l.b16 %v1604
      %v1619 = vunpack.c.h.b16 %v1604
      %v1620 = vunpack.c.l.b16 %v1605
      %v1621 = vunpack.c.h.b16 %v1605
      %v1622 = vunpack.c.l.b16 %v1606
      %v1623 = vunpack.c.h.b16 %v1606
      %v1624 = vpack.c.b16 %v1618, %v1616
      %v1625 = vpack.c.b16 %v1619, %v1617
      %v1626 = vpack.c.b16 %v1622, %v1620
      %v1627 = vpack.c.b16 %v1623, %v1621
      %v1631 = vsel %vm538, %v1611, 0
      %v1634 = vsel %vm611, %v1626, 0
      %v1637 = vsel %vm611, %v1627, 0
      %1639 = vmatprep.subr.bf16.mxu0 0
      %1640 = vmatpush1.bf16.msra.mxu0 0
      %1641 = vmatprep.subr.bf16.mxu0 0
      %1642 = vmatpush1.bf16.msra.mxu0 0
      %1643 = vmatprep.subr.bf16.mxu0 0
      %1644 = vmatpush1.bf16.msra.mxu0 0
      %1645 = vmatprep.subr.bf16.mxu0 0
      %1646 = vmatpush1.bf16.msra.mxu0 0
      %1647 = vmatprep.subr.bf16.mxu0 0
      %1648 = vmatpush1.bf16.msra.mxu0 0
      %1649 = vmatprep.subr.bf16.mxu0 0
      %1650 = vmatpush1.bf16.msra.mxu0 0
      %1651 = vmatprep.subr.bf16.mxu0 %v1637
      %1652 = vmatpush1.bf16.msra.mxu0 %v1634
      %1653 = vmatprep.subr.bf16.mxu0 %v1625
      %1654 = vmatpush1.bf16.msra.mxu0 %v1624
      %1655 = vmatprep.subr.bf16.mxu0 0
      %1656 = vmatpush2.bf16.msra.mxu0 0
      %1657 = vmatprep.subr.bf16.mxu0 0
      %1658 = vmatpush2.bf16.msra.mxu0 0
      %1659 = vmatprep.subr.bf16.mxu0 0
      %1660 = vmatpush2.bf16.msra.mxu0 0
      %1661 = vmatprep.subr.bf16.mxu0 0
      %1662 = vmatpush2.bf16.msra.mxu0 0
      %1663 = vmatprep.subr.bf16.mxu0 0
      %1664 = vmatpush2.bf16.msra.mxu0 0
      %1665 = vmatprep.subr.bf16.mxu0 0
      %1666 = vmatpush2.bf16.msra.mxu0 0
      %1667 = vmatprep.subr.bf16.mxu0 0
      %1668 = vmatpush2.bf16.msra.mxu0 0
      %1669 = vmatprep.subr.bf16.mxu0 0
      %1670 = vmatpush2.bf16.msra.mxu0 0
      %1671 = vmatprep.mubr.bf16.mxu0 0
      %1672 = vmatmul.mubr.bf16.gmra.mxu0 %v546
      %v1673 = vpop.f32.mrf.mxu0
      %v1674 = vadd.f32 0.0, %v1673
      %v1675 = vpop.f32.mrf.mxu0
      %v1676 = vadd.f32 0.0, %v1675
      %v1677 = vpop.f32.mrf.mxu0
      %v1678 = vadd.f32 0.0, %v1677
      %v1679 = vpop.f32.mrf.mxu0
      %v1680 = vadd.f32 0.0, %v1679
      %1681 = vmatprep.mubr.bf16.mxu0 0
      %1682 = vmatmul.mubr.bf16.gmra.mxu0 %v549
      %v1683 = vpop.f32.mrf.mxu0
      %v1684 = vadd.f32 0.0, %v1683
      %v1685 = vpop.f32.mrf.mxu0
      %v1686 = vadd.f32 0.0, %v1685
      %v1687 = vpop.f32.mrf.mxu0
      %v1688 = vadd.f32 0.0, %v1687
      %v1689 = vpop.f32.mrf.mxu0
      %v1690 = vadd.f32 0.0, %v1689
      %1691 = vmatprep.mubr.bf16.mxu0 0
      %1692 = vmatmul.mubr.bf16.gmra.mxu0 %v552
      %v1693 = vpop.f32.mrf.mxu0
      %v1694 = vadd.f32 0.0, %v1693
      %v1695 = vpop.f32.mrf.mxu0
      %v1696 = vadd.f32 0.0, %v1695
      %v1697 = vpop.f32.mrf.mxu0
      %v1698 = vadd.f32 0.0, %v1697
      %v1699 = vpop.f32.mrf.mxu0
      %v1700 = vadd.f32 0.0, %v1699
      %1701 = vmatprep.mubr.bf16.mxu0 0
      %1702 = vmatmul.mubr.bf16.gmra.mxu0 %v555
      %v1703 = vpop.f32.mrf.mxu0
      %v1704 = vadd.f32 0.0, %v1703
      %v1705 = vpop.f32.mrf.mxu0
      %v1706 = vadd.f32 0.0, %v1705
      %v1707 = vpop.f32.mrf.mxu0
      %v1708 = vadd.f32 0.0, %v1707
      %v1709 = vpop.f32.mrf.mxu0
      %v1710 = vadd.f32 0.0, %v1709
      %1711 = vmatprep.mubr.bf16.mxu0 0
      %1712 = vmatmul.mubr.bf16.gmra.mxu0 %v558
      %v1713 = vpop.f32.mrf.mxu0
      %v1714 = vadd.f32 0.0, %v1713
      %v1715 = vpop.f32.mrf.mxu0
      %v1716 = vadd.f32 0.0, %v1715
      %v1717 = vpop.f32.mrf.mxu0
      %v1718 = vadd.f32 0.0, %v1717
      %v1719 = vpop.f32.mrf.mxu0
      %v1720 = vadd.f32 0.0, %v1719
      %1721 = vmatprep.mubr.bf16.mxu0 0
      %1722 = vmatmul.mubr.bf16.gmra.mxu0 %v561
      %v1723 = vpop.f32.mrf.mxu0
      %v1724 = vadd.f32 0.0, %v1723
      %v1725 = vpop.f32.mrf.mxu0
      %v1726 = vadd.f32 0.0, %v1725
      %v1727 = vpop.f32.mrf.mxu0
      %v1728 = vadd.f32 0.0, %v1727
      %v1729 = vpop.f32.mrf.mxu0
      %v1730 = vadd.f32 0.0, %v1729
      %1731 = vmatprep.mubr.bf16.mxu0 0
      %1732 = vmatmul.mubr.bf16.gmra.mxu0 %v564
      %v1733 = vpop.f32.mrf.mxu0
      %v1734 = vadd.f32 0.0, %v1733
      %v1735 = vpop.f32.mrf.mxu0
      %v1736 = vadd.f32 0.0, %v1735
      %v1737 = vpop.f32.mrf.mxu0
      %v1738 = vadd.f32 0.0, %v1737
      %v1739 = vpop.f32.mrf.mxu0
      %v1740 = vadd.f32 0.0, %v1739
      %1741 = vmatprep.mubr.bf16.mxu0 0
      %1742 = vmatmul.mubr.bf16.gmra.mxu0 %v567
      %v1743 = vpop.f32.mrf.mxu0
      %v1744 = vadd.f32 0.0, %v1743
      %v1745 = vpop.f32.mrf.mxu0
      %v1746 = vadd.f32 0.0, %v1745
      %v1747 = vpop.f32.mrf.mxu0
      %v1748 = vadd.f32 0.0, %v1747
      %v1749 = vpop.f32.mrf.mxu0
      %v1750 = vadd.f32 0.0, %v1749
      %1751 = vmatprep.mubr.bf16.mxu0 0
      %1752 = vmatmul.mubr.bf16.gmra.mxu0 %v570
      %v1753 = vpop.f32.mrf.mxu0
      %v1754 = vadd.f32 0.0, %v1753
      %v1755 = vpop.f32.mrf.mxu0
      %v1756 = vadd.f32 0.0, %v1755
      %v1757 = vpop.f32.mrf.mxu0
      %v1758 = vadd.f32 0.0, %v1757
      %v1759 = vpop.f32.mrf.mxu0
      %v1760 = vadd.f32 0.0, %v1759
      %1761 = vmatprep.mubr.bf16.mxu0 0
      %1762 = vmatmul.mubr.bf16.gmra.mxu0 %v573
      %v1763 = vpop.f32.mrf.mxu0
      %v1764 = vadd.f32 0.0, %v1763
      %v1765 = vpop.f32.mrf.mxu0
      %v1766 = vadd.f32 0.0, %v1765
      %v1767 = vpop.f32.mrf.mxu0
      %v1768 = vadd.f32 0.0, %v1767
      %v1769 = vpop.f32.mrf.mxu0
      %v1770 = vadd.f32 0.0, %v1769
      %1771 = vmatprep.mubr.bf16.mxu0 0
      %1772 = vmatmul.mubr.bf16.gmra.mxu0 %v576
      %v1773 = vpop.f32.mrf.mxu0
      %v1774 = vadd.f32 0.0, %v1773
      %v1775 = vpop.f32.mrf.mxu0
      %v1776 = vadd.f32 0.0, %v1775
      %v1777 = vpop.f32.mrf.mxu0
      %v1778 = vadd.f32 0.0, %v1777
      %v1779 = vpop.f32.mrf.mxu0
      %v1780 = vadd.f32 0.0, %v1779
      %1781 = vmatprep.mubr.bf16.mxu0 0
      %1782 = vmatmul.mubr.bf16.gmra.mxu0 %v579
      %v1783 = vpop.f32.mrf.mxu0
      %v1784 = vadd.f32 0.0, %v1783
      %v1785 = vpop.f32.mrf.mxu0
      %v1786 = vadd.f32 0.0, %v1785
      %v1787 = vpop.f32.mrf.mxu0
      %v1788 = vadd.f32 0.0, %v1787
      %v1789 = vpop.f32.mrf.mxu0
      %v1790 = vadd.f32 0.0, %v1789
      %1791 = vmatprep.mubr.bf16.mxu0 0
      %1792 = vmatmul.mubr.bf16.gmra.mxu0 %v582
      %v1793 = vpop.f32.mrf.mxu0
      %v1794 = vadd.f32 0.0, %v1793
      %v1795 = vpop.f32.mrf.mxu0
      %v1796 = vadd.f32 0.0, %v1795
      %v1797 = vpop.f32.mrf.mxu0
      %v1798 = vadd.f32 0.0, %v1797
      %v1799 = vpop.f32.mrf.mxu0
      %v1800 = vadd.f32 0.0, %v1799
      %1801 = vmatprep.mubr.bf16.mxu0 0
      %1802 = vmatmul.mubr.bf16.gmra.mxu0 %v585
      %v1803 = vpop.f32.mrf.mxu0
      %v1804 = vadd.f32 0.0, %v1803
      %v1805 = vpop.f32.mrf.mxu0
      %v1806 = vadd.f32 0.0, %v1805
      %v1807 = vpop.f32.mrf.mxu0
      %v1808 = vadd.f32 0.0, %v1807
      %v1809 = vpop.f32.mrf.mxu0
      %v1810 = vadd.f32 0.0, %v1809
      %1811 = vmatprep.mubr.bf16.mxu0 0
      %1812 = vmatmul.mubr.bf16.gmra.mxu0 %v588
      %v1813 = vpop.f32.mrf.mxu0
      %v1814 = vadd.f32 0.0, %v1813
      %v1815 = vpop.f32.mrf.mxu0
      %v1816 = vadd.f32 0.0, %v1815
      %v1817 = vpop.f32.mrf.mxu0
      %v1818 = vadd.f32 0.0, %v1817
      %v1819 = vpop.f32.mrf.mxu0
      %v1820 = vadd.f32 0.0, %v1819
      %1821 = vmatprep.mubr.bf16.mxu0 0
      %1822 = vmatmul.mubr.bf16.gmra.mxu0 %v591
      %v1823 = vpop.f32.mrf.mxu0
      %v1824 = vadd.f32 0.0, %v1823
      %v1825 = vpop.f32.mrf.mxu0
      %v1826 = vadd.f32 0.0, %v1825
      %v1827 = vpop.f32.mrf.mxu0
      %v1828 = vadd.f32 0.0, %v1827
      %v1829 = vpop.f32.mrf.mxu0
      %v1830 = vadd.f32 0.0, %v1829
      %1831 = vmatprep.mubr.bf16.mxu0 0
      %1832 = vmatmul.mubr.bf16.gmra.mxu0 %v594
      %v1833 = vpop.f32.mrf.mxu0
      %v1834 = vadd.f32 0.0, %v1833
      %v1835 = vpop.f32.mrf.mxu0
      %v1836 = vadd.f32 0.0, %v1835
      %v1837 = vpop.f32.mrf.mxu0
      %v1838 = vadd.f32 0.0, %v1837
      %v1839 = vpop.f32.mrf.mxu0
      %v1840 = vadd.f32 0.0, %v1839
      %1841 = vmatprep.mubr.bf16.mxu0 0
      %1842 = vmatmul.mubr.bf16.gmra.mxu0 %v597
      %v1843 = vpop.f32.mrf.mxu0
      %v1844 = vadd.f32 0.0, %v1843
      %v1845 = vpop.f32.mrf.mxu0
      %v1846 = vadd.f32 0.0, %v1845
      %v1847 = vpop.f32.mrf.mxu0
      %v1848 = vadd.f32 0.0, %v1847
      %v1849 = vpop.f32.mrf.mxu0
      %v1850 = vadd.f32 0.0, %v1849
      %1851 = vmatprep.mubr.bf16.mxu0 0
      %1852 = vmatmul.mubr.bf16.gmra.mxu0 %v600
      %v1853 = vpop.f32.mrf.mxu0
      %v1854 = vadd.f32 0.0, %v1853
      %v1855 = vpop.f32.mrf.mxu0
      %v1856 = vadd.f32 0.0, %v1855
      %v1857 = vpop.f32.mrf.mxu0
      %v1858 = vadd.f32 0.0, %v1857
      %v1859 = vpop.f32.mrf.mxu0
      %v1860 = vadd.f32 0.0, %v1859
      %1861 = vmatprep.mubr.bf16.mxu0 0
      %1862 = vmatmul.mubr.bf16.gmra.mxu0 %v603
      %v1863 = vpop.f32.mrf.mxu0
      %v1864 = vadd.f32 0.0, %v1863
      %v1865 = vpop.f32.mrf.mxu0
      %v1866 = vadd.f32 0.0, %v1865
      %v1867 = vpop.f32.mrf.mxu0
      %v1868 = vadd.f32 0.0, %v1867
      %v1869 = vpop.f32.mrf.mxu0
      %v1870 = vadd.f32 0.0, %v1869
      %1871 = vmatprep.mubr.bf16.mxu0 0
      %1872 = vmatmul.mubr.bf16.gmra.mxu0 %v606
      %v1873 = vpop.f32.mrf.mxu0
      %v1874 = vadd.f32 0.0, %v1873
      %v1875 = vpop.f32.mrf.mxu0
      %v1876 = vadd.f32 0.0, %v1875
      %v1877 = vpop.f32.mrf.mxu0
      %v1878 = vadd.f32 0.0, %v1877
      %v1879 = vpop.f32.mrf.mxu0
      %v1880 = vadd.f32 0.0, %v1879
      %1881 = vmatprep.mubr.bf16.mxu0 0
      %1882 = vmatmul.mubr.bf16.gmra.mxu0 %v609
      %v1883 = vpop.f32.mrf.mxu0
      %v1884 = vadd.f32 0.0, %v1883
      %v1885 = vpop.f32.mrf.mxu0
      %v1886 = vadd.f32 0.0, %v1885
      %v1887 = vpop.f32.mrf.mxu0
      %v1888 = vadd.f32 0.0, %v1887
      %v1889 = vpop.f32.mrf.mxu0
      %v1890 = vadd.f32 0.0, %v1889
      %1891 = vmatprep.mubr.bf16.mxu0 0
      %1892 = vmatmul.mubr.bf16.gmra.mxu0 %v1225
      %v1893 = vpop.f32.mrf.mxu0
      %v1894 = vadd.f32 0.0, %v1893
      %v1895 = vpop.f32.mrf.mxu0
      %v1896 = vadd.f32 0.0, %v1895
      %v1897 = vpop.f32.mrf.mxu0
      %v1898 = vadd.f32 0.0, %v1897
      %v1899 = vpop.f32.mrf.mxu0
      %v1900 = vadd.f32 0.0, %v1899
      %1901 = vmatprep.mubr.bf16.mxu0 0
      %1902 = vmatmul.mubr.bf16.gmra.mxu0 %v1631
      %v1903 = vpop.f32.mrf.mxu0
      %v1904 = vadd.f32 0.0, %v1903
      %v1905 = vpop.f32.mrf.mxu0
      %v1906 = vadd.f32 0.0, %v1905
      %v1907 = vpop.f32.mrf.mxu0
      %v1908 = vadd.f32 0.0, %v1907
      %v1909 = vpop.f32.mrf.mxu0
      %v1910 = vadd.f32 0.0, %v1909
      %1911 = vdwg.mxu0
      %v1912 = vadd.f32 %v1506, %v1674
      %v1913 = vadd.f32 %v1507, %v1676
      %v1914 = vadd.f32 %v1508, %v1678
      %v1915 = vadd.f32 %v1509, %v1680
      %v1916 = vadd.f32 %v1510, %v1684
      %v1917 = vadd.f32 %v1511, %v1686
      %v1918 = vadd.f32 %v1512, %v1688
      %v1919 = vadd.f32 %v1513, %v1690
      %v1920 = vadd.f32 %v1514, %v1694
      %v1921 = vadd.f32 %v1515, %v1696
      %v1922 = vadd.f32 %v1516, %v1698
      %v1923 = vadd.f32 %v1517, %v1700
      %v1924 = vadd.f32 %v1518, %v1704
      %v1925 = vadd.f32 %v1519, %v1706
      %v1926 = vadd.f32 %v1520, %v1708
      %v1927 = vadd.f32 %v1521, %v1710
      %v1928 = vadd.f32 %v1522, %v1714
      %v1929 = vadd.f32 %v1523, %v1716
      %v1930 = vadd.f32 %v1524, %v1718
      %v1931 = vadd.f32 %v1525, %v1720
      %v1932 = vadd.f32 %v1526, %v1724
      %v1933 = vadd.f32 %v1527, %v1726
      %v1934 = vadd.f32 %v1528, %v1728
      %v1935 = vadd.f32 %v1529, %v1730
      %v1936 = vadd.f32 %v1530, %v1734
      %v1937 = vadd.f32 %v1531, %v1736
      %v1938 = vadd.f32 %v1532, %v1738
      %v1939 = vadd.f32 %v1533, %v1740
      %v1940 = vadd.f32 %v1534, %v1744
      %v1941 = vadd.f32 %v1535, %v1746
      %v1942 = vadd.f32 %v1536, %v1748
      %v1943 = vadd.f32 %v1537, %v1750
      %v1944 = vadd.f32 %v1538, %v1754
      %v1945 = vadd.f32 %v1539, %v1756
      %v1946 = vadd.f32 %v1540, %v1758
      %v1947 = vadd.f32 %v1541, %v1760
      %v1948 = vadd.f32 %v1542, %v1764
      %v1949 = vadd.f32 %v1543, %v1766
      %v1950 = vadd.f32 %v1544, %v1768
      %v1951 = vadd.f32 %v1545, %v1770
      %v1952 = vadd.f32 %v1546, %v1774
      %v1953 = vadd.f32 %v1547, %v1776
      %v1954 = vadd.f32 %v1548, %v1778
      %v1955 = vadd.f32 %v1549, %v1780
      %v1956 = vadd.f32 %v1550, %v1784
      %v1957 = vadd.f32 %v1551, %v1786
      %v1958 = vadd.f32 %v1552, %v1788
      %v1959 = vadd.f32 %v1553, %v1790
      %v1960 = vadd.f32 %v1554, %v1794
      %v1961 = vadd.f32 %v1555, %v1796
      %v1962 = vadd.f32 %v1556, %v1798
      %v1963 = vadd.f32 %v1557, %v1800
      %v1964 = vadd.f32 %v1558, %v1804
      %v1965 = vadd.f32 %v1559, %v1806
      %v1966 = vadd.f32 %v1560, %v1808
      %v1967 = vadd.f32 %v1561, %v1810
      %v1968 = vadd.f32 %v1562, %v1814
      %v1969 = vadd.f32 %v1563, %v1816
      %v1970 = vadd.f32 %v1564, %v1818
      %v1971 = vadd.f32 %v1565, %v1820
      %v1972 = vadd.f32 %v1566, %v1824
      %v1973 = vadd.f32 %v1567, %v1826
      %v1974 = vadd.f32 %v1568, %v1828
      %v1975 = vadd.f32 %v1569, %v1830
      %v1976 = vadd.f32 %v1570, %v1834
      %v1977 = vadd.f32 %v1571, %v1836
      %v1978 = vadd.f32 %v1572, %v1838
      %v1979 = vadd.f32 %v1573, %v1840
      %v1980 = vadd.f32 %v1574, %v1844
      %v1981 = vadd.f32 %v1575, %v1846
      %v1982 = vadd.f32 %v1576, %v1848
      %v1983 = vadd.f32 %v1577, %v1850
      %v1984 = vadd.f32 %v1578, %v1854
      %v1985 = vadd.f32 %v1579, %v1856
      %v1986 = vadd.f32 %v1580, %v1858
      %v1987 = vadd.f32 %v1581, %v1860
      %v1988 = vadd.f32 %v1582, %v1864
      %v1989 = vadd.f32 %v1583, %v1866
      %v1990 = vadd.f32 %v1584, %v1868
      %v1991 = vadd.f32 %v1585, %v1870
      %v1992 = vadd.f32 %v1586, %v1874
      %v1993 = vadd.f32 %v1587, %v1876
      %v1994 = vadd.f32 %v1588, %v1878
      %v1995 = vadd.f32 %v1589, %v1880
      %v1996 = vadd.f32 %v1590, %v1884
      %v1997 = vadd.f32 %v1591, %v1886
      %v1998 = vadd.f32 %v1592, %v1888
      %v1999 = vadd.f32 %v1593, %v1890
      %v2000 = vadd.f32 %v1594, %v1894
      %v2001 = vadd.f32 %v1595, %v1896
      %v2002 = vadd.f32 %v1596, %v1898
      %v2003 = vadd.f32 %v1597, %v1900
      %v2004 = vadd.f32 %v1598, %v1904
      %v2005 = vadd.f32 %v1599, %v1906
      %v2006 = vadd.f32 %v1600, %v1908
      %v2007 = vadd.f32 %v1601, %v1910
      %s2008 = scalar_lea.vmem %s1, 128
      %v2009 = vld [vmem:[%s2008] sm:$0xff]
      %v2010 = vld [vmem:[%s2008 + $0x8] sm:$0xff]
      %v2011 = vld [vmem:[%s2008 + $0x10] sm:$0xff]
      %v2012 = vld [vmem:[%s2008 + $0x18] sm:$0x33]
      %v2015 = vunpack.c.l.b16 %v389
      %v2016 = vunpack.c.l.b16 %v390
      %v2017 = vpack.c.b16 %v2016, %v2015
      %v2022 = vunpack.c.l.b16 %v2009
      %v2023 = vunpack.c.h.b16 %v2009
      %v2024 = vunpack.c.l.b16 %v2010
      %v2025 = vunpack.c.h.b16 %v2010
      %v2026 = vunpack.c.l.b16 %v2011
      %v2027 = vunpack.c.h.b16 %v2011
      %v2028 = vunpack.c.l.b16 %v2012
      %v2029 = vunpack.c.h.b16 %v2012
      %v2030 = vpack.c.b16 %v2024, %v2022
      %v2031 = vpack.c.b16 %v2025, %v2023
      %v2032 = vpack.c.b16 %v2028, %v2026
      %v2033 = vpack.c.b16 %v2029, %v2027
      %v2037 = vsel %vm538, %v2017, 0
      %v2040 = vsel %vm611, %v2032, 0
      %v2043 = vsel %vm611, %v2033, 0
      %2045 = vmatprep.subr.bf16.mxu0 0
      %2046 = vmatpush1.bf16.msra.mxu0 0
      %2047 = vmatprep.subr.bf16.mxu0 0
      %2048 = vmatpush1.bf16.msra.mxu0 0
      %2049 = vmatprep.subr.bf16.mxu0 0
      %2050 = vmatpush1.bf16.msra.mxu0 0
      %2051 = vmatprep.subr.bf16.mxu0 0
      %2052 = vmatpush1.bf16.msra.mxu0 0
      %2053 = vmatprep.subr.bf16.mxu0 0
      %2054 = vmatpush1.bf16.msra.mxu0 0
      %2055 = vmatprep.subr.bf16.mxu0 0
      %2056 = vmatpush1.bf16.msra.mxu0 0
      %2057 = vmatprep.subr.bf16.mxu0 %v2043
      %2058 = vmatpush1.bf16.msra.mxu0 %v2040
      %2059 = vmatprep.subr.bf16.mxu0 %v2031
      %2060 = vmatpush1.bf16.msra.mxu0 %v2030
      %2061 = vmatprep.subr.bf16.mxu0 0
      %2062 = vmatpush2.bf16.msra.mxu0 0
      %2063 = vmatprep.subr.bf16.mxu0 0
      %2064 = vmatpush2.bf16.msra.mxu0 0
      %2065 = vmatprep.subr.bf16.mxu0 0
      %2066 = vmatpush2.bf16.msra.mxu0 0
      %2067 = vmatprep.subr.bf16.mxu0 0
      %2068 = vmatpush2.bf16.msra.mxu0 0
      %2069 = vmatprep.subr.bf16.mxu0 0
      %2070 = vmatpush2.bf16.msra.mxu0 0
      %2071 = vmatprep.subr.bf16.mxu0 0
      %2072 = vmatpush2.bf16.msra.mxu0 0
      %2073 = vmatprep.subr.bf16.mxu0 0
      %2074 = vmatpush2.bf16.msra.mxu0 0
      %2075 = vmatprep.subr.bf16.mxu0 0
      %2076 = vmatpush2.bf16.msra.mxu0 0
      %2077 = vmatprep.mubr.bf16.mxu0 0
      %2078 = vmatmul.mubr.bf16.gmra.mxu0 %v549
      %v2079 = vpop.f32.mrf.mxu0
      %v2080 = vadd.f32 0.0, %v2079
      %v2081 = vpop.f32.mrf.mxu0
      %v2082 = vadd.f32 0.0, %v2081
      %v2083 = vpop.f32.mrf.mxu0
      %v2084 = vadd.f32 0.0, %v2083
      %v2085 = vpop.f32.mrf.mxu0
      %v2086 = vadd.f32 0.0, %v2085
      %2087 = vmatprep.mubr.bf16.mxu0 0
      %2088 = vmatmul.mubr.bf16.gmra.mxu0 %v552
      %v2089 = vpop.f32.mrf.mxu0
      %v2090 = vadd.f32 0.0, %v2089
      %v2091 = vpop.f32.mrf.mxu0
      %v2092 = vadd.f32 0.0, %v2091
      %v2093 = vpop.f32.mrf.mxu0
      %v2094 = vadd.f32 0.0, %v2093
      %v2095 = vpop.f32.mrf.mxu0
      %v2096 = vadd.f32 0.0, %v2095
      %2097 = vmatprep.mubr.bf16.mxu0 0
      %2098 = vmatmul.mubr.bf16.gmra.mxu0 %v555
      %v2099 = vpop.f32.mrf.mxu0
      %v2100 = vadd.f32 0.0, %v2099
      %v2101 = vpop.f32.mrf.mxu0
      %v2102 = vadd.f32 0.0, %v2101
      %v2103 = vpop.f32.mrf.mxu0
      %v2104 = vadd.f32 0.0, %v2103
      %v2105 = vpop.f32.mrf.mxu0
      %v2106 = vadd.f32 0.0, %v2105
      %2107 = vmatprep.mubr.bf16.mxu0 0
      %2108 = vmatmul.mubr.bf16.gmra.mxu0 %v558
      %v2109 = vpop.f32.mrf.mxu0
      %v2110 = vadd.f32 0.0, %v2109
      %v2111 = vpop.f32.mrf.mxu0
      %v2112 = vadd.f32 0.0, %v2111
      %v2113 = vpop.f32.mrf.mxu0
      %v2114 = vadd.f32 0.0, %v2113
      %v2115 = vpop.f32.mrf.mxu0
      %v2116 = vadd.f32 0.0, %v2115
      %2117 = vmatprep.mubr.bf16.mxu0 0
      %2118 = vmatmul.mubr.bf16.gmra.mxu0 %v561
      %v2119 = vpop.f32.mrf.mxu0
      %v2120 = vadd.f32 0.0, %v2119
      %v2121 = vpop.f32.mrf.mxu0
      %v2122 = vadd.f32 0.0, %v2121
      %v2123 = vpop.f32.mrf.mxu0
      %v2124 = vadd.f32 0.0, %v2123
      %v2125 = vpop.f32.mrf.mxu0
      %v2126 = vadd.f32 0.0, %v2125
      %2127 = vmatprep.mubr.bf16.mxu0 0
      %2128 = vmatmul.mubr.bf16.gmra.mxu0 %v564
      %v2129 = vpop.f32.mrf.mxu0
      %v2130 = vadd.f32 0.0, %v2129
      %v2131 = vpop.f32.mrf.mxu0
      %v2132 = vadd.f32 0.0, %v2131
      %v2133 = vpop.f32.mrf.mxu0
      %v2134 = vadd.f32 0.0, %v2133
      %v2135 = vpop.f32.mrf.mxu0
      %v2136 = vadd.f32 0.0, %v2135
      %2137 = vmatprep.mubr.bf16.mxu0 0
      %2138 = vmatmul.mubr.bf16.gmra.mxu0 %v567
      %v2139 = vpop.f32.mrf.mxu0
      %v2140 = vadd.f32 0.0, %v2139
      %v2141 = vpop.f32.mrf.mxu0
      %v2142 = vadd.f32 0.0, %v2141
      %v2143 = vpop.f32.mrf.mxu0
      %v2144 = vadd.f32 0.0, %v2143
      %v2145 = vpop.f32.mrf.mxu0
      %v2146 = vadd.f32 0.0, %v2145
      %2147 = vmatprep.mubr.bf16.mxu0 0
      %2148 = vmatmul.mubr.bf16.gmra.mxu0 %v570
      %v2149 = vpop.f32.mrf.mxu0
      %v2150 = vadd.f32 0.0, %v2149
      %v2151 = vpop.f32.mrf.mxu0
      %v2152 = vadd.f32 0.0, %v2151
      %v2153 = vpop.f32.mrf.mxu0
      %v2154 = vadd.f32 0.0, %v2153
      %v2155 = vpop.f32.mrf.mxu0
      %v2156 = vadd.f32 0.0, %v2155
      %2157 = vmatprep.mubr.bf16.mxu0 0
      %2158 = vmatmul.mubr.bf16.gmra.mxu0 %v573
      %v2159 = vpop.f32.mrf.mxu0
      %v2160 = vadd.f32 0.0, %v2159
      %v2161 = vpop.f32.mrf.mxu0
      %v2162 = vadd.f32 0.0, %v2161
      %v2163 = vpop.f32.mrf.mxu0
      %v2164 = vadd.f32 0.0, %v2163
      %v2165 = vpop.f32.mrf.mxu0
      %v2166 = vadd.f32 0.0, %v2165
      %2167 = vmatprep.mubr.bf16.mxu0 0
      %2168 = vmatmul.mubr.bf16.gmra.mxu0 %v576
      %v2169 = vpop.f32.mrf.mxu0
      %v2170 = vadd.f32 0.0, %v2169
      %v2171 = vpop.f32.mrf.mxu0
      %v2172 = vadd.f32 0.0, %v2171
      %v2173 = vpop.f32.mrf.mxu0
      %v2174 = vadd.f32 0.0, %v2173
      %v2175 = vpop.f32.mrf.mxu0
      %v2176 = vadd.f32 0.0, %v2175
      %2177 = vmatprep.mubr.bf16.mxu0 0
      %2178 = vmatmul.mubr.bf16.gmra.mxu0 %v579
      %v2179 = vpop.f32.mrf.mxu0
      %v2180 = vadd.f32 0.0, %v2179
      %v2181 = vpop.f32.mrf.mxu0
      %v2182 = vadd.f32 0.0, %v2181
      %v2183 = vpop.f32.mrf.mxu0
      %v2184 = vadd.f32 0.0, %v2183
      %v2185 = vpop.f32.mrf.mxu0
      %v2186 = vadd.f32 0.0, %v2185
      %2187 = vmatprep.mubr.bf16.mxu0 0
      %2188 = vmatmul.mubr.bf16.gmra.mxu0 %v582
      %v2189 = vpop.f32.mrf.mxu0
      %v2190 = vadd.f32 0.0, %v2189
      %v2191 = vpop.f32.mrf.mxu0
      %v2192 = vadd.f32 0.0, %v2191
      %v2193 = vpop.f32.mrf.mxu0
      %v2194 = vadd.f32 0.0, %v2193
      %v2195 = vpop.f32.mrf.mxu0
      %v2196 = vadd.f32 0.0, %v2195
      %2197 = vmatprep.mubr.bf16.mxu0 0
      %2198 = vmatmul.mubr.bf16.gmra.mxu0 %v585
      %v2199 = vpop.f32.mrf.mxu0
      %v2200 = vadd.f32 0.0, %v2199
      %v2201 = vpop.f32.mrf.mxu0
      %v2202 = vadd.f32 0.0, %v2201
      %v2203 = vpop.f32.mrf.mxu0
      %v2204 = vadd.f32 0.0, %v2203
      %v2205 = vpop.f32.mrf.mxu0
      %v2206 = vadd.f32 0.0, %v2205
      %2207 = vmatprep.mubr.bf16.mxu0 0
      %2208 = vmatmul.mubr.bf16.gmra.mxu0 %v588
      %v2209 = vpop.f32.mrf.mxu0
      %v2210 = vadd.f32 0.0, %v2209
      %v2211 = vpop.f32.mrf.mxu0
      %v2212 = vadd.f32 0.0, %v2211
      %v2213 = vpop.f32.mrf.mxu0
      %v2214 = vadd.f32 0.0, %v2213
      %v2215 = vpop.f32.mrf.mxu0
      %v2216 = vadd.f32 0.0, %v2215
      %2217 = vmatprep.mubr.bf16.mxu0 0
      %2218 = vmatmul.mubr.bf16.gmra.mxu0 %v591
      %v2219 = vpop.f32.mrf.mxu0
      %v2220 = vadd.f32 0.0, %v2219
      %v2221 = vpop.f32.mrf.mxu0
      %v2222 = vadd.f32 0.0, %v2221
      %v2223 = vpop.f32.mrf.mxu0
      %v2224 = vadd.f32 0.0, %v2223
      %v2225 = vpop.f32.mrf.mxu0
      %v2226 = vadd.f32 0.0, %v2225
      %2227 = vmatprep.mubr.bf16.mxu0 0
      %2228 = vmatmul.mubr.bf16.gmra.mxu0 %v594
      %v2229 = vpop.f32.mrf.mxu0
      %v2230 = vadd.f32 0.0, %v2229
      %v2231 = vpop.f32.mrf.mxu0
      %v2232 = vadd.f32 0.0, %v2231
      %v2233 = vpop.f32.mrf.mxu0
      %v2234 = vadd.f32 0.0, %v2233
      %v2235 = vpop.f32.mrf.mxu0
      %v2236 = vadd.f32 0.0, %v2235
      %2237 = vmatprep.mubr.bf16.mxu0 0
      %2238 = vmatmul.mubr.bf16.gmra.mxu0 %v597
      %v2239 = vpop.f32.mrf.mxu0
      %v2240 = vadd.f32 0.0, %v2239
      %v2241 = vpop.f32.mrf.mxu0
      %v2242 = vadd.f32 0.0, %v2241
      %v2243 = vpop.f32.mrf.mxu0
      %v2244 = vadd.f32 0.0, %v2243
      %v2245 = vpop.f32.mrf.mxu0
      %v2246 = vadd.f32 0.0, %v2245
      %2247 = vmatprep.mubr.bf16.mxu0 0
      %2248 = vmatmul.mubr.bf16.gmra.mxu0 %v600
      %v2249 = vpop.f32.mrf.mxu0
      %v2250 = vadd.f32 0.0, %v2249
      %v2251 = vpop.f32.mrf.mxu0
      %v2252 = vadd.f32 0.0, %v2251
      %v2253 = vpop.f32.mrf.mxu0
      %v2254 = vadd.f32 0.0, %v2253
      %v2255 = vpop.f32.mrf.mxu0
      %v2256 = vadd.f32 0.0, %v2255
      %2257 = vmatprep.mubr.bf16.mxu0 0
      %2258 = vmatmul.mubr.bf16.gmra.mxu0 %v603
      %v2259 = vpop.f32.mrf.mxu0
      %v2260 = vadd.f32 0.0, %v2259
      %v2261 = vpop.f32.mrf.mxu0
      %v2262 = vadd.f32 0.0, %v2261
      %v2263 = vpop.f32.mrf.mxu0
      %v2264 = vadd.f32 0.0, %v2263
      %v2265 = vpop.f32.mrf.mxu0
      %v2266 = vadd.f32 0.0, %v2265
      %2267 = vmatprep.mubr.bf16.mxu0 0
      %2268 = vmatmul.mubr.bf16.gmra.mxu0 %v606
      %v2269 = vpop.f32.mrf.mxu0
      %v2270 = vadd.f32 0.0, %v2269
      %v2271 = vpop.f32.mrf.mxu0
      %v2272 = vadd.f32 0.0, %v2271
      %v2273 = vpop.f32.mrf.mxu0
      %v2274 = vadd.f32 0.0, %v2273
      %v2275 = vpop.f32.mrf.mxu0
      %v2276 = vadd.f32 0.0, %v2275
      %2277 = vmatprep.mubr.bf16.mxu0 0
      %2278 = vmatmul.mubr.bf16.gmra.mxu0 %v609
      %v2279 = vpop.f32.mrf.mxu0
      %v2280 = vadd.f32 0.0, %v2279
      %v2281 = vpop.f32.mrf.mxu0
      %v2282 = vadd.f32 0.0, %v2281
      %v2283 = vpop.f32.mrf.mxu0
      %v2284 = vadd.f32 0.0, %v2283
      %v2285 = vpop.f32.mrf.mxu0
      %v2286 = vadd.f32 0.0, %v2285
      %2287 = vmatprep.mubr.bf16.mxu0 0
      %2288 = vmatmul.mubr.bf16.gmra.mxu0 %v1225
      %v2289 = vpop.f32.mrf.mxu0
      %v2290 = vadd.f32 0.0, %v2289
      %v2291 = vpop.f32.mrf.mxu0
      %v2292 = vadd.f32 0.0, %v2291
      %v2293 = vpop.f32.mrf.mxu0
      %v2294 = vadd.f32 0.0, %v2293
      %v2295 = vpop.f32.mrf.mxu0
      %v2296 = vadd.f32 0.0, %v2295
      %2297 = vmatprep.mubr.bf16.mxu0 0
      %2298 = vmatmul.mubr.bf16.gmra.mxu0 %v1631
      %v2299 = vpop.f32.mrf.mxu0
      %v2300 = vadd.f32 0.0, %v2299
      %v2301 = vpop.f32.mrf.mxu0
      %v2302 = vadd.f32 0.0, %v2301
      %v2303 = vpop.f32.mrf.mxu0
      %v2304 = vadd.f32 0.0, %v2303
      %v2305 = vpop.f32.mrf.mxu0
      %v2306 = vadd.f32 0.0, %v2305
      %2307 = vmatprep.mubr.bf16.mxu0 0
      %2308 = vmatmul.mubr.bf16.gmra.mxu0 %v2037
      %v2309 = vpop.f32.mrf.mxu0
      %v2310 = vadd.f32 0.0, %v2309
      %v2311 = vpop.f32.mrf.mxu0
      %v2312 = vadd.f32 0.0, %v2311
      %v2313 = vpop.f32.mrf.mxu0
      %v2314 = vadd.f32 0.0, %v2313
      %v2315 = vpop.f32.mrf.mxu0
      %v2316 = vadd.f32 0.0, %v2315
      %2317 = vdwg.mxu0
      %v2318 = vadd.f32 %v1912, %v2080
      %v2319 = vadd.f32 %v1913, %v2082
      %v2320 = vadd.f32 %v1914, %v2084
      %v2321 = vadd.f32 %v1915, %v2086
      %v2322 = vadd.f32 %v1916, %v2090
      %v2323 = vadd.f32 %v1917, %v2092
      %v2324 = vadd.f32 %v1918, %v2094
      %v2325 = vadd.f32 %v1919, %v2096
      %v2326 = vadd.f32 %v1920, %v2100
      %v2327 = vadd.f32 %v1921, %v2102
      %v2328 = vadd.f32 %v1922, %v2104
      %v2329 = vadd.f32 %v1923, %v2106
      %v2330 = vadd.f32 %v1924, %v2110
      %v2331 = vadd.f32 %v1925, %v2112
      %v2332 = vadd.f32 %v1926, %v2114
      %v2333 = vadd.f32 %v1927, %v2116
      %v2334 = vadd.f32 %v1928, %v2120
      %v2335 = vadd.f32 %v1929, %v2122
      %v2336 = vadd.f32 %v1930, %v2124
      %v2337 = vadd.f32 %v1931, %v2126
      %v2338 = vadd.f32 %v1932, %v2130
      %v2339 = vadd.f32 %v1933, %v2132
      %v2340 = vadd.f32 %v1934, %v2134
      %v2341 = vadd.f32 %v1935, %v2136
      %v2342 = vadd.f32 %v1936, %v2140
      %v2343 = vadd.f32 %v1937, %v2142
      %v2344 = vadd.f32 %v1938, %v2144
      %v2345 = vadd.f32 %v1939, %v2146
      %v2346 = vadd.f32 %v1940, %v2150
      %v2347 = vadd.f32 %v1941, %v2152
      %v2348 = vadd.f32 %v1942, %v2154
      %v2349 = vadd.f32 %v1943, %v2156
      %v2350 = vadd.f32 %v1944, %v2160
      %v2351 = vadd.f32 %v1945, %v2162
      %v2352 = vadd.f32 %v1946, %v2164
      %v2353 = vadd.f32 %v1947, %v2166
      %v2354 = vadd.f32 %v1948, %v2170
      %v2355 = vadd.f32 %v1949, %v2172
      %v2356 = vadd.f32 %v1950, %v2174
      %v2357 = vadd.f32 %v1951, %v2176
      %v2358 = vadd.f32 %v1952, %v2180
      %v2359 = vadd.f32 %v1953, %v2182
      %v2360 = vadd.f32 %v1954, %v2184
      %v2361 = vadd.f32 %v1955, %v2186
      %v2362 = vadd.f32 %v1956, %v2190
      %v2363 = vadd.f32 %v1957, %v2192
      %v2364 = vadd.f32 %v1958, %v2194
      %v2365 = vadd.f32 %v1959, %v2196
      %v2366 = vadd.f32 %v1960, %v2200
      %v2367 = vadd.f32 %v1961, %v2202
      %v2368 = vadd.f32 %v1962, %v2204
      %v2369 = vadd.f32 %v1963, %v2206
      %v2370 = vadd.f32 %v1964, %v2210
      %v2371 = vadd.f32 %v1965, %v2212
      %v2372 = vadd.f32 %v1966, %v2214
      %v2373 = vadd.f32 %v1967, %v2216
      %v2374 = vadd.f32 %v1968, %v2220
      %v2375 = vadd.f32 %v1969, %v2222
      %v2376 = vadd.f32 %v1970, %v2224
      %v2377 = vadd.f32 %v1971, %v2226
      %v2378 = vadd.f32 %v1972, %v2230
      %v2379 = vadd.f32 %v1973, %v2232
      %v2380 = vadd.f32 %v1974, %v2234
      %v2381 = vadd.f32 %v1975, %v2236
      %v2382 = vadd.f32 %v1976, %v2240
      %v2383 = vadd.f32 %v1977, %v2242
      %v2384 = vadd.f32 %v1978, %v2244
      %v2385 = vadd.f32 %v1979, %v2246
      %v2386 = vadd.f32 %v1980, %v2250
      %v2387 = vadd.f32 %v1981, %v2252
      %v2388 = vadd.f32 %v1982, %v2254
      %v2389 = vadd.f32 %v1983, %v2256
      %v2390 = vadd.f32 %v1984, %v2260
      %v2391 = vadd.f32 %v1985, %v2262
      %v2392 = vadd.f32 %v1986, %v2264
      %v2393 = vadd.f32 %v1987, %v2266
      %v2394 = vadd.f32 %v1988, %v2270
      %v2395 = vadd.f32 %v1989, %v2272
      %v2396 = vadd.f32 %v1990, %v2274
      %v2397 = vadd.f32 %v1991, %v2276
      %v2398 = vadd.f32 %v1992, %v2280
      %v2399 = vadd.f32 %v1993, %v2282
      %v2400 = vadd.f32 %v1994, %v2284
      %v2401 = vadd.f32 %v1995, %v2286
      %v2402 = vadd.f32 %v1996, %v2290
      %v2403 = vadd.f32 %v1997, %v2292
      %v2404 = vadd.f32 %v1998, %v2294
      %v2405 = vadd.f32 %v1999, %v2296
      %v2406 = vadd.f32 %v2000, %v2300
      %v2407 = vadd.f32 %v2001, %v2302
      %v2408 = vadd.f32 %v2002, %v2304
      %v2409 = vadd.f32 %v2003, %v2306
      %v2410 = vadd.f32 %v2004, %v2310
      %v2411 = vadd.f32 %v2005, %v2312
      %v2412 = vadd.f32 %v2006, %v2314
      %v2413 = vadd.f32 %v2007, %v2316
      %v2414 = vmax.f32 %v2318, %v2322
      %v2415 = vmax.f32 %v2319, %v2323
      %v2416 = vmax.f32 %v2320, %v2324
      %v2417 = vmax.f32 %v2321, %v2325
      %v2418 = vmax.f32 %v2326, %v2330
      %v2419 = vmax.f32 %v2327, %v2331
      %v2420 = vmax.f32 %v2328, %v2332
      %v2421 = vmax.f32 %v2329, %v2333
      %v2422 = vmax.f32 %v2334, %v2338
      %v2423 = vmax.f32 %v2335, %v2339
      %v2424 = vmax.f32 %v2336, %v2340
      %v2425 = vmax.f32 %v2337, %v2341
      %v2426 = vmax.f32 %v2342, %v2346
      %v2427 = vmax.f32 %v2343, %v2347
      %v2428 = vmax.f32 %v2344, %v2348
      %v2429 = vmax.f32 %v2345, %v2349
      %v2430 = vmax.f32 %v2350, %v2354
      %v2431 = vmax.f32 %v2351, %v2355
      %v2432 = vmax.f32 %v2352, %v2356
      %v2433 = vmax.f32 %v2353, %v2357
      %v2434 = vmax.f32 %v2358, %v2362
      %v2435 = vmax.f32 %v2359, %v2363
      %v2436 = vmax.f32 %v2360, %v2364
      %v2437 = vmax.f32 %v2361, %v2365
      %v2438 = vmax.f32 %v2366, %v2370
      %v2439 = vmax.f32 %v2367, %v2371
      %v2440 = vmax.f32 %v2368, %v2372
      %v2441 = vmax.f32 %v2369, %v2373
      %v2442 = vmax.f32 %v2374, %v2378
      %v2443 = vmax.f32 %v2375, %v2379
      %v2444 = vmax.f32 %v2376, %v2380
      %v2445 = vmax.f32 %v2377, %v2381
      %v2446 = vmax.f32 %v2382, %v2386
      %v2447 = vmax.f32 %v2383, %v2387
      %v2448 = vmax.f32 %v2384, %v2388
      %v2449 = vmax.f32 %v2385, %v2389
      %v2450 = vmax.f32 %v2390, %v2394
      %v2451 = vmax.f32 %v2391, %v2395
      %v2452 = vmax.f32 %v2392, %v2396
      %v2453 = vmax.f32 %v2393, %v2397
      %v2454 = vmax.f32 %v2398, %v2402
      %v2455 = vmax.f32 %v2399, %v2403
      %v2456 = vmax.f32 %v2400, %v2404
      %v2457 = vmax.f32 %v2401, %v2405
      %v2458 = vmax.f32 %v2406, %v2410
      %v2459 = vmax.f32 %v2407, %v2411
      %v2460 = vmax.f32 %v2408, %v2412
      %v2461 = vmax.f32 %v2409, %v2413
      %2510 = vrot.lane.b32.xlu0 %v2414, 8
      %v2511 = vpop.permute.xlu0 %2510
      %2512 = vrot.lane.b32.xlu0 %v2415, 8
      %v2513 = vpop.permute.xlu0 %2512
      %2514 = vrot.lane.b32.xlu0 %v2416, 8
      %v2515 = vpop.permute.xlu0 %2514
      %2516 = vrot.lane.b32.xlu0 %v2417, 8
      %v2517 = vpop.permute.xlu0 %2516
      %2518 = vrot.lane.b32.xlu0 %v2418, 8
      %v2519 = vpop.permute.xlu0 %2518
      %2520 = vrot.lane.b32.xlu0 %v2419, 8
      %v2521 = vpop.permute.xlu0 %2520
      %2522 = vrot.lane.b32.xlu0 %v2420, 8
      %v2523 = vpop.permute.xlu0 %2522
      %2524 = vrot.lane.b32.xlu0 %v2421, 8
      %v2525 = vpop.permute.xlu0 %2524
      %2526 = vrot.lane.b32.xlu0 %v2422, 8
      %v2527 = vpop.permute.xlu0 %2526
      %2528 = vrot.lane.b32.xlu0 %v2423, 8
      %v2529 = vpop.permute.xlu0 %2528
      %2530 = vrot.lane.b32.xlu0 %v2424, 8
      %v2531 = vpop.permute.xlu0 %2530
      %2532 = vrot.lane.b32.xlu0 %v2425, 8
      %v2533 = vpop.permute.xlu0 %2532
      %2534 = vrot.lane.b32.xlu0 %v2426, 8
      %v2535 = vpop.permute.xlu0 %2534
      %2536 = vrot.lane.b32.xlu0 %v2427, 8
      %v2537 = vpop.permute.xlu0 %2536
      %2538 = vrot.lane.b32.xlu0 %v2428, 8
      %v2539 = vpop.permute.xlu0 %2538
      %2540 = vrot.lane.b32.xlu0 %v2429, 8
      %v2541 = vpop.permute.xlu0 %2540
      %2542 = vrot.lane.b32.xlu0 %v2430, 8
      %v2543 = vpop.permute.xlu0 %2542
      %2544 = vrot.lane.b32.xlu0 %v2431, 8
      %v2545 = vpop.permute.xlu0 %2544
      %2546 = vrot.lane.b32.xlu0 %v2432, 8
      %v2547 = vpop.permute.xlu0 %2546
      %2548 = vrot.lane.b32.xlu0 %v2433, 8
      %v2549 = vpop.permute.xlu0 %2548
      %2550 = vrot.lane.b32.xlu0 %v2434, 8
      %v2551 = vpop.permute.xlu0 %2550
      %2552 = vrot.lane.b32.xlu0 %v2435, 8
      %v2553 = vpop.permute.xlu0 %2552
      %2554 = vrot.lane.b32.xlu0 %v2436, 8
      %v2555 = vpop.permute.xlu0 %2554
      %2556 = vrot.lane.b32.xlu0 %v2437, 8
      %v2557 = vpop.permute.xlu0 %2556
      %2558 = vrot.lane.b32.xlu0 %v2438, 8
      %v2559 = vpop.permute.xlu0 %2558
      %2560 = vrot.lane.b32.xlu0 %v2439, 8
      %v2561 = vpop.permute.xlu0 %2560
      %2562 = vrot.lane.b32.xlu0 %v2440, 8
      %v2563 = vpop.permute.xlu0 %2562
      %2564 = vrot.lane.b32.xlu0 %v2441, 8
      %v2565 = vpop.permute.xlu0 %2564
      %2566 = vrot.lane.b32.xlu0 %v2442, 8
      %v2567 = vpop.permute.xlu0 %2566
      %2568 = vrot.lane.b32.xlu0 %v2443, 8
      %v2569 = vpop.permute.xlu0 %2568
      %2570 = vrot.lane.b32.xlu0 %v2444, 8
      %v2571 = vpop.permute.xlu0 %2570
      %2572 = vrot.lane.b32.xlu0 %v2445, 8
      %v2573 = vpop.permute.xlu0 %2572
      %2574 = vrot.lane.b32.xlu0 %v2446, 8
      %v2575 = vpop.permute.xlu0 %2574
      %2576 = vrot.lane.b32.xlu0 %v2447, 8
      %v2577 = vpop.permute.xlu0 %2576
      %2578 = vrot.lane.b32.xlu0 %v2448, 8
      %v2579 = vpop.permute.xlu0 %2578
      %2580 = vrot.lane.b32.xlu0 %v2449, 8
      %v2581 = vpop.permute.xlu0 %2580
      %2582 = vrot.lane.b32.xlu0 %v2450, 8
      %v2583 = vpop.permute.xlu0 %2582
      %2584 = vrot.lane.b32.xlu0 %v2451, 8
      %v2585 = vpop.permute.xlu0 %2584
      %2586 = vrot.lane.b32.xlu0 %v2452, 8
      %v2587 = vpop.permute.xlu0 %2586
      %2588 = vrot.lane.b32.xlu0 %v2453, 8
      %v2589 = vpop.permute.xlu0 %2588
      %2590 = vrot.lane.b32.xlu0 %v2454, 8
      %v2591 = vpop.permute.xlu0 %2590
      %2592 = vrot.lane.b32.xlu0 %v2455, 8
      %v2593 = vpop.permute.xlu0 %2592
      %2594 = vrot.lane.b32.xlu0 %v2456, 8
      %v2595 = vpop.permute.xlu0 %2594
      %2596 = vrot.lane.b32.xlu0 %v2457, 8
      %v2597 = vpop.permute.xlu0 %2596
      %2598 = vrot.lane.b32.xlu0 %v2458, 8
      %v2599 = vpop.permute.xlu0 %2598
      %2600 = vrot.lane.b32.xlu0 %v2459, 8
      %v2601 = vpop.permute.xlu0 %2600
      %2602 = vrot.lane.b32.xlu0 %v2460, 8
      %v2603 = vpop.permute.xlu0 %2602
      %2604 = vrot.lane.b32.xlu0 %v2461, 8
      %v2605 = vpop.permute.xlu0 %2604
      %vm2606 = vcmask 64512
      %v2607 = vsel %vm2606, %v2511, %v2513
      %v2608 = vsel %vm2606, %v2515, %v2517
      %v2609 = vsel %vm2606, %v2519, %v2521
      %v2610 = vsel %vm2606, %v2523, %v2525
      %v2611 = vsel %vm2606, %v2527, %v2529
      %v2612 = vsel %vm2606, %v2531, %v2533
      %v2613 = vsel %vm2606, %v2535, %v2537
      %v2614 = vsel %vm2606, %v2539, %v2541
      %v2615 = vsel %vm2606, %v2543, %v2545
      %v2616 = vsel %vm2606, %v2547, %v2549
      %v2617 = vsel %vm2606, %v2551, %v2553
      %v2618 = vsel %vm2606, %v2555, %v2557
      %v2619 = vsel %vm2606, %v2559, %v2561
      %v2620 = vsel %vm2606, %v2563, %v2565
      %v2621 = vsel %vm2606, %v2567, %v2569
      %v2622 = vsel %vm2606, %v2571, %v2573
      %v2623 = vsel %vm2606, %v2575, %v2577
      %v2624 = vsel %vm2606, %v2579, %v2581
      %v2625 = vsel %vm2606, %v2583, %v2585
      %v2626 = vsel %vm2606, %v2587, %v2589
      %v2627 = vsel %vm2606, %v2591, %v2593
      %v2628 = vsel %vm2606, %v2595, %v2597
      %v2629 = vsel %vm2606, %v2599, %v2601
      %v2630 = vsel %vm2606, %v2603, %v2605
      %v2655 = vmax.f32 %v2414, %v2607
      %v2656 = vmax.f32 %v2416, %v2608
      %v2657 = vmax.f32 %v2418, %v2609
      %v2658 = vmax.f32 %v2420, %v2610
      %v2659 = vmax.f32 %v2422, %v2611
      %v2660 = vmax.f32 %v2424, %v2612
      %v2661 = vmax.f32 %v2426, %v2613
      %v2662 = vmax.f32 %v2428, %v2614
      %v2663 = vmax.f32 %v2430, %v2615
      %v2664 = vmax.f32 %v2432, %v2616
      %v2665 = vmax.f32 %v2434, %v2617
      %v2666 = vmax.f32 %v2436, %v2618
      %v2667 = vmax.f32 %v2438, %v2619
      %v2668 = vmax.f32 %v2440, %v2620
      %v2669 = vmax.f32 %v2442, %v2621
      %v2670 = vmax.f32 %v2444, %v2622
      %v2671 = vmax.f32 %v2446, %v2623
      %v2672 = vmax.f32 %v2448, %v2624
      %v2673 = vmax.f32 %v2450, %v2625
      %v2674 = vmax.f32 %v2452, %v2626
      %v2675 = vmax.f32 %v2454, %v2627
      %v2676 = vmax.f32 %v2456, %v2628
      %v2677 = vmax.f32 %v2458, %v2629
      %v2678 = vmax.f32 %v2460, %v2630
      %v2679 = vld [vmem:[%s2] sm:$0x1]
      %v2681 = vlaneseq
      %v2682 = vshrl.u32 %v2681, 7
      %v2683 = vsub.s32 0, %v2682
      %v2684 = vrot.slane %v2679, %v2683
      %v2686 = vadd.f32 %v2655, %v2684
      %v2687 = vadd.f32 %v2656, %v2684
      %v2688 = vadd.f32 %v2657, %v2684
      %v2689 = vadd.f32 %v2658, %v2684
      %v2690 = vadd.f32 %v2659, %v2684
      %v2691 = vadd.f32 %v2660, %v2684
      %v2692 = vadd.f32 %v2661, %v2684
      %v2693 = vadd.f32 %v2662, %v2684
      %v2694 = vadd.f32 %v2663, %v2684
      %v2695 = vadd.f32 %v2664, %v2684
      %v2696 = vadd.f32 %v2665, %v2684
      %v2697 = vadd.f32 %v2666, %v2684
      %v2698 = vadd.f32 %v2667, %v2684
      %v2699 = vadd.f32 %v2668, %v2684
      %v2700 = vadd.f32 %v2669, %v2684
      %v2701 = vadd.f32 %v2670, %v2684
      %v2702 = vadd.f32 %v2671, %v2684
      %v2703 = vadd.f32 %v2672, %v2684
      %v2704 = vadd.f32 %v2673, %v2684
      %v2705 = vadd.f32 %v2674, %v2684
      %v2706 = vadd.f32 %v2675, %v2684
      %v2707 = vadd.f32 %v2676, %v2684
      %v2708 = vadd.f32 %v2677, %v2684
      %v2709 = vadd.f32 %v2678, %v2684
      %v2710 = vmax.f32 %v2686, 0.0
      %v2711 = vmax.f32 %v2687, 0.0
      %v2712 = vmax.f32 %v2688, 0.0
      %v2713 = vmax.f32 %v2689, 0.0
      %v2714 = vmax.f32 %v2690, 0.0
      %v2715 = vmax.f32 %v2691, 0.0
      %v2716 = vmax.f32 %v2692, 0.0
      %v2717 = vmax.f32 %v2693, 0.0
      %v2718 = vmax.f32 %v2694, 0.0
      %v2719 = vmax.f32 %v2695, 0.0
      %v2720 = vmax.f32 %v2696, 0.0
      %v2721 = vmax.f32 %v2697, 0.0
      %v2722 = vmax.f32 %v2698, 0.0
      %v2723 = vmax.f32 %v2699, 0.0
      %v2724 = vmax.f32 %v2700, 0.0
      %v2725 = vmax.f32 %v2701, 0.0
      %v2726 = vmax.f32 %v2702, 0.0
      %v2727 = vmax.f32 %v2703, 0.0
      %v2728 = vmax.f32 %v2704, 0.0
      %v2729 = vmax.f32 %v2705, 0.0
      %v2730 = vmax.f32 %v2706, 0.0
      %v2731 = vmax.f32 %v2707, 0.0
      %v2732 = vmax.f32 %v2708, 0.0
      %v2733 = vmax.f32 %v2709, 0.0
      %v2734 = vpack.c.bf16 %v2711, %v2710
      %v2735 = vpack.c.bf16 %v2713, %v2712
      %v2736 = vpack.c.bf16 %v2715, %v2714
      %v2737 = vpack.c.bf16 %v2717, %v2716
      %v2738 = vpack.c.bf16 %v2719, %v2718
      %v2739 = vpack.c.bf16 %v2721, %v2720
      %v2740 = vpack.c.bf16 %v2723, %v2722
      %v2741 = vpack.c.bf16 %v2725, %v2724
      %v2742 = vpack.c.bf16 %v2727, %v2726
      %v2743 = vpack.c.bf16 %v2729, %v2728
      %v2744 = vpack.c.bf16 %v2731, %v2730
      %v2745 = vpack.c.bf16 %v2733, %v2732
      %v2746 = vld [vmem:[%s3] sm:$0xff]
      %v2747 = vld [vmem:[%s3 + $0x8] sm:$0xff]
      %v2748 = vld [vmem:[%s3 + $0x10] sm:$0xff]
      %v2749 = vld [vmem:[%s3 + $0x18] sm:$0xff]
      %v2750 = vld [vmem:[%s3 + $0x20] sm:$0xff]
      %v2751 = vld [vmem:[%s3 + $0x28] sm:$0xff]
      %v2752 = vld [vmem:[%s3 + $0x30] sm:$0xff]
      %v2753 = vld [vmem:[%s3 + $0x38] sm:$0xff]
      %v2754 = vld [vmem:[%s3 + $0x40] sm:$0xff]
      %v2755 = vld [vmem:[%s3 + $0x48] sm:$0xff]
      %v2756 = vld [vmem:[%s3 + $0x50] sm:$0xff]
      %v2757 = vld [vmem:[%s3 + $0x58] sm:$0xff]
      %v2758 = vld [vmem:[%s3 + $0x60] sm:$0xff]
      %v2759 = vld [vmem:[%s3 + $0x68] sm:$0xff]
      %v2760 = vld [vmem:[%s3 + $0x70] sm:$0xff]
      %s2761 = scalar_lea.vmem %s3, 120
      %v2762 = vld [vmem:[%s2761] sm:$0xff]
      %v2763 = vld [vmem:[%s2761 + $0x8] sm:$0xff]
      %v2764 = vld [vmem:[%s2761 + $0x10] sm:$0xff]
      %v2765 = vld [vmem:[%s2761 + $0x18] sm:$0xff]
      %v2766 = vld [vmem:[%s2761 + $0x20] sm:$0xff]
      %v2767 = vld [vmem:[%s2761 + $0x28] sm:$0xff]
      %v2768 = vld [vmem:[%s2761 + $0x30] sm:$0xff]
      %v2769 = vld [vmem:[%s2761 + $0x38] sm:$0xff]
      %v2770 = vld [vmem:[%s2761 + $0x40] sm:$0xff]
      %v2771 = vld [vmem:[%s2761 + $0x48] sm:$0xff]
      %v2772 = vld [vmem:[%s2761 + $0x50] sm:$0xff]
      %v2773 = vld [vmem:[%s2761 + $0x58] sm:$0xff]
      %v2774 = vld [vmem:[%s2761 + $0x60] sm:$0xff]
      %v2775 = vld [vmem:[%s2761 + $0x68] sm:$0xff]
      %v2776 = vld [vmem:[%s2761 + $0x70] sm:$0xff]
      %v2792 = vunpack.c.l.b16 %v2762
      %v2793 = vunpack.c.h.b16 %v2762
      %v2794 = vunpack.c.l.b16 %v2763
      %v2795 = vunpack.c.h.b16 %v2763
      %v2796 = vunpack.c.l.b16 %v2764
      %v2797 = vunpack.c.h.b16 %v2764
      %v2798 = vunpack.c.l.b16 %v2765
      %v2799 = vunpack.c.h.b16 %v2765
      %v2800 = vunpack.c.l.b16 %v2766
      %v2801 = vunpack.c.h.b16 %v2766
      %v2802 = vunpack.c.l.b16 %v2767
      %v2803 = vunpack.c.h.b16 %v2767
      %v2804 = vunpack.c.l.b16 %v2768
      %v2805 = vunpack.c.h.b16 %v2768
      %v2806 = vunpack.c.l.b16 %v2769
      %v2807 = vunpack.c.h.b16 %v2769
      %v2808 = vunpack.c.l.b16 %v2770
      %v2809 = vunpack.c.h.b16 %v2770
      %v2810 = vunpack.c.l.b16 %v2771
      %v2811 = vunpack.c.h.b16 %v2771
      %v2812 = vunpack.c.l.b16 %v2772
      %v2813 = vunpack.c.h.b16 %v2772
      %v2814 = vunpack.c.l.b16 %v2773
      %v2815 = vunpack.c.h.b16 %v2773
      %v2816 = vunpack.c.l.b16 %v2774
      %v2817 = vunpack.c.h.b16 %v2774
      %v2818 = vunpack.c.l.b16 %v2775
      %v2819 = vunpack.c.h.b16 %v2775
      %v2820 = vunpack.c.l.b16 %v2776
      %v2821 = vunpack.c.h.b16 %v2776
      %v2822 = vpack.c.b16 %v2794, %v2792
      %v2823 = vpack.c.b16 %v2795, %v2793
      %v2824 = vpack.c.b16 %v2798, %v2796
      %v2825 = vpack.c.b16 %v2799, %v2797
      %v2826 = vpack.c.b16 %v2802, %v2800
      %v2827 = vpack.c.b16 %v2803, %v2801
      %v2828 = vpack.c.b16 %v2806, %v2804
      %v2829 = vpack.c.b16 %v2807, %v2805
      %v2830 = vpack.c.b16 %v2810, %v2808
      %v2831 = vpack.c.b16 %v2811, %v2809
      %v2832 = vpack.c.b16 %v2814, %v2812
      %v2833 = vpack.c.b16 %v2815, %v2813
      %v2834 = vpack.c.b16 %v2818, %v2816
      %v2835 = vpack.c.b16 %v2819, %v2817
      %v2836 = vpack.c.b16 %v2820, %v2820
      %v2837 = vpack.c.b16 %v2821, %v2821
      %vm2852 = vcmask 982016
      %v2854 = vsel %vm2852, %v2735, 0
      %v2857 = vsel %vm2852, %v2736, 0
      %v2860 = vsel %vm2852, %v2737, 0
      %v2863 = vsel %vm2852, %v2738, 0
      %v2866 = vsel %vm2852, %v2739, 0
      %v2869 = vsel %vm2852, %v2740, 0
      %v2872 = vsel %vm2852, %v2741, 0
      %v2875 = vsel %vm2852, %v2742, 0
      %vm2877 = vcmask 1043456
      %v2879 = vsel %vm2877, %v2836, 0
      %v2882 = vsel %vm2877, %v2837, 0
      %2884 = vmatprep.subr.bf16.mxu0 %v2882
      %2885 = vmatpush1.bf16.msra.mxu0 %v2879
      %2886 = vmatprep.subr.bf16.mxu0 %v2835
      %2887 = vmatpush1.bf16.msra.mxu0 %v2834
      %2888 = vmatprep.subr.bf16.mxu0 %v2833
      %2889 = vmatpush1.bf16.msra.mxu0 %v2832
      %2890 = vmatprep.subr.bf16.mxu0 %v2831
      %2891 = vmatpush1.bf16.msra.mxu0 %v2830
      %2892 = vmatprep.subr.bf16.mxu0 %v2829
      %2893 = vmatpush1.bf16.msra.mxu0 %v2828
      %2894 = vmatprep.subr.bf16.mxu0 %v2827
      %2895 = vmatpush1.bf16.msra.mxu0 %v2826
      %2896 = vmatprep.subr.bf16.mxu0 %v2825
      %2897 = vmatpush1.bf16.msra.mxu0 %v2824
      %2898 = vmatprep.subr.bf16.mxu0 %v2823
      %2899 = vmatpush1.bf16.msra.mxu0 %v2822
      %2900 = vmatprep.subr.bf16.mxu0 0
      %2901 = vmatpush2.bf16.msra.mxu0 0
      %2902 = vmatprep.subr.bf16.mxu0 0
      %2903 = vmatpush2.bf16.msra.mxu0 0
      %2904 = vmatprep.subr.bf16.mxu0 0
      %2905 = vmatpush2.bf16.msra.mxu0 0
      %2906 = vmatprep.subr.bf16.mxu0 0
      %2907 = vmatpush2.bf16.msra.mxu0 0
      %2908 = vmatprep.subr.bf16.mxu0 0
      %2909 = vmatpush2.bf16.msra.mxu0 0
      %2910 = vmatprep.subr.bf16.mxu0 0
      %2911 = vmatpush2.bf16.msra.mxu0 0
      %2912 = vmatprep.subr.bf16.mxu0 0
      %2913 = vmatpush2.bf16.msra.mxu0 0
      %2914 = vmatprep.subr.bf16.mxu0 0
      %2915 = vmatpush2.bf16.msra.mxu0 0
      %2916 = vmatprep.mubr.bf16.mxu0 0
      %2917 = vmatmul.mubr.bf16.gmra.mxu0 %v2854
      %v2918 = vpop.f32.mrf.mxu0
      %v2919 = vadd.f32 0.0, %v2918
      %v2920 = vpop.f32.mrf.mxu0
      %v2921 = vadd.f32 0.0, %v2920
      %v2922 = vpop.f32.mrf.mxu0
      %v2923 = vadd.f32 0.0, %v2922
      %v2924 = vpop.f32.mrf.mxu0
      %v2925 = vadd.f32 0.0, %v2924
      %2926 = vmatprep.mubr.bf16.mxu0 0
      %2927 = vmatmul.mubr.bf16.gmra.mxu0 %v2857
      %v2928 = vpop.f32.mrf.mxu0
      %v2929 = vadd.f32 0.0, %v2928
      %v2930 = vpop.f32.mrf.mxu0
      %v2931 = vadd.f32 0.0, %v2930
      %v2932 = vpop.f32.mrf.mxu0
      %v2933 = vadd.f32 0.0, %v2932
      %v2934 = vpop.f32.mrf.mxu0
      %v2935 = vadd.f32 0.0, %v2934
      %2936 = vmatprep.mubr.bf16.mxu0 0
      %2937 = vmatmul.mubr.bf16.gmra.mxu0 %v2860
      %v2938 = vpop.f32.mrf.mxu0
      %v2939 = vadd.f32 0.0, %v2938
      %v2940 = vpop.f32.mrf.mxu0
      %v2941 = vadd.f32 0.0, %v2940
      %v2942 = vpop.f32.mrf.mxu0
      %v2943 = vadd.f32 0.0, %v2942
      %v2944 = vpop.f32.mrf.mxu0
      %v2945 = vadd.f32 0.0, %v2944
      %2946 = vmatprep.mubr.bf16.mxu0 0
      %2947 = vmatmul.mubr.bf16.gmra.mxu0 %v2863
      %v2948 = vpop.f32.mrf.mxu0
      %v2949 = vadd.f32 0.0, %v2948
      %v2950 = vpop.f32.mrf.mxu0
      %v2951 = vadd.f32 0.0, %v2950
      %v2952 = vpop.f32.mrf.mxu0
      %v2953 = vadd.f32 0.0, %v2952
      %v2954 = vpop.f32.mrf.mxu0
      %v2955 = vadd.f32 0.0, %v2954
      %2956 = vmatprep.mubr.bf16.mxu0 0
      %2957 = vmatmul.mubr.bf16.gmra.mxu0 %v2866
      %v2958 = vpop.f32.mrf.mxu0
      %v2959 = vadd.f32 0.0, %v2958
      %v2960 = vpop.f32.mrf.mxu0
      %v2961 = vadd.f32 0.0, %v2960
      %v2962 = vpop.f32.mrf.mxu0
      %v2963 = vadd.f32 0.0, %v2962
      %v2964 = vpop.f32.mrf.mxu0
      %v2965 = vadd.f32 0.0, %v2964
      %2966 = vmatprep.mubr.bf16.mxu0 0
      %2967 = vmatmul.mubr.bf16.gmra.mxu0 %v2869
      %v2968 = vpop.f32.mrf.mxu0
      %v2969 = vadd.f32 0.0, %v2968
      %v2970 = vpop.f32.mrf.mxu0
      %v2971 = vadd.f32 0.0, %v2970
      %v2972 = vpop.f32.mrf.mxu0
      %v2973 = vadd.f32 0.0, %v2972
      %v2974 = vpop.f32.mrf.mxu0
      %v2975 = vadd.f32 0.0, %v2974
      %2976 = vmatprep.mubr.bf16.mxu0 0
      %2977 = vmatmul.mubr.bf16.gmra.mxu0 %v2872
      %v2978 = vpop.f32.mrf.mxu0
      %v2979 = vadd.f32 0.0, %v2978
      %v2980 = vpop.f32.mrf.mxu0
      %v2981 = vadd.f32 0.0, %v2980
      %v2982 = vpop.f32.mrf.mxu0
      %v2983 = vadd.f32 0.0, %v2982
      %v2984 = vpop.f32.mrf.mxu0
      %v2985 = vadd.f32 0.0, %v2984
      %2986 = vmatprep.mubr.bf16.mxu0 0
      %2987 = vmatmul.mubr.bf16.gmra.mxu0 %v2875
      %v2988 = vpop.f32.mrf.mxu0
      %v2989 = vadd.f32 0.0, %v2988
      %v2990 = vpop.f32.mrf.mxu0
      %v2991 = vadd.f32 0.0, %v2990
      %v2992 = vpop.f32.mrf.mxu0
      %v2993 = vadd.f32 0.0, %v2992
      %v2994 = vpop.f32.mrf.mxu0
      %v2995 = vadd.f32 0.0, %v2994
      %2996 = vdwg.mxu0
      %v3012 = vunpack.c.l.b16 %v2746
      %v3013 = vunpack.c.h.b16 %v2746
      %v3014 = vunpack.c.l.b16 %v2747
      %v3015 = vunpack.c.h.b16 %v2747
      %v3016 = vunpack.c.l.b16 %v2748
      %v3017 = vunpack.c.h.b16 %v2748
      %v3018 = vunpack.c.l.b16 %v2749
      %v3019 = vunpack.c.h.b16 %v2749
      %v3020 = vunpack.c.l.b16 %v2750
      %v3021 = vunpack.c.h.b16 %v2750
      %v3022 = vunpack.c.l.b16 %v2751
      %v3023 = vunpack.c.h.b16 %v2751
      %v3024 = vunpack.c.l.b16 %v2752
      %v3025 = vunpack.c.h.b16 %v2752
      %v3026 = vunpack.c.l.b16 %v2753
      %v3027 = vunpack.c.h.b16 %v2753
      %v3028 = vunpack.c.l.b16 %v2754
      %v3029 = vunpack.c.h.b16 %v2754
      %v3030 = vunpack.c.l.b16 %v2755
      %v3031 = vunpack.c.h.b16 %v2755
      %v3032 = vunpack.c.l.b16 %v2756
      %v3033 = vunpack.c.h.b16 %v2756
      %v3034 = vunpack.c.l.b16 %v2757
      %v3035 = vunpack.c.h.b16 %v2757
      %v3036 = vunpack.c.l.b16 %v2758
      %v3037 = vunpack.c.h.b16 %v2758
      %v3038 = vunpack.c.l.b16 %v2759
      %v3039 = vunpack.c.h.b16 %v2759
      %v3040 = vunpack.c.l.b16 %v2760
      %v3041 = vunpack.c.h.b16 %v2760
      %v3042 = vpack.c.b16 %v3014, %v3012
      %v3043 = vpack.c.b16 %v3015, %v3013
      %v3044 = vpack.c.b16 %v3018, %v3016
      %v3045 = vpack.c.b16 %v3019, %v3017
      %v3046 = vpack.c.b16 %v3022, %v3020
      %v3047 = vpack.c.b16 %v3023, %v3021
      %v3048 = vpack.c.b16 %v3026, %v3024
      %v3049 = vpack.c.b16 %v3027, %v3025
      %v3050 = vpack.c.b16 %v3030, %v3028
      %v3051 = vpack.c.b16 %v3031, %v3029
      %v3052 = vpack.c.b16 %v3034, %v3032
      %v3053 = vpack.c.b16 %v3035, %v3033
      %v3054 = vpack.c.b16 %v3038, %v3036
      %v3055 = vpack.c.b16 %v3039, %v3037
      %v3056 = vpack.c.b16 %v3040, %v3040
      %v3057 = vpack.c.b16 %v3041, %v3041
      %v3073 = vsel %vm2852, %v2734, 0
      %v3076 = vsel %vm2877, %v3056, 0
      %v3079 = vsel %vm2877, %v3057, 0
      %3081 = vmatprep.subr.bf16.mxu0 %v3079
      %3082 = vmatpush1.bf16.msra.mxu0 %v3076
      %3083 = vmatprep.subr.bf16.mxu0 %v3055
      %3084 = vmatpush1.bf16.msra.mxu0 %v3054
      %3085 = vmatprep.subr.bf16.mxu0 %v3053
      %3086 = vmatpush1.bf16.msra.mxu0 %v3052
      %3087 = vmatprep.subr.bf16.mxu0 %v3051
      %3088 = vmatpush1.bf16.msra.mxu0 %v3050
      %3089 = vmatprep.subr.bf16.mxu0 %v3049
      %3090 = vmatpush1.bf16.msra.mxu0 %v3048
      %3091 = vmatprep.subr.bf16.mxu0 %v3047
      %3092 = vmatpush1.bf16.msra.mxu0 %v3046
      %3093 = vmatprep.subr.bf16.mxu0 %v3045
      %3094 = vmatpush1.bf16.msra.mxu0 %v3044
      %3095 = vmatprep.subr.bf16.mxu0 %v3043
      %3096 = vmatpush1.bf16.msra.mxu0 %v3042
      %3097 = vmatprep.subr.bf16.mxu0 0
      %3098 = vmatpush2.bf16.msra.mxu0 0
      %3099 = vmatprep.subr.bf16.mxu0 0
      %3100 = vmatpush2.bf16.msra.mxu0 0
      %3101 = vmatprep.subr.bf16.mxu0 0
      %3102 = vmatpush2.bf16.msra.mxu0 0
      %3103 = vmatprep.subr.bf16.mxu0 0
      %3104 = vmatpush2.bf16.msra.mxu0 0
      %3105 = vmatprep.subr.bf16.mxu0 0
      %3106 = vmatpush2.bf16.msra.mxu0 0
      %3107 = vmatprep.subr.bf16.mxu0 0
      %3108 = vmatpush2.bf16.msra.mxu0 0
      %3109 = vmatprep.subr.bf16.mxu0 0
      %3110 = vmatpush2.bf16.msra.mxu0 0
      %3111 = vmatprep.subr.bf16.mxu0 0
      %3112 = vmatpush2.bf16.msra.mxu0 0
      %3113 = vmatprep.mubr.bf16.mxu0 0
      %3114 = vmatmul.mubr.bf16.gmra.mxu0 %v3073
      %v3115 = vpop.f32.mrf.mxu0
      %v3116 = vadd.f32 %v2919, %v3115
      %v3117 = vpop.f32.mrf.mxu0
      %v3118 = vadd.f32 %v2921, %v3117
      %v3119 = vpop.f32.mrf.mxu0
      %v3120 = vadd.f32 %v2923, %v3119
      %v3121 = vpop.f32.mrf.mxu0
      %v3122 = vadd.f32 %v2925, %v3121
      %3123 = vmatprep.mubr.bf16.mxu0 0
      %3124 = vmatmul.mubr.bf16.gmra.mxu0 %v2854
      %v3125 = vpop.f32.mrf.mxu0
      %v3126 = vadd.f32 %v2929, %v3125
      %v3127 = vpop.f32.mrf.mxu0
      %v3128 = vadd.f32 %v2931, %v3127
      %v3129 = vpop.f32.mrf.mxu0
      %v3130 = vadd.f32 %v2933, %v3129
      %v3131 = vpop.f32.mrf.mxu0
      %v3132 = vadd.f32 %v2935, %v3131
      %3133 = vmatprep.mubr.bf16.mxu0 0
      %3134 = vmatmul.mubr.bf16.gmra.mxu0 %v2857
      %v3135 = vpop.f32.mrf.mxu0
      %v3136 = vadd.f32 %v2939, %v3135
      %v3137 = vpop.f32.mrf.mxu0
      %v3138 = vadd.f32 %v2941, %v3137
      %v3139 = vpop.f32.mrf.mxu0
      %v3140 = vadd.f32 %v2943, %v3139
      %v3141 = vpop.f32.mrf.mxu0
      %v3142 = vadd.f32 %v2945, %v3141
      %3143 = vmatprep.mubr.bf16.mxu0 0
      %3144 = vmatmul.mubr.bf16.gmra.mxu0 %v2860
      %v3145 = vpop.f32.mrf.mxu0
      %v3146 = vadd.f32 %v2949, %v3145
      %v3147 = vpop.f32.mrf.mxu0
      %v3148 = vadd.f32 %v2951, %v3147
      %v3149 = vpop.f32.mrf.mxu0
      %v3150 = vadd.f32 %v2953, %v3149
      %v3151 = vpop.f32.mrf.mxu0
      %v3152 = vadd.f32 %v2955, %v3151
      %3153 = vmatprep.mubr.bf16.mxu0 0
      %3154 = vmatmul.mubr.bf16.gmra.mxu0 %v2863
      %v3155 = vpop.f32.mrf.mxu0
      %v3156 = vadd.f32 %v2959, %v3155
      %v3157 = vpop.f32.mrf.mxu0
      %v3158 = vadd.f32 %v2961, %v3157
      %v3159 = vpop.f32.mrf.mxu0
      %v3160 = vadd.f32 %v2963, %v3159
      %v3161 = vpop.f32.mrf.mxu0
      %v3162 = vadd.f32 %v2965, %v3161
      %3163 = vmatprep.mubr.bf16.mxu0 0
      %3164 = vmatmul.mubr.bf16.gmra.mxu0 %v2866
      %v3165 = vpop.f32.mrf.mxu0
      %v3166 = vadd.f32 %v2969, %v3165
      %v3167 = vpop.f32.mrf.mxu0
      %v3168 = vadd.f32 %v2971, %v3167
      %v3169 = vpop.f32.mrf.mxu0
      %v3170 = vadd.f32 %v2973, %v3169
      %v3171 = vpop.f32.mrf.mxu0
      %v3172 = vadd.f32 %v2975, %v3171
      %3173 = vmatprep.mubr.bf16.mxu0 0
      %3174 = vmatmul.mubr.bf16.gmra.mxu0 %v2869
      %v3175 = vpop.f32.mrf.mxu0
      %v3176 = vadd.f32 %v2979, %v3175
      %v3177 = vpop.f32.mrf.mxu0
      %v3178 = vadd.f32 %v2981, %v3177
      %v3179 = vpop.f32.mrf.mxu0
      %v3180 = vadd.f32 %v2983, %v3179
      %v3181 = vpop.f32.mrf.mxu0
      %v3182 = vadd.f32 %v2985, %v3181
      %3183 = vmatprep.mubr.bf16.mxu0 0
      %3184 = vmatmul.mubr.bf16.gmra.mxu0 %v2872
      %v3185 = vpop.f32.mrf.mxu0
      %v3186 = vadd.f32 %v2989, %v3185
      %v3187 = vpop.f32.mrf.mxu0
      %v3188 = vadd.f32 %v2991, %v3187
      %v3189 = vpop.f32.mrf.mxu0
      %v3190 = vadd.f32 %v2993, %v3189
      %v3191 = vpop.f32.mrf.mxu0
      %v3192 = vadd.f32 %v2995, %v3191
      %3193 = vdwg.mxu0
      %s3194 = scalar_lea.vmem %s3, 240
      %v3195 = vld [vmem:[%s3194] sm:$0xff]
      %v3196 = vld [vmem:[%s3194 + $0x8] sm:$0xff]
      %v3197 = vld [vmem:[%s3194 + $0x10] sm:$0xff]
      %v3198 = vld [vmem:[%s3194 + $0x18] sm:$0xff]
      %v3199 = vld [vmem:[%s3194 + $0x20] sm:$0xff]
      %v3200 = vld [vmem:[%s3194 + $0x28] sm:$0xff]
      %v3201 = vld [vmem:[%s3194 + $0x30] sm:$0xff]
      %v3202 = vld [vmem:[%s3194 + $0x38] sm:$0xff]
      %v3203 = vld [vmem:[%s3194 + $0x40] sm:$0xff]
      %v3204 = vld [vmem:[%s3194 + $0x48] sm:$0xff]
      %v3205 = vld [vmem:[%s3194 + $0x50] sm:$0xff]
      %v3206 = vld [vmem:[%s3194 + $0x58] sm:$0xff]
      %v3207 = vld [vmem:[%s3194 + $0x60] sm:$0xff]
      %v3208 = vld [vmem:[%s3194 + $0x68] sm:$0xff]
      %v3209 = vld [vmem:[%s3194 + $0x70] sm:$0xff]
      %v3225 = vunpack.c.l.b16 %v3195
      %v3226 = vunpack.c.h.b16 %v3195
      %v3227 = vunpack.c.l.b16 %v3196
      %v3228 = vunpack.c.h.b16 %v3196
      %v3229 = vunpack.c.l.b16 %v3197
      %v3230 = vunpack.c.h.b16 %v3197
      %v3231 = vunpack.c.l.b16 %v3198
      %v3232 = vunpack.c.h.b16 %v3198
      %v3233 = vunpack.c.l.b16 %v3199
      %v3234 = vunpack.c.h.b16 %v3199
      %v3235 = vunpack.c.l.b16 %v3200
      %v3236 = vunpack.c.h.b16 %v3200
      %v3237 = vunpack.c.l.b16 %v3201
      %v3238 = vunpack.c.h.b16 %v3201
      %v3239 = vunpack.c.l.b16 %v3202
      %v3240 = vunpack.c.h.b16 %v3202
      %v3241 = vunpack.c.l.b16 %v3203
      %v3242 = vunpack.c.h.b16 %v3203
      %v3243 = vunpack.c.l.b16 %v3204
      %v3244 = vunpack.c.h.b16 %v3204
      %v3245 = vunpack.c.l.b16 %v3205
      %v3246 = vunpack.c.h.b16 %v3205
      %v3247 = vunpack.c.l.b16 %v3206
      %v3248 = vunpack.c.h.b16 %v3206
      %v3249 = vunpack.c.l.b16 %v3207
      %v3250 = vunpack.c.h.b16 %v3207
      %v3251 = vunpack.c.l.b16 %v3208
      %v3252 = vunpack.c.h.b16 %v3208
      %v3253 = vunpack.c.l.b16 %v3209
      %v3254 = vunpack.c.h.b16 %v3209
      %v3255 = vpack.c.b16 %v3227, %v3225
      %v3256 = vpack.c.b16 %v3228, %v3226
      %v3257 = vpack.c.b16 %v3231, %v3229
      %v3258 = vpack.c.b16 %v3232, %v3230
      %v3259 = vpack.c.b16 %v3235, %v3233
      %v3260 = vpack.c.b16 %v3236, %v3234
      %v3261 = vpack.c.b16 %v3239, %v3237
      %v3262 = vpack.c.b16 %v3240, %v3238
      %v3263 = vpack.c.b16 %v3243, %v3241
      %v3264 = vpack.c.b16 %v3244, %v3242
      %v3265 = vpack.c.b16 %v3247, %v3245
      %v3266 = vpack.c.b16 %v3248, %v3246
      %v3267 = vpack.c.b16 %v3251, %v3249
      %v3268 = vpack.c.b16 %v3252, %v3250
      %v3269 = vpack.c.b16 %v3253, %v3253
      %v3270 = vpack.c.b16 %v3254, %v3254
      %v3286 = vsel %vm2852, %v2743, 0
      %v3289 = vsel %vm2877, %v3269, 0
      %v3292 = vsel %vm2877, %v3270, 0
      %3294 = vmatprep.subr.bf16.mxu0 %v3292
      %3295 = vmatpush1.bf16.msra.mxu0 %v3289
      %3296 = vmatprep.subr.bf16.mxu0 %v3268
      %3297 = vmatpush1.bf16.msra.mxu0 %v3267
      %3298 = vmatprep.subr.bf16.mxu0 %v3266
      %3299 = vmatpush1.bf16.msra.mxu0 %v3265
      %3300 = vmatprep.subr.bf16.mxu0 %v3264
      %3301 = vmatpush1.bf16.msra.mxu0 %v3263
      %3302 = vmatprep.subr.bf16.mxu0 %v3262
      %3303 = vmatpush1.bf16.msra.mxu0 %v3261
      %3304 = vmatprep.subr.bf16.mxu0 %v3260
      %3305 = vmatpush1.bf16.msra.mxu0 %v3259
      %3306 = vmatprep.subr.bf16.mxu0 %v3258
      %3307 = vmatpush1.bf16.msra.mxu0 %v3257
      %3308 = vmatprep.subr.bf16.mxu0 %v3256
      %3309 = vmatpush1.bf16.msra.mxu0 %v3255
      %3310 = vmatprep.subr.bf16.mxu0 0
      %3311 = vmatpush2.bf16.msra.mxu0 0
      %3312 = vmatprep.subr.bf16.mxu0 0
      %3313 = vmatpush2.bf16.msra.mxu0 0
      %3314 = vmatprep.subr.bf16.mxu0 0
      %3315 = vmatpush2.bf16.msra.mxu0 0
      %3316 = vmatprep.subr.bf16.mxu0 0
      %3317 = vmatpush2.bf16.msra.mxu0 0
      %3318 = vmatprep.subr.bf16.mxu0 0
      %3319 = vmatpush2.bf16.msra.mxu0 0
      %3320 = vmatprep.subr.bf16.mxu0 0
      %3321 = vmatpush2.bf16.msra.mxu0 0
      %3322 = vmatprep.subr.bf16.mxu0 0
      %3323 = vmatpush2.bf16.msra.mxu0 0
      %3324 = vmatprep.subr.bf16.mxu0 0
      %3325 = vmatpush2.bf16.msra.mxu0 0
      %3326 = vmatprep.mubr.bf16.mxu0 0
      %3327 = vmatmul.mubr.bf16.gmra.mxu0 %v2857
      %v3328 = vpop.f32.mrf.mxu0
      %v3329 = vadd.f32 0.0, %v3328
      %v3330 = vpop.f32.mrf.mxu0
      %v3331 = vadd.f32 0.0, %v3330
      %v3332 = vpop.f32.mrf.mxu0
      %v3333 = vadd.f32 0.0, %v3332
      %v3334 = vpop.f32.mrf.mxu0
      %v3335 = vadd.f32 0.0, %v3334
      %3336 = vmatprep.mubr.bf16.mxu0 0
      %3337 = vmatmul.mubr.bf16.gmra.mxu0 %v2860
      %v3338 = vpop.f32.mrf.mxu0
      %v3339 = vadd.f32 0.0, %v3338
      %v3340 = vpop.f32.mrf.mxu0
      %v3341 = vadd.f32 0.0, %v3340
      %v3342 = vpop.f32.mrf.mxu0
      %v3343 = vadd.f32 0.0, %v3342
      %v3344 = vpop.f32.mrf.mxu0
      %v3345 = vadd.f32 0.0, %v3344
      %3346 = vmatprep.mubr.bf16.mxu0 0
      %3347 = vmatmul.mubr.bf16.gmra.mxu0 %v2863
      %v3348 = vpop.f32.mrf.mxu0
      %v3349 = vadd.f32 0.0, %v3348
      %v3350 = vpop.f32.mrf.mxu0
      %v3351 = vadd.f32 0.0, %v3350
      %v3352 = vpop.f32.mrf.mxu0
      %v3353 = vadd.f32 0.0, %v3352
      %v3354 = vpop.f32.mrf.mxu0
      %v3355 = vadd.f32 0.0, %v3354
      %3356 = vmatprep.mubr.bf16.mxu0 0
      %3357 = vmatmul.mubr.bf16.gmra.mxu0 %v2866
      %v3358 = vpop.f32.mrf.mxu0
      %v3359 = vadd.f32 0.0, %v3358
      %v3360 = vpop.f32.mrf.mxu0
      %v3361 = vadd.f32 0.0, %v3360
      %v3362 = vpop.f32.mrf.mxu0
      %v3363 = vadd.f32 0.0, %v3362
      %v3364 = vpop.f32.mrf.mxu0
      %v3365 = vadd.f32 0.0, %v3364
      %3366 = vmatprep.mubr.bf16.mxu0 0
      %3367 = vmatmul.mubr.bf16.gmra.mxu0 %v2869
      %v3368 = vpop.f32.mrf.mxu0
      %v3369 = vadd.f32 0.0, %v3368
      %v3370 = vpop.f32.mrf.mxu0
      %v3371 = vadd.f32 0.0, %v3370
      %v3372 = vpop.f32.mrf.mxu0
      %v3373 = vadd.f32 0.0, %v3372
      %v3374 = vpop.f32.mrf.mxu0
      %v3375 = vadd.f32 0.0, %v3374
      %3376 = vmatprep.mubr.bf16.mxu0 0
      %3377 = vmatmul.mubr.bf16.gmra.mxu0 %v2872
      %v3378 = vpop.f32.mrf.mxu0
      %v3379 = vadd.f32 0.0, %v3378
      %v3380 = vpop.f32.mrf.mxu0
      %v3381 = vadd.f32 0.0, %v3380
      %v3382 = vpop.f32.mrf.mxu0
      %v3383 = vadd.f32 0.0, %v3382
      %v3384 = vpop.f32.mrf.mxu0
      %v3385 = vadd.f32 0.0, %v3384
      %3386 = vmatprep.mubr.bf16.mxu0 0
      %3387 = vmatmul.mubr.bf16.gmra.mxu0 %v2875
      %v3388 = vpop.f32.mrf.mxu0
      %v3389 = vadd.f32 0.0, %v3388
      %v3390 = vpop.f32.mrf.mxu0
      %v3391 = vadd.f32 0.0, %v3390
      %v3392 = vpop.f32.mrf.mxu0
      %v3393 = vadd.f32 0.0, %v3392
      %v3394 = vpop.f32.mrf.mxu0
      %v3395 = vadd.f32 0.0, %v3394
      %3396 = vmatprep.mubr.bf16.mxu0 0
      %3397 = vmatmul.mubr.bf16.gmra.mxu0 %v3286
      %v3398 = vpop.f32.mrf.mxu0
      %v3399 = vadd.f32 0.0, %v3398
      %v3400 = vpop.f32.mrf.mxu0
      %v3401 = vadd.f32 0.0, %v3400
      %v3402 = vpop.f32.mrf.mxu0
      %v3403 = vadd.f32 0.0, %v3402
      %v3404 = vpop.f32.mrf.mxu0
      %v3405 = vadd.f32 0.0, %v3404
      %3406 = vdwg.mxu0
      %v3407 = vadd.f32 %v3116, %v3329
      %v3408 = vadd.f32 %v3118, %v3331
      %v3409 = vadd.f32 %v3120, %v3333
      %v3410 = vadd.f32 %v3122, %v3335
      %v3411 = vadd.f32 %v3126, %v3339
      %v3412 = vadd.f32 %v3128, %v3341
      %v3413 = vadd.f32 %v3130, %v3343
      %v3414 = vadd.f32 %v3132, %v3345
      %v3415 = vadd.f32 %v3136, %v3349
      %v3416 = vadd.f32 %v3138, %v3351
      %v3417 = vadd.f32 %v3140, %v3353
      %v3418 = vadd.f32 %v3142, %v3355
      %v3419 = vadd.f32 %v3146, %v3359
      %v3420 = vadd.f32 %v3148, %v3361
      %v3421 = vadd.f32 %v3150, %v3363
      %v3422 = vadd.f32 %v3152, %v3365
      %v3423 = vadd.f32 %v3156, %v3369
      %v3424 = vadd.f32 %v3158, %v3371
      %v3425 = vadd.f32 %v3160, %v3373
      %v3426 = vadd.f32 %v3162, %v3375
      %v3427 = vadd.f32 %v3166, %v3379
      %v3428 = vadd.f32 %v3168, %v3381
      %v3429 = vadd.f32 %v3170, %v3383
      %v3430 = vadd.f32 %v3172, %v3385
      %v3431 = vadd.f32 %v3176, %v3389
      %v3432 = vadd.f32 %v3178, %v3391
      %v3433 = vadd.f32 %v3180, %v3393
      %v3434 = vadd.f32 %v3182, %v3395
      %v3435 = vadd.f32 %v3186, %v3399
      %v3436 = vadd.f32 %v3188, %v3401
      %v3437 = vadd.f32 %v3190, %v3403
      %v3438 = vadd.f32 %v3192, %v3405
      %s3439 = scalar_lea.vmem %s3, 360
      %v3440 = vld [vmem:[%s3439] sm:$0xff]
      %v3441 = vld [vmem:[%s3439 + $0x8] sm:$0xff]
      %v3442 = vld [vmem:[%s3439 + $0x10] sm:$0xff]
      %v3443 = vld [vmem:[%s3439 + $0x18] sm:$0xff]
      %v3444 = vld [vmem:[%s3439 + $0x20] sm:$0xff]
      %v3445 = vld [vmem:[%s3439 + $0x28] sm:$0xff]
      %v3446 = vld [vmem:[%s3439 + $0x30] sm:$0xff]
      %v3447 = vld [vmem:[%s3439 + $0x38] sm:$0xff]
      %v3448 = vld [vmem:[%s3439 + $0x40] sm:$0xff]
      %v3449 = vld [vmem:[%s3439 + $0x48] sm:$0xff]
      %v3450 = vld [vmem:[%s3439 + $0x50] sm:$0xff]
      %v3451 = vld [vmem:[%s3439 + $0x58] sm:$0xff]
      %v3452 = vld [vmem:[%s3439 + $0x60] sm:$0xff]
      %v3453 = vld [vmem:[%s3439 + $0x68] sm:$0xff]
      %v3454 = vld [vmem:[%s3439 + $0x70] sm:$0xff]
      %v3470 = vunpack.c.l.b16 %v3440
      %v3471 = vunpack.c.h.b16 %v3440
      %v3472 = vunpack.c.l.b16 %v3441
      %v3473 = vunpack.c.h.b16 %v3441
      %v3474 = vunpack.c.l.b16 %v3442
      %v3475 = vunpack.c.h.b16 %v3442
      %v3476 = vunpack.c.l.b16 %v3443
      %v3477 = vunpack.c.h.b16 %v3443
      %v3478 = vunpack.c.l.b16 %v3444
      %v3479 = vunpack.c.h.b16 %v3444
      %v3480 = vunpack.c.l.b16 %v3445
      %v3481 = vunpack.c.h.b16 %v3445
      %v3482 = vunpack.c.l.b16 %v3446
      %v3483 = vunpack.c.h.b16 %v3446
      %v3484 = vunpack.c.l.b16 %v3447
      %v3485 = vunpack.c.h.b16 %v3447
      %v3486 = vunpack.c.l.b16 %v3448
      %v3487 = vunpack.c.h.b16 %v3448
      %v3488 = vunpack.c.l.b16 %v3449
      %v3489 = vunpack.c.h.b16 %v3449
      %v3490 = vunpack.c.l.b16 %v3450
      %v3491 = vunpack.c.h.b16 %v3450
      %v3492 = vunpack.c.l.b16 %v3451
      %v3493 = vunpack.c.h.b16 %v3451
      %v3494 = vunpack.c.l.b16 %v3452
      %v3495 = vunpack.c.h.b16 %v3452
      %v3496 = vunpack.c.l.b16 %v3453
      %v3497 = vunpack.c.h.b16 %v3453
      %v3498 = vunpack.c.l.b16 %v3454
      %v3499 = vunpack.c.h.b16 %v3454
      %v3500 = vpack.c.b16 %v3472, %v3470
      %v3501 = vpack.c.b16 %v3473, %v3471
      %v3502 = vpack.c.b16 %v3476, %v3474
      %v3503 = vpack.c.b16 %v3477, %v3475
      %v3504 = vpack.c.b16 %v3480, %v3478
      %v3505 = vpack.c.b16 %v3481, %v3479
      %v3506 = vpack.c.b16 %v3484, %v3482
      %v3507 = vpack.c.b16 %v3485, %v3483
      %v3508 = vpack.c.b16 %v3488, %v3486
      %v3509 = vpack.c.b16 %v3489, %v3487
      %v3510 = vpack.c.b16 %v3492, %v3490
      %v3511 = vpack.c.b16 %v3493, %v3491
      %v3512 = vpack.c.b16 %v3496, %v3494
      %v3513 = vpack.c.b16 %v3497, %v3495
      %v3514 = vpack.c.b16 %v3498, %v3498
      %v3515 = vpack.c.b16 %v3499, %v3499
      %v3531 = vsel %vm2852, %v2744, 0
      %v3534 = vsel %vm2877, %v3514, 0
      %v3537 = vsel %vm2877, %v3515, 0
      %3539 = vmatprep.subr.bf16.mxu0 %v3537
      %3540 = vmatpush1.bf16.msra.mxu0 %v3534
      %3541 = vmatprep.subr.bf16.mxu0 %v3513
      %3542 = vmatpush1.bf16.msra.mxu0 %v3512
      %3543 = vmatprep.subr.bf16.mxu0 %v3511
      %3544 = vmatpush1.bf16.msra.mxu0 %v3510
      %3545 = vmatprep.subr.bf16.mxu0 %v3509
      %3546 = vmatpush1.bf16.msra.mxu0 %v3508
      %3547 = vmatprep.subr.bf16.mxu0 %v3507
      %3548 = vmatpush1.bf16.msra.mxu0 %v3506
      %3549 = vmatprep.subr.bf16.mxu0 %v3505
      %3550 = vmatpush1.bf16.msra.mxu0 %v3504
      %3551 = vmatprep.subr.bf16.mxu0 %v3503
      %3552 = vmatpush1.bf16.msra.mxu0 %v3502
      %3553 = vmatprep.subr.bf16.mxu0 %v3501
      %3554 = vmatpush1.bf16.msra.mxu0 %v3500
      %3555 = vmatprep.subr.bf16.mxu0 0
      %3556 = vmatpush2.bf16.msra.mxu0 0
      %3557 = vmatprep.subr.bf16.mxu0 0
      %3558 = vmatpush2.bf16.msra.mxu0 0
      %3559 = vmatprep.subr.bf16.mxu0 0
      %3560 = vmatpush2.bf16.msra.mxu0 0
      %3561 = vmatprep.subr.bf16.mxu0 0
      %3562 = vmatpush2.bf16.msra.mxu0 0
      %3563 = vmatprep.subr.bf16.mxu0 0
      %3564 = vmatpush2.bf16.msra.mxu0 0
      %3565 = vmatprep.subr.bf16.mxu0 0
      %3566 = vmatpush2.bf16.msra.mxu0 0
      %3567 = vmatprep.subr.bf16.mxu0 0
      %3568 = vmatpush2.bf16.msra.mxu0 0
      %3569 = vmatprep.subr.bf16.mxu0 0
      %3570 = vmatpush2.bf16.msra.mxu0 0
      %3571 = vmatprep.mubr.bf16.mxu0 0
      %3572 = vmatmul.mubr.bf16.gmra.mxu0 %v2860
      %v3573 = vpop.f32.mrf.mxu0
      %v3574 = vadd.f32 0.0, %v3573
      %v3575 = vpop.f32.mrf.mxu0
      %v3576 = vadd.f32 0.0, %v3575
      %v3577 = vpop.f32.mrf.mxu0
      %v3578 = vadd.f32 0.0, %v3577
      %v3579 = vpop.f32.mrf.mxu0
      %v3580 = vadd.f32 0.0, %v3579
      %3581 = vmatprep.mubr.bf16.mxu0 0
      %3582 = vmatmul.mubr.bf16.gmra.mxu0 %v2863
      %v3583 = vpop.f32.mrf.mxu0
      %v3584 = vadd.f32 0.0, %v3583
      %v3585 = vpop.f32.mrf.mxu0
      %v3586 = vadd.f32 0.0, %v3585
      %v3587 = vpop.f32.mrf.mxu0
      %v3588 = vadd.f32 0.0, %v3587
      %v3589 = vpop.f32.mrf.mxu0
      %v3590 = vadd.f32 0.0, %v3589
      %3591 = vmatprep.mubr.bf16.mxu0 0
      %3592 = vmatmul.mubr.bf16.gmra.mxu0 %v2866
      %v3593 = vpop.f32.mrf.mxu0
      %v3594 = vadd.f32 0.0, %v3593
      %v3595 = vpop.f32.mrf.mxu0
      %v3596 = vadd.f32 0.0, %v3595
      %v3597 = vpop.f32.mrf.mxu0
      %v3598 = vadd.f32 0.0, %v3597
      %v3599 = vpop.f32.mrf.mxu0
      %v3600 = vadd.f32 0.0, %v3599
      %3601 = vmatprep.mubr.bf16.mxu0 0
      %3602 = vmatmul.mubr.bf16.gmra.mxu0 %v2869
      %v3603 = vpop.f32.mrf.mxu0
      %v3604 = vadd.f32 0.0, %v3603
      %v3605 = vpop.f32.mrf.mxu0
      %v3606 = vadd.f32 0.0, %v3605
      %v3607 = vpop.f32.mrf.mxu0
      %v3608 = vadd.f32 0.0, %v3607
      %v3609 = vpop.f32.mrf.mxu0
      %v3610 = vadd.f32 0.0, %v3609
      %3611 = vmatprep.mubr.bf16.mxu0 0
      %3612 = vmatmul.mubr.bf16.gmra.mxu0 %v2872
      %v3613 = vpop.f32.mrf.mxu0
      %v3614 = vadd.f32 0.0, %v3613
      %v3615 = vpop.f32.mrf.mxu0
      %v3616 = vadd.f32 0.0, %v3615
      %v3617 = vpop.f32.mrf.mxu0
      %v3618 = vadd.f32 0.0, %v3617
      %v3619 = vpop.f32.mrf.mxu0
      %v3620 = vadd.f32 0.0, %v3619
      %3621 = vmatprep.mubr.bf16.mxu0 0
      %3622 = vmatmul.mubr.bf16.gmra.mxu0 %v2875
      %v3623 = vpop.f32.mrf.mxu0
      %v3624 = vadd.f32 0.0, %v3623
      %v3625 = vpop.f32.mrf.mxu0
      %v3626 = vadd.f32 0.0, %v3625
      %v3627 = vpop.f32.mrf.mxu0
      %v3628 = vadd.f32 0.0, %v3627
      %v3629 = vpop.f32.mrf.mxu0
      %v3630 = vadd.f32 0.0, %v3629
      %3631 = vmatprep.mubr.bf16.mxu0 0
      %3632 = vmatmul.mubr.bf16.gmra.mxu0 %v3286
      %v3633 = vpop.f32.mrf.mxu0
      %v3634 = vadd.f32 0.0, %v3633
      %v3635 = vpop.f32.mrf.mxu0
      %v3636 = vadd.f32 0.0, %v3635
      %v3637 = vpop.f32.mrf.mxu0
      %v3638 = vadd.f32 0.0, %v3637
      %v3639 = vpop.f32.mrf.mxu0
      %v3640 = vadd.f32 0.0, %v3639
      %3641 = vmatprep.mubr.bf16.mxu0 0
      %3642 = vmatmul.mubr.bf16.gmra.mxu0 %v3531
      %v3643 = vpop.f32.mrf.mxu0
      %v3644 = vadd.f32 0.0, %v3643
      %v3645 = vpop.f32.mrf.mxu0
      %v3646 = vadd.f32 0.0, %v3645
      %v3647 = vpop.f32.mrf.mxu0
      %v3648 = vadd.f32 0.0, %v3647
      %v3649 = vpop.f32.mrf.mxu0
      %v3650 = vadd.f32 0.0, %v3649
      %3651 = vdwg.mxu0
      %v3652 = vadd.f32 %v3407, %v3574
      %v3653 = vadd.f32 %v3408, %v3576
      %v3654 = vadd.f32 %v3409, %v3578
      %v3655 = vadd.f32 %v3410, %v3580
      %v3656 = vadd.f32 %v3411, %v3584
      %v3657 = vadd.f32 %v3412, %v3586
      %v3658 = vadd.f32 %v3413, %v3588
      %v3659 = vadd.f32 %v3414, %v3590
      %v3660 = vadd.f32 %v3415, %v3594
      %v3661 = vadd.f32 %v3416, %v3596
      %v3662 = vadd.f32 %v3417, %v3598
      %v3663 = vadd.f32 %v3418, %v3600
      %v3664 = vadd.f32 %v3419, %v3604
      %v3665 = vadd.f32 %v3420, %v3606
      %v3666 = vadd.f32 %v3421, %v3608
      %v3667 = vadd.f32 %v3422, %v3610
      %v3668 = vadd.f32 %v3423, %v3614
      %v3669 = vadd.f32 %v3424, %v3616
      %v3670 = vadd.f32 %v3425, %v3618
      %v3671 = vadd.f32 %v3426, %v3620
      %v3672 = vadd.f32 %v3427, %v3624
      %v3673 = vadd.f32 %v3428, %v3626
      %v3674 = vadd.f32 %v3429, %v3628
      %v3675 = vadd.f32 %v3430, %v3630
      %v3676 = vadd.f32 %v3431, %v3634
      %v3677 = vadd.f32 %v3432, %v3636
      %v3678 = vadd.f32 %v3433, %v3638
      %v3679 = vadd.f32 %v3434, %v3640
      %v3680 = vadd.f32 %v3435, %v3644
      %v3681 = vadd.f32 %v3436, %v3646
      %v3682 = vadd.f32 %v3437, %v3648
      %v3683 = vadd.f32 %v3438, %v3650
      %s3684 = scalar_lea.vmem %s3, 480
      %v3685 = vld [vmem:[%s3684] sm:$0xff]
      %v3686 = vld [vmem:[%s3684 + $0x8] sm:$0xff]
      %v3687 = vld [vmem:[%s3684 + $0x10] sm:$0xff]
      %v3688 = vld [vmem:[%s3684 + $0x18] sm:$0xff]
      %v3689 = vld [vmem:[%s3684 + $0x20] sm:$0xff]
      %v3690 = vld [vmem:[%s3684 + $0x28] sm:$0xff]
      %v3691 = vld [vmem:[%s3684 + $0x30] sm:$0xff]
      %v3692 = vld [vmem:[%s3684 + $0x38] sm:$0xff]
      %v3693 = vld [vmem:[%s3684 + $0x40] sm:$0xff]
      %v3694 = vld [vmem:[%s3684 + $0x48] sm:$0xff]
      %v3695 = vld [vmem:[%s3684 + $0x50] sm:$0xff]
      %v3696 = vld [vmem:[%s3684 + $0x58] sm:$0xff]
      %v3697 = vld [vmem:[%s3684 + $0x60] sm:$0xff]
      %v3698 = vld [vmem:[%s3684 + $0x68] sm:$0xff]
      %v3699 = vld [vmem:[%s3684 + $0x70] sm:$0xff]
      %v3715 = vunpack.c.l.b16 %v3685
      %v3716 = vunpack.c.h.b16 %v3685
      %v3717 = vunpack.c.l.b16 %v3686
      %v3718 = vunpack.c.h.b16 %v3686
      %v3719 = vunpack.c.l.b16 %v3687
      %v3720 = vunpack.c.h.b16 %v3687
      %v3721 = vunpack.c.l.b16 %v3688
      %v3722 = vunpack.c.h.b16 %v3688
      %v3723 = vunpack.c.l.b16 %v3689
      %v3724 = vunpack.c.h.b16 %v3689
      %v3725 = vunpack.c.l.b16 %v3690
      %v3726 = vunpack.c.h.b16 %v3690
      %v3727 = vunpack.c.l.b16 %v3691
      %v3728 = vunpack.c.h.b16 %v3691
      %v3729 = vunpack.c.l.b16 %v3692
      %v3730 = vunpack.c.h.b16 %v3692
      %v3731 = vunpack.c.l.b16 %v3693
      %v3732 = vunpack.c.h.b16 %v3693
      %v3733 = vunpack.c.l.b16 %v3694
      %v3734 = vunpack.c.h.b16 %v3694
      %v3735 = vunpack.c.l.b16 %v3695
      %v3736 = vunpack.c.h.b16 %v3695
      %v3737 = vunpack.c.l.b16 %v3696
      %v3738 = vunpack.c.h.b16 %v3696
      %v3739 = vunpack.c.l.b16 %v3697
      %v3740 = vunpack.c.h.b16 %v3697
      %v3741 = vunpack.c.l.b16 %v3698
      %v3742 = vunpack.c.h.b16 %v3698
      %v3743 = vunpack.c.l.b16 %v3699
      %v3744 = vunpack.c.h.b16 %v3699
      %v3745 = vpack.c.b16 %v3717, %v3715
      %v3746 = vpack.c.b16 %v3718, %v3716
      %v3747 = vpack.c.b16 %v3721, %v3719
      %v3748 = vpack.c.b16 %v3722, %v3720
      %v3749 = vpack.c.b16 %v3725, %v3723
      %v3750 = vpack.c.b16 %v3726, %v3724
      %v3751 = vpack.c.b16 %v3729, %v3727
      %v3752 = vpack.c.b16 %v3730, %v3728
      %v3753 = vpack.c.b16 %v3733, %v3731
      %v3754 = vpack.c.b16 %v3734, %v3732
      %v3755 = vpack.c.b16 %v3737, %v3735
      %v3756 = vpack.c.b16 %v3738, %v3736
      %v3757 = vpack.c.b16 %v3741, %v3739
      %v3758 = vpack.c.b16 %v3742, %v3740
      %v3759 = vpack.c.b16 %v3743, %v3743
      %v3760 = vpack.c.b16 %v3744, %v3744
      %v3776 = vsel %vm2852, %v2745, 0
      %v3779 = vsel %vm2877, %v3759, 0
      %v3782 = vsel %vm2877, %v3760, 0
      %3784 = vmatprep.subr.bf16.mxu0 %v3782
      %3785 = vmatpush1.bf16.msra.mxu0 %v3779
      %3786 = vmatprep.subr.bf16.mxu0 %v3758
      %3787 = vmatpush1.bf16.msra.mxu0 %v3757
      %3788 = vmatprep.subr.bf16.mxu0 %v3756
      %3789 = vmatpush1.bf16.msra.mxu0 %v3755
      %3790 = vmatprep.subr.bf16.mxu0 %v3754
      %3791 = vmatpush1.bf16.msra.mxu0 %v3753
      %3792 = vmatprep.subr.bf16.mxu0 %v3752
      %3793 = vmatpush1.bf16.msra.mxu0 %v3751
      %3794 = vmatprep.subr.bf16.mxu0 %v3750
      %3795 = vmatpush1.bf16.msra.mxu0 %v3749
      %3796 = vmatprep.subr.bf16.mxu0 %v3748
      %3797 = vmatpush1.bf16.msra.mxu0 %v3747
      %3798 = vmatprep.subr.bf16.mxu0 %v3746
      %3799 = vmatpush1.bf16.msra.mxu0 %v3745
      %3800 = vmatprep.subr.bf16.mxu0 0
      %3801 = vmatpush2.bf16.msra.mxu0 0
      %3802 = vmatprep.subr.bf16.mxu0 0
      %3803 = vmatpush2.bf16.msra.mxu0 0
      %3804 = vmatprep.subr.bf16.mxu0 0
      %3805 = vmatpush2.bf16.msra.mxu0 0
      %3806 = vmatprep.subr.bf16.mxu0 0
      %3807 = vmatpush2.bf16.msra.mxu0 0
      %3808 = vmatprep.subr.bf16.mxu0 0
      %3809 = vmatpush2.bf16.msra.mxu0 0
      %3810 = vmatprep.subr.bf16.mxu0 0
      %3811 = vmatpush2.bf16.msra.mxu0 0
      %3812 = vmatprep.subr.bf16.mxu0 0
      %3813 = vmatpush2.bf16.msra.mxu0 0
      %3814 = vmatprep.subr.bf16.mxu0 0
      %3815 = vmatpush2.bf16.msra.mxu0 0
      %3816 = vmatprep.mubr.bf16.mxu0 0
      %3817 = vmatmul.mubr.bf16.gmra.mxu0 %v2863
      %v3818 = vpop.f32.mrf.mxu0
      %v3819 = vadd.f32 0.0, %v3818
      %v3820 = vpop.f32.mrf.mxu0
      %v3821 = vadd.f32 0.0, %v3820
      %v3822 = vpop.f32.mrf.mxu0
      %v3823 = vadd.f32 0.0, %v3822
      %v3824 = vpop.f32.mrf.mxu0
      %v3825 = vadd.f32 0.0, %v3824
      %3826 = vmatprep.mubr.bf16.mxu0 0
      %3827 = vmatmul.mubr.bf16.gmra.mxu0 %v2866
      %v3828 = vpop.f32.mrf.mxu0
      %v3829 = vadd.f32 0.0, %v3828
      %v3830 = vpop.f32.mrf.mxu0
      %v3831 = vadd.f32 0.0, %v3830
      %v3832 = vpop.f32.mrf.mxu0
      %v3833 = vadd.f32 0.0, %v3832
      %v3834 = vpop.f32.mrf.mxu0
      %v3835 = vadd.f32 0.0, %v3834
      %3836 = vmatprep.mubr.bf16.mxu0 0
      %3837 = vmatmul.mubr.bf16.gmra.mxu0 %v2869
      %v3838 = vpop.f32.mrf.mxu0
      %v3839 = vadd.f32 0.0, %v3838
      %v3840 = vpop.f32.mrf.mxu0
      %v3841 = vadd.f32 0.0, %v3840
      %v3842 = vpop.f32.mrf.mxu0
      %v3843 = vadd.f32 0.0, %v3842
      %v3844 = vpop.f32.mrf.mxu0
      %v3845 = vadd.f32 0.0, %v3844
      %3846 = vmatprep.mubr.bf16.mxu0 0
      %3847 = vmatmul.mubr.bf16.gmra.mxu0 %v2872
      %v3848 = vpop.f32.mrf.mxu0
      %v3849 = vadd.f32 0.0, %v3848
      %v3850 = vpop.f32.mrf.mxu0
      %v3851 = vadd.f32 0.0, %v3850
      %v3852 = vpop.f32.mrf.mxu0
      %v3853 = vadd.f32 0.0, %v3852
      %v3854 = vpop.f32.mrf.mxu0
      %v3855 = vadd.f32 0.0, %v3854
      %3856 = vmatprep.mubr.bf16.mxu0 0
      %3857 = vmatmul.mubr.bf16.gmra.mxu0 %v2875
      %v3858 = vpop.f32.mrf.mxu0
      %v3859 = vadd.f32 0.0, %v3858
      %v3860 = vpop.f32.mrf.mxu0
      %v3861 = vadd.f32 0.0, %v3860
      %v3862 = vpop.f32.mrf.mxu0
      %v3863 = vadd.f32 0.0, %v3862
      %v3864 = vpop.f32.mrf.mxu0
      %v3865 = vadd.f32 0.0, %v3864
      %3866 = vmatprep.mubr.bf16.mxu0 0
      %3867 = vmatmul.mubr.bf16.gmra.mxu0 %v3286
      %v3868 = vpop.f32.mrf.mxu0
      %v3869 = vadd.f32 0.0, %v3868
      %v3870 = vpop.f32.mrf.mxu0
      %v3871 = vadd.f32 0.0, %v3870
      %v3872 = vpop.f32.mrf.mxu0
      %v3873 = vadd.f32 0.0, %v3872
      %v3874 = vpop.f32.mrf.mxu0
      %v3875 = vadd.f32 0.0, %v3874
      %3876 = vmatprep.mubr.bf16.mxu0 0
      %3877 = vmatmul.mubr.bf16.gmra.mxu0 %v3531
      %v3878 = vpop.f32.mrf.mxu0
      %v3879 = vadd.f32 0.0, %v3878
      %v3880 = vpop.f32.mrf.mxu0
      %v3881 = vadd.f32 0.0, %v3880
      %v3882 = vpop.f32.mrf.mxu0
      %v3883 = vadd.f32 0.0, %v3882
      %v3884 = vpop.f32.mrf.mxu0
      %v3885 = vadd.f32 0.0, %v3884
      %3886 = vmatprep.mubr.bf16.mxu0 0
      %3887 = vmatmul.mubr.bf16.gmra.mxu0 %v3776
      %v3888 = vpop.f32.mrf.mxu0
      %v3889 = vadd.f32 0.0, %v3888
      %v3890 = vpop.f32.mrf.mxu0
      %v3891 = vadd.f32 0.0, %v3890
      %v3892 = vpop.f32.mrf.mxu0
      %v3893 = vadd.f32 0.0, %v3892
      %v3894 = vpop.f32.mrf.mxu0
      %v3895 = vadd.f32 0.0, %v3894
      %3896 = vdwg.mxu0
      %v3897 = vadd.f32 %v3652, %v3819
      %v3898 = vadd.f32 %v3653, %v3821
      %v3899 = vadd.f32 %v3654, %v3823
      %v3900 = vadd.f32 %v3655, %v3825
      %v3901 = vadd.f32 %v3656, %v3829
      %v3902 = vadd.f32 %v3657, %v3831
      %v3903 = vadd.f32 %v3658, %v3833
      %v3904 = vadd.f32 %v3659, %v3835
      %v3905 = vadd.f32 %v3660, %v3839
      %v3906 = vadd.f32 %v3661, %v3841
      %v3907 = vadd.f32 %v3662, %v3843
      %v3908 = vadd.f32 %v3663, %v3845
      %v3909 = vadd.f32 %v3664, %v3849
      %v3910 = vadd.f32 %v3665, %v3851
      %v3911 = vadd.f32 %v3666, %v3853
      %v3912 = vadd.f32 %v3667, %v3855
      %v3913 = vadd.f32 %v3668, %v3859
      %v3914 = vadd.f32 %v3669, %v3861
      %v3915 = vadd.f32 %v3670, %v3863
      %v3916 = vadd.f32 %v3671, %v3865
      %v3917 = vadd.f32 %v3672, %v3869
      %v3918 = vadd.f32 %v3673, %v3871
      %v3919 = vadd.f32 %v3674, %v3873
      %v3920 = vadd.f32 %v3675, %v3875
      %v3921 = vadd.f32 %v3676, %v3879
      %v3922 = vadd.f32 %v3677, %v3881
      %v3923 = vadd.f32 %v3678, %v3883
      %v3924 = vadd.f32 %v3679, %v3885
      %v3925 = vadd.f32 %v3680, %v3889
      %v3926 = vadd.f32 %v3681, %v3891
      %v3927 = vadd.f32 %v3682, %v3893
      %v3928 = vadd.f32 %v3683, %v3895
      %v3929 = vmax.f32 %v3897, %v3901
      %v3930 = vmax.f32 %v3898, %v3902
      %v3931 = vmax.f32 %v3899, %v3903
      %v3932 = vmax.f32 %v3900, %v3904
      %v3933 = vmax.f32 %v3905, %v3909
      %v3934 = vmax.f32 %v3906, %v3910
      %v3935 = vmax.f32 %v3907, %v3911
      %v3936 = vmax.f32 %v3908, %v3912
      %v3937 = vmax.f32 %v3913, %v3917
      %v3938 = vmax.f32 %v3914, %v3918
      %v3939 = vmax.f32 %v3915, %v3919
      %v3940 = vmax.f32 %v3916, %v3920
      %v3941 = vmax.f32 %v3921, %v3925
      %v3942 = vmax.f32 %v3922, %v3926
      %v3943 = vmax.f32 %v3923, %v3927
      %v3944 = vmax.f32 %v3924, %v3928
      %3961 = vrot.lane.b32.xlu0 %v3929, 48
      %v3962 = vpop.permute.xlu0 %3961
      %3963 = vrot.lane.b32.xlu0 %v3930, 48
      %v3964 = vpop.permute.xlu0 %3963
      %3965 = vrot.lane.b32.xlu0 %v3931, 48
      %v3966 = vpop.permute.xlu0 %3965
      %3967 = vrot.lane.b32.xlu0 %v3932, 48
      %v3968 = vpop.permute.xlu0 %3967
      %3969 = vrot.lane.b32.xlu0 %v3933, 48
      %v3970 = vpop.permute.xlu0 %3969
      %3971 = vrot.lane.b32.xlu0 %v3934, 48
      %v3972 = vpop.permute.xlu0 %3971
      %3973 = vrot.lane.b32.xlu0 %v3935, 48
      %v3974 = vpop.permute.xlu0 %3973
      %3975 = vrot.lane.b32.xlu0 %v3936, 48
      %v3976 = vpop.permute.xlu0 %3975
      %3977 = vrot.lane.b32.xlu0 %v3937, 48
      %v3978 = vpop.permute.xlu0 %3977
      %3979 = vrot.lane.b32.xlu0 %v3938, 48
      %v3980 = vpop.permute.xlu0 %3979
      %3981 = vrot.lane.b32.xlu0 %v3939, 48
      %v3982 = vpop.permute.xlu0 %3981
      %3983 = vrot.lane.b32.xlu0 %v3940, 48
      %v3984 = vpop.permute.xlu0 %3983
      %3985 = vrot.lane.b32.xlu0 %v3941, 48
      %v3986 = vpop.permute.xlu0 %3985
      %3987 = vrot.lane.b32.xlu0 %v3942, 48
      %v3988 = vpop.permute.xlu0 %3987
      %3989 = vrot.lane.b32.xlu0 %v3943, 48
      %v3990 = vpop.permute.xlu0 %3989
      %3991 = vrot.lane.b32.xlu0 %v3944, 48
      %v3992 = vpop.permute.xlu0 %3991
      %vm3993 = vcmask 392192
      %v3994 = vsel %vm3993, %v3962, %v3964
      %v3995 = vsel %vm3993, %v3966, %v3968
      %v3996 = vsel %vm3993, %v3970, %v3972
      %v3997 = vsel %vm3993, %v3974, %v3976
      %v3998 = vsel %vm3993, %v3978, %v3980
      %v3999 = vsel %vm3993, %v3982, %v3984
      %v4000 = vsel %vm3993, %v3986, %v3988
      %v4001 = vsel %vm3993, %v3990, %v3992
      %v4010 = vmax.f32 %v3929, %v3994
      %v4011 = vmax.f32 %v3931, %v3995
      %v4012 = vmax.f32 %v3933, %v3996
      %v4013 = vmax.f32 %v3935, %v3997
      %v4014 = vmax.f32 %v3937, %v3998
      %v4015 = vmax.f32 %v3939, %v3999
      %v4016 = vmax.f32 %v3941, %v4000
      %v4017 = vmax.f32 %v3943, %v4001
      %v4018 = vld [vmem:[%s4] sm:$0x1]
      %v4020 = vlaneseq
      %v4021 = vshrl.u32 %v4020, 7
      %v4022 = vsub.s32 0, %v4021
      %v4023 = vrot.slane %v4018, %v4022
      %v4025 = vadd.f32 %v4010, %v4023
      %v4026 = vadd.f32 %v4011, %v4023
      %v4027 = vadd.f32 %v4012, %v4023
      %v4028 = vadd.f32 %v4013, %v4023
      %v4029 = vadd.f32 %v4014, %v4023
      %v4030 = vadd.f32 %v4015, %v4023
      %v4031 = vadd.f32 %v4016, %v4023
      %v4032 = vadd.f32 %v4017, %v4023
      %v4033 = vmax.f32 %v4025, 0.0
      %v4034 = vmax.f32 %v4026, 0.0
      %v4035 = vmax.f32 %v4027, 0.0
      %v4036 = vmax.f32 %v4028, 0.0
      %v4037 = vmax.f32 %v4029, 0.0
      %v4038 = vmax.f32 %v4030, 0.0
      %v4039 = vmax.f32 %v4031, 0.0
      %v4040 = vmax.f32 %v4032, 0.0
      %v4041 = vpack.c.bf16 %v4034, %v4033
      %v4042 = vpack.c.bf16 %v4036, %v4035
      %v4043 = vpack.c.bf16 %v4038, %v4037
      %v4044 = vpack.c.bf16 %v4040, %v4039
      %v4045 = vld [vmem:[%s6] sm:$0x1]
      %v4046 = vld [vmem:[%s5] sm:$0xf]
      %v4047 = vld [vmem:[%s5 + $0x4] sm:$0xf]
      %v4048 = vld [vmem:[%s5 + $0x8] sm:$0xf]
      %v4049 = vld [vmem:[%s5 + $0xc] sm:$0xf]
      %v4050 = vld [vmem:[%s5 + $0x10] sm:$0xf]
      %v4051 = vld [vmem:[%s5 + $0x14] sm:$0xf]
      %v4052 = vld [vmem:[%s5 + $0x18] sm:$0xf]
      %v4053 = vld [vmem:[%s5 + $0x1c] sm:$0xf]
      %v4054 = vld [vmem:[%s5 + $0x20] sm:$0xf]
      %v4055 = vld [vmem:[%s5 + $0x24] sm:$0xf]
      %v4066 = vunpack.c.l.b16 %v4046
      %v4067 = vunpack.c.l.b16 %v4047
      %v4068 = vunpack.c.l.b16 %v4048
      %v4069 = vunpack.c.l.b16 %v4049
      %v4070 = vunpack.c.l.b16 %v4050
      %v4071 = vunpack.c.l.b16 %v4051
      %v4072 = vunpack.c.l.b16 %v4052
      %v4073 = vunpack.c.l.b16 %v4053
      %v4074 = vunpack.c.l.b16 %v4054
      %v4075 = vunpack.c.l.b16 %v4055
      %v4076 = vpack.c.b16 %v4067, %v4066
      %v4077 = vpack.c.b16 %v4069, %v4068
      %v4078 = vpack.c.b16 %v4071, %v4070
      %v4079 = vpack.c.b16 %v4073, %v4072
      %v4080 = vpack.c.b16 %v4075, %v4074
      %vm4086 = vcmask 654336
      %v4088 = vsel %vm4086, %v4041, 0
      %4090 = vmatprep.subr.bf16.mxu0 0
      %4091 = vmatpush1.bf16.msra.mxu0 0
      %4092 = vmatprep.subr.bf16.mxu0 0
      %4093 = vmatpush1.bf16.msra.mxu0 0
      %4094 = vmatprep.subr.bf16.mxu0 0
      %4095 = vmatpush1.bf16.msra.mxu0 0
      %4096 = vmatprep.subr.bf16.mxu0 0
      %4097 = vmatpush1.bf16.msra.mxu0 %v4080
      %4098 = vmatprep.subr.bf16.mxu0 0
      %4099 = vmatpush1.bf16.msra.mxu0 %v4079
      %4100 = vmatprep.subr.bf16.mxu0 0
      %4101 = vmatpush1.bf16.msra.mxu0 %v4078
      %4102 = vmatprep.subr.bf16.mxu0 0
      %4103 = vmatpush1.bf16.msra.mxu0 %v4077
      %4104 = vmatprep.subr.bf16.mxu0 0
      %4105 = vmatpush1.bf16.msra.mxu0 %v4076
      %4106 = vmatprep.subr.bf16.mxu0 0
      %4107 = vmatpush2.bf16.msra.mxu0 0
      %4108 = vmatprep.subr.bf16.mxu0 0
      %4109 = vmatpush2.bf16.msra.mxu0 0
      %4110 = vmatprep.subr.bf16.mxu0 0
      %4111 = vmatpush2.bf16.msra.mxu0 0
      %4112 = vmatprep.subr.bf16.mxu0 0
      %4113 = vmatpush2.bf16.msra.mxu0 0
      %4114 = vmatprep.subr.bf16.mxu0 0
      %4115 = vmatpush2.bf16.msra.mxu0 0
      %4116 = vmatprep.subr.bf16.mxu0 0
      %4117 = vmatpush2.bf16.msra.mxu0 0
      %4118 = vmatprep.subr.bf16.mxu0 0
      %4119 = vmatpush2.bf16.msra.mxu0 0
      %4120 = vmatprep.subr.bf16.mxu0 0
      %4121 = vmatpush2.bf16.msra.mxu0 0
      %4122 = vmatprep.mubr.bf16.mxu0 0
      %4123 = vmatmul.mubr.bf16.gmra.mxu0 %v4088
      %v4124 = vpop.f32.mrf.mxu0
      %v4125 = vadd.f32 0.0, %v4124
      %v4126 = vpop.f32.mrf.mxu0
      %v4127 = vpop.f32.mrf.mxu0
      %v4128 = vadd.f32 0.0, %v4127
      %v4129 = vpop.f32.mrf.mxu0
      %4130 = vdwg.mxu0
      %v4132 = vlaneseq
      %v4133 = vshrl.u32 %v4132, 7
      %v4134 = vsub.s32 0, %v4133
      %v4135 = vrot.slane %v4045, %v4134
      %v4137 = vadd.f32 %v4135, %v4125
      %v4138 = vadd.f32 %v4135, %v4128
      %v4139 = vld [vmem:[%s5 + $0x28] sm:$0xf]
      %v4140 = vld [vmem:[%s5 + $0x2c] sm:$0xf]
      %v4141 = vld [vmem:[%s5 + $0x30] sm:$0xf]
      %v4142 = vld [vmem:[%s5 + $0x34] sm:$0xf]
      %v4143 = vld [vmem:[%s5 + $0x38] sm:$0xf]
      %v4144 = vld [vmem:[%s5 + $0x3c] sm:$0xf]
      %v4145 = vld [vmem:[%s5 + $0x40] sm:$0xf]
      %v4146 = vld [vmem:[%s5 + $0x44] sm:$0xf]
      %v4147 = vld [vmem:[%s5 + $0x48] sm:$0xf]
      %v4148 = vld [vmem:[%s5 + $0x4c] sm:$0xf]
      %v4159 = vunpack.c.l.b16 %v4139
      %v4160 = vunpack.c.l.b16 %v4140
      %v4161 = vunpack.c.l.b16 %v4141
      %v4162 = vunpack.c.l.b16 %v4142
      %v4163 = vunpack.c.l.b16 %v4143
      %v4164 = vunpack.c.l.b16 %v4144
      %v4165 = vunpack.c.l.b16 %v4145
      %v4166 = vunpack.c.l.b16 %v4146
      %v4167 = vunpack.c.l.b16 %v4147
      %v4168 = vunpack.c.l.b16 %v4148
      %v4169 = vpack.c.b16 %v4160, %v4159
      %v4170 = vpack.c.b16 %v4162, %v4161
      %v4171 = vpack.c.b16 %v4164, %v4163
      %v4172 = vpack.c.b16 %v4166, %v4165
      %v4173 = vpack.c.b16 %v4168, %v4167
      %v4180 = vsel %vm4086, %v4042, 0
      %4182 = vmatprep.subr.bf16.mxu0 0
      %4183 = vmatpush1.bf16.msra.mxu0 0
      %4184 = vmatprep.subr.bf16.mxu0 0
      %4185 = vmatpush1.bf16.msra.mxu0 0
      %4186 = vmatprep.subr.bf16.mxu0 0
      %4187 = vmatpush1.bf16.msra.mxu0 0
      %4188 = vmatprep.subr.bf16.mxu0 0
      %4189 = vmatpush1.bf16.msra.mxu0 %v4173
      %4190 = vmatprep.subr.bf16.mxu0 0
      %4191 = vmatpush1.bf16.msra.mxu0 %v4172
      %4192 = vmatprep.subr.bf16.mxu0 0
      %4193 = vmatpush1.bf16.msra.mxu0 %v4171
      %4194 = vmatprep.subr.bf16.mxu0 0
      %4195 = vmatpush1.bf16.msra.mxu0 %v4170
      %4196 = vmatprep.subr.bf16.mxu0 0
      %4197 = vmatpush1.bf16.msra.mxu0 %v4169
      %4198 = vmatprep.subr.bf16.mxu0 0
      %4199 = vmatpush2.bf16.msra.mxu0 0
      %4200 = vmatprep.subr.bf16.mxu0 0
      %4201 = vmatpush2.bf16.msra.mxu0 0
      %4202 = vmatprep.subr.bf16.mxu0 0
      %4203 = vmatpush2.bf16.msra.mxu0 0
      %4204 = vmatprep.subr.bf16.mxu0 0
      %4205 = vmatpush2.bf16.msra.mxu0 0
      %4206 = vmatprep.subr.bf16.mxu0 0
      %4207 = vmatpush2.bf16.msra.mxu0 0
      %4208 = vmatprep.subr.bf16.mxu0 0
      %4209 = vmatpush2.bf16.msra.mxu0 0
      %4210 = vmatprep.subr.bf16.mxu0 0
      %4211 = vmatpush2.bf16.msra.mxu0 0
      %4212 = vmatprep.subr.bf16.mxu0 0
      %4213 = vmatpush2.bf16.msra.mxu0 0
      %4214 = vmatprep.mubr.bf16.mxu0 0
      %4215 = vmatmul.mubr.bf16.gmra.mxu0 %v4180
      %v4216 = vpop.f32.mrf.mxu0
      %v4217 = vadd.f32 0.0, %v4216
      %v4218 = vpop.f32.mrf.mxu0
      %v4219 = vpop.f32.mrf.mxu0
      %v4220 = vadd.f32 0.0, %v4219
      %v4221 = vpop.f32.mrf.mxu0
      %4222 = vdwg.mxu0
      %v4223 = vadd.f32 %v4137, %v4217
      %v4224 = vadd.f32 %v4138, %v4220
      %v4225 = vld [vmem:[%s5 + $0x50] sm:$0xf]
      %v4226 = vld [vmem:[%s5 + $0x54] sm:$0xf]
      %v4227 = vld [vmem:[%s5 + $0x58] sm:$0xf]
      %v4228 = vld [vmem:[%s5 + $0x5c] sm:$0xf]
      %v4229 = vld [vmem:[%s5 + $0x60] sm:$0xf]
      %v4230 = vld [vmem:[%s5 + $0x64] sm:$0xf]
      %v4231 = vld [vmem:[%s5 + $0x68] sm:$0xf]
      %v4232 = vld [vmem:[%s5 + $0x6c] sm:$0xf]
      %v4233 = vld [vmem:[%s5 + $0x70] sm:$0xf]
      %v4234 = vld [vmem:[%s5 + $0x74] sm:$0xf]
      %v4245 = vunpack.c.l.b16 %v4225
      %v4246 = vunpack.c.l.b16 %v4226
      %v4247 = vunpack.c.l.b16 %v4227
      %v4248 = vunpack.c.l.b16 %v4228
      %v4249 = vunpack.c.l.b16 %v4229
      %v4250 = vunpack.c.l.b16 %v4230
      %v4251 = vunpack.c.l.b16 %v4231
      %v4252 = vunpack.c.l.b16 %v4232
      %v4253 = vunpack.c.l.b16 %v4233
      %v4254 = vunpack.c.l.b16 %v4234
      %v4255 = vpack.c.b16 %v4246, %v4245
      %v4256 = vpack.c.b16 %v4248, %v4247
      %v4257 = vpack.c.b16 %v4250, %v4249
      %v4258 = vpack.c.b16 %v4252, %v4251
      %v4259 = vpack.c.b16 %v4254, %v4253
      %v4266 = vsel %vm4086, %v4043, 0
      %4268 = vmatprep.subr.bf16.mxu0 0
      %4269 = vmatpush1.bf16.msra.mxu0 0
      %4270 = vmatprep.subr.bf16.mxu0 0
      %4271 = vmatpush1.bf16.msra.mxu0 0
      %4272 = vmatprep.subr.bf16.mxu0 0
      %4273 = vmatpush1.bf16.msra.mxu0 0
      %4274 = vmatprep.subr.bf16.mxu0 0
      %4275 = vmatpush1.bf16.msra.mxu0 %v4259
      %4276 = vmatprep.subr.bf16.mxu0 0
      %4277 = vmatpush1.bf16.msra.mxu0 %v4258
      %4278 = vmatprep.subr.bf16.mxu0 0
      %4279 = vmatpush1.bf16.msra.mxu0 %v4257
      %4280 = vmatprep.subr.bf16.mxu0 0
      %4281 = vmatpush1.bf16.msra.mxu0 %v4256
      %4282 = vmatprep.subr.bf16.mxu0 0
      %4283 = vmatpush1.bf16.msra.mxu0 %v4255
      %4284 = vmatprep.subr.bf16.mxu0 0
      %4285 = vmatpush2.bf16.msra.mxu0 0
      %4286 = vmatprep.subr.bf16.mxu0 0
      %4287 = vmatpush2.bf16.msra.mxu0 0
      %4288 = vmatprep.subr.bf16.mxu0 0
      %4289 = vmatpush2.bf16.msra.mxu0 0
      %4290 = vmatprep.subr.bf16.mxu0 0
      %4291 = vmatpush2.bf16.msra.mxu0 0
      %4292 = vmatprep.subr.bf16.mxu0 0
      %4293 = vmatpush2.bf16.msra.mxu0 0
      %4294 = vmatprep.subr.bf16.mxu0 0
      %4295 = vmatpush2.bf16.msra.mxu0 0
      %4296 = vmatprep.subr.bf16.mxu0 0
      %4297 = vmatpush2.bf16.msra.mxu0 0
      %4298 = vmatprep.subr.bf16.mxu0 0
      %4299 = vmatpush2.bf16.msra.mxu0 0
      %4300 = vmatprep.mubr.bf16.mxu0 0
      %4301 = vmatmul.mubr.bf16.gmra.mxu0 %v4266
      %v4302 = vpop.f32.mrf.mxu0
      %v4303 = vadd.f32 0.0, %v4302
      %v4304 = vpop.f32.mrf.mxu0
      %v4305 = vpop.f32.mrf.mxu0
      %v4306 = vadd.f32 0.0, %v4305
      %v4307 = vpop.f32.mrf.mxu0
      %4308 = vdwg.mxu0
      %v4309 = vadd.f32 %v4223, %v4303
      %v4310 = vadd.f32 %v4224, %v4306
      %v4311 = vld [vmem:[%s5 + $0x78] sm:$0xf]
      %v4312 = vld [vmem:[%s5 + $0x7c] sm:$0xf]
      %v4313 = vld [vmem:[%s5 + $0x80] sm:$0xf]
      %v4314 = vld [vmem:[%s5 + $0x84] sm:$0xf]
      %v4315 = vld [vmem:[%s5 + $0x88] sm:$0xf]
      %v4316 = vld [vmem:[%s5 + $0x8c] sm:$0xf]
      %v4317 = vld [vmem:[%s5 + $0x90] sm:$0xf]
      %v4318 = vld [vmem:[%s5 + $0x94] sm:$0xf]
      %v4319 = vld [vmem:[%s5 + $0x98] sm:$0xf]
      %v4320 = vld [vmem:[%s5 + $0x9c] sm:$0xf]
      %v4331 = vunpack.c.l.b16 %v4311
      %v4332 = vunpack.c.l.b16 %v4312
      %v4333 = vunpack.c.l.b16 %v4313
      %v4334 = vunpack.c.l.b16 %v4314
      %v4335 = vunpack.c.l.b16 %v4315
      %v4336 = vunpack.c.l.b16 %v4316
      %v4337 = vunpack.c.l.b16 %v4317
      %v4338 = vunpack.c.l.b16 %v4318
      %v4339 = vunpack.c.l.b16 %v4319
      %v4340 = vunpack.c.l.b16 %v4320
      %v4341 = vpack.c.b16 %v4332, %v4331
      %v4342 = vpack.c.b16 %v4334, %v4333
      %v4343 = vpack.c.b16 %v4336, %v4335
      %v4344 = vpack.c.b16 %v4338, %v4337
      %v4345 = vpack.c.b16 %v4340, %v4339
      %v4352 = vsel %vm4086, %v4044, 0
      %4354 = vmatprep.subr.bf16.mxu0 0
      %4355 = vmatpush1.bf16.msra.mxu0 0
      %4356 = vmatprep.subr.bf16.mxu0 0
      %4357 = vmatpush1.bf16.msra.mxu0 0
      %4358 = vmatprep.subr.bf16.mxu0 0
      %4359 = vmatpush1.bf16.msra.mxu0 0
      %4360 = vmatprep.subr.bf16.mxu0 0
      %4361 = vmatpush1.bf16.msra.mxu0 %v4345
      %4362 = vmatprep.subr.bf16.mxu0 0
      %4363 = vmatpush1.bf16.msra.mxu0 %v4344
      %4364 = vmatprep.subr.bf16.mxu0 0
      %4365 = vmatpush1.bf16.msra.mxu0 %v4343
      %4366 = vmatprep.subr.bf16.mxu0 0
      %4367 = vmatpush1.bf16.msra.mxu0 %v4342
      %4368 = vmatprep.subr.bf16.mxu0 0
      %4369 = vmatpush1.bf16.msra.mxu0 %v4341
      %4370 = vmatprep.subr.bf16.mxu0 0
      %4371 = vmatpush2.bf16.msra.mxu0 0
      %4372 = vmatprep.subr.bf16.mxu0 0
      %4373 = vmatpush2.bf16.msra.mxu0 0
      %4374 = vmatprep.subr.bf16.mxu0 0
      %4375 = vmatpush2.bf16.msra.mxu0 0
      %4376 = vmatprep.subr.bf16.mxu0 0
      %4377 = vmatpush2.bf16.msra.mxu0 0
      %4378 = vmatprep.subr.bf16.mxu0 0
      %4379 = vmatpush2.bf16.msra.mxu0 0
      %4380 = vmatprep.subr.bf16.mxu0 0
      %4381 = vmatpush2.bf16.msra.mxu0 0
      %4382 = vmatprep.subr.bf16.mxu0 0
      %4383 = vmatpush2.bf16.msra.mxu0 0
      %4384 = vmatprep.subr.bf16.mxu0 0
      %4385 = vmatpush2.bf16.msra.mxu0 0
      %4386 = vmatprep.mubr.bf16.mxu0 0
      %4387 = vmatmul.mubr.bf16.gmra.mxu0 %v4352
      %v4388 = vpop.f32.mrf.mxu0
      %v4389 = vadd.f32 0.0, %v4388
      %v4390 = vpop.f32.mrf.mxu0
      %v4391 = vpop.f32.mrf.mxu0
      %v4392 = vadd.f32 0.0, %v4391
      %v4393 = vpop.f32.mrf.mxu0
      %4394 = vdwg.mxu0
      %v4395 = vadd.f32 %v4309, %v4389
      %v4396 = vadd.f32 %v4310, %v4392
      %v4397 = vmax.f32 %v4395, 0.0
      %v4398 = vmax.f32 %v4396, 0.0
      %v4399 = vpack.c.bf16 %v4398, %v4397
      %v4400 = vld [vmem:[%s7] sm:$0xf]
      %v4401 = vld [vmem:[%s7 + $0x4] sm:$0xf]
      %v4402 = vld [vmem:[%s7 + $0x8] sm:$0xf]
      %v4403 = vld [vmem:[%s7 + $0xc] sm:$0xf]
      %v4404 = vld [vmem:[%s7 + $0x10] sm:$0xf]
      %v4405 = vld [vmem:[%s7 + $0x14] sm:$0xf]
      %v4406 = vld [vmem:[%s7 + $0x18] sm:$0x1]
      %v4407 = vld [vmem:[%s8] sm:$0x1]
      %v4409 = vlaneseq
      %v4410 = vshrl.u32 %v4409, 7
      %v4411 = vsub.s32 0, %v4410
      %v4412 = vrot.slane %v4407, %v4411
      %v4421 = vunpack.c.l.b16 %v4400
      %v4422 = vunpack.c.l.b16 %v4401
      %v4423 = vunpack.c.l.b16 %v4402
      %v4424 = vunpack.c.l.b16 %v4403
      %v4425 = vunpack.c.l.b16 %v4404
      %v4426 = vunpack.c.l.b16 %v4405
      %v4427 = vunpack.c.l.b16 %v4406
      %v4428 = vpack.c.b16 %v4422, %v4421
      %v4429 = vpack.c.b16 %v4424, %v4423
      %v4430 = vpack.c.b16 %v4426, %v4425
      %v4431 = vpack.c.b16 %v4427, %v4427
      %vm4435 = vcmask 408576
      %v4437 = vsel %vm4435, %v4399, 0
      %vm4439 = vcmask 1040384
      %v4441 = vsel %vm4439, %v4431, 0
      %4443 = vmatprep.subr.bf16.mxu0 0
      %4444 = vmatpush1.bf16.msra.mxu0 0
      %4445 = vmatprep.subr.bf16.mxu0 0
      %4446 = vmatpush1.bf16.msra.mxu0 0
      %4447 = vmatprep.subr.bf16.mxu0 0
      %4448 = vmatpush1.bf16.msra.mxu0 0
      %4449 = vmatprep.subr.bf16.mxu0 0
      %4450 = vmatpush1.bf16.msra.mxu0 0
      %4451 = vmatprep.subr.bf16.mxu0 0
      %4452 = vmatpush1.bf16.msra.mxu0 %v4441
      %4453 = vmatprep.subr.bf16.mxu0 0
      %4454 = vmatpush1.bf16.msra.mxu0 %v4430
      %4455 = vmatprep.subr.bf16.mxu0 0
      %4456 = vmatpush1.bf16.msra.mxu0 %v4429
      %4457 = vmatprep.subr.bf16.mxu0 0
      %4458 = vmatpush1.bf16.msra.mxu0 %v4428
      %4459 = vmatprep.subr.bf16.mxu0 0
      %4460 = vmatpush2.bf16.msra.mxu0 0
      %4461 = vmatprep.subr.bf16.mxu0 0
      %4462 = vmatpush2.bf16.msra.mxu0 0
      %4463 = vmatprep.subr.bf16.mxu0 0
      %4464 = vmatpush2.bf16.msra.mxu0 0
      %4465 = vmatprep.subr.bf16.mxu0 0
      %4466 = vmatpush2.bf16.msra.mxu0 0
      %4467 = vmatprep.subr.bf16.mxu0 0
      %4468 = vmatpush2.bf16.msra.mxu0 0
      %4469 = vmatprep.subr.bf16.mxu0 0
      %4470 = vmatpush2.bf16.msra.mxu0 0
      %4471 = vmatprep.subr.bf16.mxu0 0
      %4472 = vmatpush2.bf16.msra.mxu0 0
      %4473 = vmatprep.subr.bf16.mxu0 0
      %4474 = vmatpush2.bf16.msra.mxu0 0
      %4475 = vmatprep.mubr.bf16.mxu0 0
      %4476 = vmatmul.mubr.bf16.gmra.mxu0 %v4437
      %v4477 = vpop.f32.mrf.mxu0
      %v4478 = vadd.f32 %v4412, %v4477
      %v4479 = vpop.f32.mrf.mxu0
      %v4480 = vpop.f32.mrf.mxu0
      %v4481 = vadd.f32 %v4412, %v4480
      %v4482 = vpop.f32.mrf.mxu0
      %4483 = vdwg.mxu0
      %vm4484 = vcmask 80896
      %v4485 = vsel %vm4484, %v4478, -inf
      %4486 = vmax.xlane.f32.xlu0 %v4485
      %v4487 = vpop.xlane.xlu0 %4486
      %v4488 = vsel %vm4484, %v4481, -inf
      %4489 = vmax.xlane.f32.xlu0 %v4488
      %v4490 = vpop.xlane.xlu0 %4489
      %v4491 = vsub.f32 %v4478, %v4487
      %v4492 = vsub.f32 %v4481, %v4490
      %v4493 = vmul.f32 %v4491, 1.442695
      %v4494 = vpow.pop %v4493
      %v4495 = vmul.f32 %v4492, 1.442695
      %v4496 = vpow.pop %v4495
      %v4497 = vsel %vm4484, %v4494, 0.0
      %4498 = vadd.xlane.f32.xlu0 %v4497
      %v4499 = vpop.xlane.xlu0 %4498
      %v4500 = vsel %vm4484, %v4496, 0.0
      %4501 = vadd.xlane.f32.xlu0 %v4500
      %v4502 = vpop.xlane.xlu0 %4501
      %v4503 = vlog2.pop %v4499
      %v4504 = vmul.f32 %v4503, 0.6931472
      %v4505 = vlog2.pop %v4502
      %v4506 = vmul.f32 %v4505, 0.6931472
      %v4507 = vsub.f32 %v4491, %v4504
      %v4508 = vsub.f32 %v4492, %v4506
      %4509 = vst.msk [vmem:[%s332] sm:$0xff] %vm4484, %v4507
      %4510 = vst.msk [vmem:[%s332 + $0x8] sm:$0xff] %vm4484, %v4508
      %s4511 = smul.u32 2, %s20
      %p4512 = scmp.lt.s32.totalorder %s4511, 3
      %s4513 = scalar_select %p4512, %s4511, 3
      %s4514 = smul.addr %s4513, 8
      %s4515 = scalar_lea.vmem %s9, %s4514
      // Predicated region
      $region57: #{mnist_cnn_forward.1} parent=55 // pred_check
        %p4516 = pneg %p232
      $region58: #{mnist_cnn_forward.1} parent=55 // pred_check_branch
        %4518 = sbr.rel (%p4516) target = $region60
      $region59: #{mnist_cnn_forward.1} parent=55 // pred_region
        %s4519 = smul.u32 2, %s20
      $region60: #{mnist_cnn_forward.1} parent=55 // pred_fallthru
        _
    $region56: #{mnist_cnn_forward.1} parent=5 // pred_fallthru
      _
    %p4520 = scmp.le.s32.totalorder 2, %s15
    // Predicated region
    $region61: #{mnist_cnn_forward.1} parent=5 // pred_check
      %p4521 = pneg %p4520
    $region62: #{mnist_cnn_forward.1} parent=5 // pred_check_branch
      %4523 = sbr.rel (%p4521) target = $region64
    $region63: #{mnist_cnn_forward.1} parent=5 // pred_region
      %s4524 = ssub.s32 %s15, 2
      // Predicated region
      $region65: #{mnist_cnn_forward.1} parent=63 // pred_check
        %p4525 = pneg %p238
      $region66: #{mnist_cnn_forward.1} parent=63 // pred_check_branch
        %4527 = sbr.rel (%p4525) target = $region68
      $region67: #{mnist_cnn_forward.1} parent=63 // pred_region
        %s4528 = smul.u32 2, %s21
        %p4529 = scmp.lt.s32.totalorder %s4528, 3
        %s4530 = scalar_select %p4529, %s4528, 3
        %s4531 = smul.addr %s4530, 8
        %s4532 = scalar_lea.vmem %s9, %s4531
      $region68: #{mnist_cnn_forward.1} parent=63 // pred_fallthru
        _
    $region64: #{mnist_cnn_forward.1} parent=5 // pred_fallthru
      _
  $region6: #{mnist_cnn_forward.1} parent=0 // loop_footer
    %s19 = sadd.s32 1, %s15
  $region7: #{mnist_cnn_forward.1} parent=0 // loop_footer_branch
    %14 = sbr.rel target = $region3
  $region8: #{mnist_cnn_forward.1} parent=0 // loop_exit
    _

</llo_original>
